<compile_context>
chip_gen: v7x
topology: tpu7x:2x2x1
jax: 0.10.0
libtpu: 0.0.40
codegen_flags: <defaults>
</compile_context>

<pallas_src>
import functools

import jax
import jax.numpy as jnp
from jax.experimental import pallas as pl
from jax.experimental.pallas import tpu as pltpu


def _round_up(x: int, m: int) -> int:
    return ((x + m - 1) // m) * m


def _vmem_capacity_bytes() -> int:
    """Physical VMEM per TensorCore; generation-aware fallback via device_kind."""
    try:
        cap = getattr(pltpu.get_tpu_info(), "vmem_capacity_bytes", None)
        if cap:
            return int(cap)
    except Exception:
        pass
    try:
        kind = jax.devices()[0].device_kind.lower()
        if "v7" in kind:
            return 64 << 20
        if any(t in kind for t in ("v5 lite", "v5e", "v5litepod", "v6", "trillium")):
            return 128 << 20
    except Exception:
        pass
    return 64 << 20  # conservative (v7x-sized) if everything fails


_VMEM_CAP = _vmem_capacity_bytes()
# Scoped-VMEM limit with headroom: v7x (64 MiB) -> 48 MiB; v5e/v6e (128 MiB) -> 96 MiB.
_VMEM_LIMIT = int(min(3 * _VMEM_CAP // 4, 96 << 20))
# Budget for ONE weight block.  Double-buffered weight blocks (2x) + resident
# activations + output blocks must stay under _VMEM_LIMIT:
#   v7x: 16 MiB block -> ~33 MiB peak < 48 MiB limit.
_WBLOCK_BUDGET = _VMEM_LIMIT // 3


def _choose_tn(K: int, N: int, elem_bytes: int, budget_bytes: int,
               min_steps: int = 2) -> int:
    """Largest lane-aligned N-tile that (a) divides N, (b) keeps the (K, tn) weight
    block under budget, and (c) if possible leaves >= min_steps grid steps
    (double-buffered DMA overlap + 2-way megacore split)."""
    cands = [t for t in range(128, N + 1, 128) if N % t == 0]
    fitting = [t for t in cands if K * t * elem_bytes <= budget_bytes]
    if not fitting:
        return 128
    deep = [t for t in fitting if N // t >= min_steps]
    return max(deep) if deep else max(fitting)


# ----------------------------------------------------------------------------
# Kernel 1: Linear (+ ReLU), N-tiled, full K resident.  Grid = (N // tn,), parallel.
#   x_ref : (M, K)     bf16   (resident, constant block index)
#   w_ref : (1, K, tn) int8   (block-contiguous weight stream)
#   s_ref : (1, tn)    f32    per-output-channel dequant scale
#   b_ref : (1, tn)    f32    bias
#   o_ref : (M, tn)    bf16
# ----------------------------------------------------------------------------
def _linear_ntile_kernel(x_ref, w_ref, s_ref, b_ref, o_ref, *, relu: bool):
    w = w_ref[0].astype(jnp.bfloat16)          # int8 -> bf16 is exact (|q| <= 127)
    z = jnp.dot(x_ref[...], w, preferred_element_type=jnp.float32)
    z = z * s_ref[...] + b_ref[...]
    if relu:
        z = jnp.maximum(z, 0.0)
    o_ref[...] = z.astype(o_ref.dtype)


def pallas_linear_ntile(x, w_blk, scale, bias, *, relu: bool):
    M, K = x.shape
    NB, K2, tn = w_blk.shape
    assert K == K2, (K, K2)
    N = NB * tn
    assert scale.shape == (1, N) and bias.shape == (1, N)

    return pl.pallas_call(
        functools.partial(_linear_ntile_kernel, relu=relu),
        out_shape=jax.ShapeDtypeStruct((M, N), jnp.bfloat16),
        grid_spec=pltpu.PrefetchScalarGridSpec(
            num_scalar_prefetch=0,
            grid=(NB,),
            in_specs=[
                pl.BlockSpec((M, K), lambda j: (0, 0)),      # resident activations
                pl.BlockSpec((1, K, tn), lambda j: (j, 0, 0)),  # contiguous int8 block
                pl.BlockSpec((1, tn), lambda j: (0, j)),     # dequant scale
                pl.BlockSpec((1, tn), lambda j: (0, j)),     # bias
            ],
            out_specs=pl.BlockSpec((M, tn), lambda j: (0, j)),
        ),
        compiler_params=pltpu.CompilerParams(
            dimension_semantics=("parallel",),
            vmem_limit_bytes=_VMEM_LIMIT,
        ),
    )(x, w_blk, scale, bias)


# ----------------------------------------------------------------------------
# Kernel 2: fused last hidden layer + classifier head, with a leading size-2
# PARALLEL axis splitting the hidden width H so both v7x TensorCores get work.
#   grid = (2, (H//2)//tn):  axis 0 parallel (H halves), axis 1 reduction.
#   per step:  h_j = relu((x @ q3_j) * s3_j + b3_j);  acc += h_j @ W4_j (bf16 x bf16)
#   output: partial logits (2, M, C); bias + sigmoid/softmax applied in plain JAX
#   over the FULL class dim after summing the two partials.
# ----------------------------------------------------------------------------
def _fused_head_kernel(x_ref, w3_ref, s3_ref, b3_ref, w4_ref, o_ref, acc_ref):
    j = pl.program_id(1)

    @pl.when(j == 0)
    def _init():
        acc_ref[...] = jnp.zeros_like(acc_ref)

    w3 = w3_ref[0].astype(jnp.bfloat16)
    h = jnp.dot(x_ref[...], w3, preferred_element_type=jnp.float32)
    h = jnp.maximum(h * s3_ref[...] + b3_ref[...], 0.0)
    acc_ref[...] += jnp.dot(h.astype(jnp.bfloat16), w4_ref[...],
                            preferred_element_type=jnp.float32)

    @pl.when(j == pl.num_programs(1) - 1)
    def _finalize():
        o_ref[0] = acc_ref[...]


def pallas_fused_head(x, w3_blk, s3, b3, w4):
    M, K = x.shape
    NB, K2, tn = w3_blk.shape
    assert K == K2 and NB % 2 == 0, (K, K2, NB)
    H = NB * tn
    H2, C = w4.shape
    assert H == H2, (H, H2)
    half = NB // 2

    return pl.pallas_call(
        _fused_head_kernel,
        out_shape=jax.ShapeDtypeStruct((2, M, C), jnp.float32),
        grid_spec=pltpu.PrefetchScalarGridSpec(
            num_scalar_prefetch=0,
            grid=(2, half),
            in_specs=[
                pl.BlockSpec((M, K), lambda p, j: (0, 0)),               # activations
                pl.BlockSpec((1, K, tn), lambda p, j: (p * half + j, 0, 0)),  # W3 int8
                pl.BlockSpec((1, tn), lambda p, j: (0, p * half + j)),   # s3
                pl.BlockSpec((1, tn), lambda p, j: (0, p * half + j)),   # b3
                pl.BlockSpec((tn, C), lambda p, j: (p * half + j, 0)),   # W4 slice (bf16)
            ],
            out_specs=pl.BlockSpec((1, M, C), lambda p, j: (p, 0, 0)),
            scratch_shapes=[pltpu.VMEM((M, C), jnp.float32)],
        ),
        compiler_params=pltpu.CompilerParams(
            dimension_semantics=("parallel", "arbitrary"),
            vmem_limit_bytes=_VMEM_LIMIT,
        ),
    )(x, w3_blk, s3, b3, w4)


# ----------------------------------------------------------------------------
# Parameter handling: torch.nn.Linear-like init, zero padding, int8 quantization
# with per-output-channel scales, block-contiguous relayout.
# ----------------------------------------------------------------------------
def init_params(key, dims):
    """Deterministic init mimicking torch.nn.Linear defaults:
    W, b ~ U(-1/sqrt(fan_in), 1/sqrt(fan_in)); W stored transposed ([in, out])."""
    params = []
    for i in range(len(dims) - 1):
        fan_in, fan_out = dims[i], dims[i + 1]
        key, kw, kb = jax.random.split(key, 3)
        bound = 1.0 / float(fan_in) ** 0.5
        w_t = jax.random.uniform(kw, (fan_in, fan_out), jnp.float32, -bound, bound)
        b = jax.random.uniform(kb, (1, fan_out), jnp.float32, -bound, bound)
        params.append((w_t, b))
    return params


def _pad(w, b, Kp, Np):
    K, N = w.shape
    wp = jnp.zeros((Kp, Np), jnp.float32).at[:K, :N].set(w)
    bp = jnp.zeros((1, Np), jnp.float32).at[:, :N].set(b)
    return wp, bp


def _quantize_per_channel(w):
    """Symmetric per-output-channel int8 quantization.  Padded (all-zero) columns
    get scale 1 so there is no divide-by-zero; they stay exactly zero."""
    amax = jnp.max(jnp.abs(w), axis=0, keepdims=True)
    scale = jnp.where(amax > 0.0, amax / 127.0, 1.0).astype(jnp.float32)
    q = jnp.clip(jnp.round(w / scale), -127.0, 127.0).astype(jnp.int8)
    return q, scale


def _block_weight(q, tn):
    """(K, N) -> (N//tn, K, tn): each weight block becomes one contiguous DMA."""
    K, N = q.shape
    assert N % tn == 0, (N, tn)
    return jnp.transpose(q.reshape(K, N // tn, tn), (1, 0, 2))


def prepare_params(params):
    """Pad, int8-quantize and pre-block all weights for the Pallas kernels."""
    n_layers = len(params)
    assert n_layers >= 2

    padded_dims = []
    for idx, (w, _) in enumerate(params):
        K, N = w.shape
        Kp = _round_up(K, 128) if idx == 0 else _round_up(K, 512)
        Np = N if idx == n_layers - 1 else _round_up(N, 512)
        padded_dims.append((Kp, Np))

    hidden = []
    for idx in range(n_layers - 2):          # all hidden layers except the last one
        w, b = params[idx]
        Kp, Np = padded_dims[idx]
        wp, bp = _pad(w, b, Kp, Np)
        q, s = _quantize_per_channel(wp)
        tn = _choose_tn(Kp, Np, 1, _WBLOCK_BUDGET, min_steps=2)
        hidden.append((_block_weight(q, tn), s, bp))

    # Last hidden layer (fused with the head): tn must divide H//2 (2-way split).
    w3, b3 = params[-2]
    Kp3, Hp = padded_dims[-2]
    w3p, b3p = _pad(w3, b3, Kp3, Hp)
    q3, s3 = _quantize_per_channel(w3p)
    tn3 = _choose_tn(Kp3, Hp // 2, 1, _WBLOCK_BUDGET, min_steps=1)
    w3_blk = _block_weight(q3, tn3)

    w4, b4 = params[-1]
    Kp4, C = padded_dims[-1]
    assert Kp4 == Hp, (Kp4, Hp)
    w4p, b4p = _pad(w4, b4, Kp4, C)

    return {
        "hidden": hidden,                                   # [(w_blk i8, scale, bias)]
        "head": (w3_blk, s3, b3p, w4p.astype(jnp.bfloat16)),
        "b4": b4p,                                          # (1, C) f32
    }


def forward(x, prepared, n_class):
    """SingleTaskNNClassifier.forward(X, istrain=False) on prepared params."""
    M, D = x.shape
    Dp = prepared["hidden"][0][0].shape[1] if prepared["hidden"] else prepared["head"][0].shape[1]
    h = jnp.zeros((M, Dp), jnp.bfloat16).at[:, :D].set(x.astype(jnp.bfloat16))
    for w_blk, s, b in prepared["hidden"]:
        h = pallas_linear_ntile(h, w_blk, s, b, relu=True)
    w3_blk, s3, b3, w4 = prepared["head"]
    partials = pallas_fused_head(h, w3_blk, s3, b3, w4)      # (2, M, C) partial logits
    logits = jnp.sum(partials, axis=0) + prepared["b4"]      # tiny; plain JAX
    if n_class == 1:
        return jax.nn.sigmoid(logits)
    return jax.nn.softmax(logits, axis=-1)


def forward_ref(x, params, n_class):
    """Pure-JAX f32 reference of the PyTorch forward (istrain=False)."""
    h = x
    for w_t, b in params[:-1]:
        h = jnp.maximum(h @ w_t + b, 0.0)
    w_t, b = params[-1]
    z = h @ w_t + b
    return jax.nn.sigmoid(z) if n_class == 1 else jax.nn.softmax(z, axis=-1)


if __name__ == "__main__":
    n_dim, n_class, batch = 512, 1, 16
    dims = [n_dim, 8000, 4000, 2000, n_class]   # SingleTaskNNClassifier.set_architecture

    key = jax.random.PRNGKey(0)
    key, kx = jax.random.split(key)
    x = jax.random.normal(kx, (batch, n_dim), dtype=jnp.float32)

    params = init_params(key, dims)
    prepared = prepare_params(params)

    out = forward(x, prepared, n_class)
    out = jax.block_until_ready(out)

    ref = forward_ref(x, params, n_class)
    assert out.shape == (batch, n_class), out.shape
    assert bool(jnp.all(jnp.isfinite(out)))
    assert bool(jnp.allclose(out, ref, atol=2e-2, rtol=2e-2)), float(
        jnp.max(jnp.abs(out - ref)))

    print("KERNEL_OK")
</pallas_src>

<mosaic_0001>
module attributes {stable_mosaic.version = 11 : i64} {
  func.func @_linear_ntile_kernel(%arg0: i32, %arg1: memref<16x512xbf16, #tpu.memory_space<vmem>>, %arg2: memref<1x512x4096xi8, #tpu.memory_space<vmem>>, %arg3: memref<1x4096xf32, #tpu.memory_space<vmem>>, %arg4: memref<1x4096xf32, #tpu.memory_space<vmem>>, %arg5: memref<16x4096xbf16, #tpu.memory_space<vmem>>) attributes {dimension_semantics = [#tpu.dimension_semantics<parallel>], iteration_bounds = array<i64: 2>, scalar_prefetch = 0 : i64, scratch_operands = 0 : i64, tpu.core_type = #tpu.core_type<tc>, window_params = [{pipeline_mode = #tpu.pipeline_mode<synchronous>, transform_indices = @transform_0, window_bounds = array<i64: 16, 512>}, {transform_indices = @transform_1, window_bounds = array<i64: 1, 512, 4096>}, {transform_indices = @transform_2, window_bounds = array<i64: 1, 4096>}, {transform_indices = @transform_3, window_bounds = array<i64: 1, 4096>}, {transform_indices = @transform_4, window_bounds = array<i64: 16, 4096>}]} {
    %c0 = arith.constant 0 : index
    %c0_0 = arith.constant 0 : index
    %c0_1 = arith.constant 0 : index
    %0 = vector.load %arg2[%c0, %c0_0, %c0_1] : memref<1x512x4096xi8, #tpu.memory_space<vmem>>, vector<1x512x4096xi8>
    %1 = vector.shape_cast %0 : vector<1x512x4096xi8> to vector<512x4096xi8>
    %2 = arith.sitofp %1 : vector<512x4096xi8> to vector<512x4096xbf16>
    %c0_2 = arith.constant 0 : index
    %c0_3 = arith.constant 0 : index
    %3 = vector.load %arg1[%c0_2, %c0_3] : memref<16x512xbf16, #tpu.memory_space<vmem>>, vector<16x512xbf16>
    %cst = arith.constant dense<0.000000e+00> : vector<16x4096xf32>
    %4 = tpu.matmul %3, %2, %cst {dimension_numbers = #tpu.dot_dimension_numbers<[1], [0], [0], [1], [0, 0, 1, 1], [], []>} : vector<16x512xbf16>, vector<512x4096xbf16>, vector<16x4096xf32> -> vector<16x4096xf32>
    %c0_4 = arith.constant 0 : index
    %c0_5 = arith.constant 0 : index
    %5 = vector.load %arg3[%c0_4, %c0_5] : memref<1x4096xf32, #tpu.memory_space<vmem>>, vector<1x4096xf32>
    %6 = vector.broadcast %5 : vector<1x4096xf32> to vector<16x4096xf32>
    %7 = arith.mulf %4, %6 : vector<16x4096xf32>
    %c0_6 = arith.constant 0 : index
    %c0_7 = arith.constant 0 : index
    %8 = vector.load %arg4[%c0_6, %c0_7] : memref<1x4096xf32, #tpu.memory_space<vmem>>, vector<1x4096xf32>
    %9 = vector.broadcast %8 : vector<1x4096xf32> to vector<16x4096xf32>
    %10 = arith.addf %7, %9 : vector<16x4096xf32>
    %cst_8 = arith.constant 0.000000e+00 : f32
    %11 = vector.broadcast %cst_8 : f32 to vector<16x4096xf32>
    %12 = arith.maximumf %10, %11 : vector<16x4096xf32>
    %13 = arith.truncf %12 : vector<16x4096xf32> to vector<16x4096xbf16>
    %c0_9 = arith.constant 0 : index
    %c0_10 = arith.constant 0 : index
    %14 = vector.load %arg5[%c0_9, %c0_10] : memref<16x4096xbf16, #tpu.memory_space<vmem>>, vector<16x4096xbf16>
    tpu.vector_store %arg5[%c0_9, %c0_10], %13 {strides = array<i32>} : memref<16x4096xbf16, #tpu.memory_space<vmem>>, vector<16x4096xbf16>,
    return
  }
  func.func @transform_0(%arg0: i32) -> (i32, i32) {
    %c0_i32 = arith.constant 0 : i32
    %c0_i32_0 = arith.constant 0 : i32
    %c0_i32_1 = arith.constant 0 : i32
    return %c0_i32, %c0_i32_0 : i32, i32
  }
  func.func @transform_1(%arg0: i32) -> (i32, i32, i32) {
    %c0_i32 = arith.constant 0 : i32
    %c0_i32_0 = arith.constant 0 : i32
    %c0_i32_1 = arith.constant 0 : i32
    return %arg0, %c0_i32, %c0_i32_0 : i32, i32, i32
  }
  func.func @transform_2(%arg0: i32) -> (i32, i32) {
    %c0_i32 = arith.constant 0 : i32
    %c0_i32_0 = arith.constant 0 : i32
    return %c0_i32, %arg0 : i32, i32
  }
  func.func @transform_3(%arg0: i32) -> (i32, i32) {
    %c0_i32 = arith.constant 0 : i32
    %c0_i32_0 = arith.constant 0 : i32
    return %c0_i32, %arg0 : i32, i32
  }
  func.func @transform_4(%arg0: i32) -> (i32, i32) {
    %c0_i32 = arith.constant 0 : i32
    %c0_i32_0 = arith.constant 0 : i32
    return %c0_i32, %arg0 : i32, i32
  }
}

</mosaic_0001>

<llo_original>
// kernel: tpu_custom_call.1
$region0: #{tpu_custom_call.1}
  #allocation0 [shape = 'u32[]', space=smem, size = 0x4, offset = 0x4, fixed_abs, tag = 'smem constant byte address 0x4 - core index']
  #allocation1 [shape = 'u32[144,128]{1,0:T(1,128)}', space=vmem, size = 0x12000, scoped, tag = 'internal scratch']
  %s0 = inlined_call_operand.hbm [shape: bf16[16,512], index: 0, kind: input, shape index: {}]
  %s1 = inlined_call_operand.hbm [shape: s8[2,512,4096], index: 1, kind: input, shape index: {}]
  %s2 = inlined_call_operand.hbm [shape: f32[1,8192], index: 2, kind: input, shape index: {}]
  %s3 = inlined_call_operand.hbm [shape: f32[1,8192], index: 3, kind: input, shape index: {}]
  %s4 = inlined_call_operand.hbm [shape: bf16[16,8192], index: 4, kind: output, shape index: {}]
  %s5 = sld [smem:[#allocation0]]
  $region65: #{tpu_custom_call.1} parent=0
    _
  %s7 = ssub.s32 1, %s5
  %s8 = scalar_select 0, %s7, %s5
  $region1: #{tpu_custom_call.1} parent=0
    #allocation2 [shape = 'u8[16384]{0}', space=vmem, size = 0x4000, scoped, tag = 'input window, operand 0, single buffered']
    #allocation3 [shape = 's32[2]{0}', space=sflag, size = 0x8, scoped, tag = 'scoped memory for tpu_custom_call.1']
    #allocation4 [shape = 's32[2]{0}', space=sflag, size = 0x8, scoped, tag = 'scoped memory for tpu_custom_call.1']
    #allocation5 [shape = 'u8[4194304]{0}', space=vmem, size = 0x400000, scoped, tag = 'input window, operand 1']
    #allocation6 [shape = 's32[2]{0}', space=sflag, size = 0x8, scoped, tag = 'scoped memory for tpu_custom_call.1']
    #allocation7 [shape = 'u8[32768]{0}', space=vmem, size = 0x8000, scoped, tag = 'input window, operand 2']
    #allocation8 [shape = 'u8[32768]{0}', space=vmem, size = 0x8000, scoped, tag = 'input window, operand 3']
    #allocation9 [shape = 's32[2]{0}', space=sflag, size = 0x8, scoped, tag = 'scoped memory for tpu_custom_call.1']
    #allocation10 [shape = 'u8[262144]{0}', space=vmem, size = 0x40000, scoped, tag = 'output window, operand 0']
    %9 = vsyncpa [#allocation3], 0
    %10 = vsyncpa [#allocation6], 0
    %s11 = scalar_lea.sflag [#allocation6], 1
    %12 = vsyncpa %s11, 0
    %13 = vsyncpa [#allocation9], 0
    %s14 = scalar_lea.sflag [#allocation9], 1
    %15 = vsyncpa %s14, 0
    %16 = vsyncpa [#allocation4], 0
    %s17 = scalar_lea.sflag [#allocation4], 1
    %18 = vsyncpa %s17, 0
    loop: start=0, step=1, limit=4
    $region2: #{tpu_custom_call.1} parent=1 // loop_pre_header
      _
    $region3: #{tpu_custom_call.1} parent=1 // loop_header
      %s20 = sphi 0, %s24
      %p21 = scmp.ge.s32.totalorder %s20, 4
      %s28 = sphi 0, %s28
      %s30 = sphi 0, %s28
      %s31 = sphi 0, %s30
      %s45 = sphi 0, %s31
      %s51 = sphi 0, %s53
      %s54 = sphi 0, %s51
      %s55 = sphi 0, %s54
      %s71 = sphi 0, %s55
      %s77 = sphi 0, %s79
      %s80 = sphi 0, %s77
      %s81 = sphi 0, %s80
      %s97 = sphi 0, %s81
      %s103 = sphi 0, %s105
      %s106 = sphi 0, %s103
      %s107 = sphi 0, %s106
      %s123 = sphi 0, %s107
      %s129 = sphi 0, %s131
      %s132 = sphi 0, %s129
      %s133 = sphi 0, %s132
      %s149 = sphi 0, %s133
    $region4: #{tpu_custom_call.1} parent=1 // loop_header_branch
      %23 = sbr.rel (%p21) target = $region8
    $region5: #{tpu_custom_call.1} parent=1 // loop_body
      %s25 = ssub.s32 %s20, 1
      %s26 = ssub.s32 %s20, 2
      %s27 = sadd.s32 %s20, 1
      %s29 = sadd.s32 %s28, 1
      %p32 = scmp.eq.s32.totalorder %s20, 1
      %p33 = scmp.ne.s32.totalorder %s28, %s30
      %p34 = scmp.eq.s32.totalorder %s20, 0
      %p35 = por %p33, %p34
      %p36 = scmp.ne.s32.totalorder %s28, %s30
      %p37 = scmp.eq.s32.totalorder %s25, 1
      %p38 = por %p36, %p37
      %p39 = scmp.ne.s32.totalorder %s30, %s31
      %p40 = scmp.eq.s32.totalorder %s25, 0
      %p41 = por %p39, %p40
      %p42 = scmp.ne.s32.totalorder %s30, %s31
      %p43 = scmp.eq.s32.totalorder %s26, 1
      %p44 = por %p42, %p43
      %p46 = scmp.ne.s32.totalorder %s31, %s45
      %p47 = scmp.eq.s32.totalorder %s26, 0
      %p48 = por %p46, %p47
      %s49 = ssub.s32 %s20, %s27
      %p50 = scmp.eq.s32.totalorder %s49, 0
      %s52 = sadd.s32 %s51, 1
      %s53 = scalar_select %p50, %s51, %s52
      %p56 = pneg %p50
      %p57 = scmp.eq.s32.totalorder %s20, 1
      %p58 = por %p56, %p57
      %p59 = scmp.ne.s32.totalorder %s51, %s54
      %p60 = scmp.eq.s32.totalorder %s20, 0
      %p61 = por %p59, %p60
      %p62 = scmp.ne.s32.totalorder %s51, %s54
      %p63 = scmp.eq.s32.totalorder %s25, 1
      %p64 = por %p62, %p63
      %p65 = scmp.ne.s32.totalorder %s54, %s55
      %p66 = scmp.eq.s32.totalorder %s25, 0
      %p67 = por %p65, %p66
      %p68 = scmp.ne.s32.totalorder %s54, %s55
      %p69 = scmp.eq.s32.totalorder %s26, 1
      %p70 = por %p68, %p69
      %p72 = scmp.ne.s32.totalorder %s55, %s71
      %p73 = scmp.eq.s32.totalorder %s26, 0
      %p74 = por %p72, %p73
      %s75 = ssub.s32 %s20, %s27
      %p76 = scmp.eq.s32.totalorder %s75, 0
      %s78 = sadd.s32 %s77, 1
      %s79 = scalar_select %p76, %s77, %s78
      %p82 = pneg %p76
      %p83 = scmp.eq.s32.totalorder %s20, 1
      %p84 = por %p82, %p83
      %p85 = scmp.ne.s32.totalorder %s77, %s80
      %p86 = scmp.eq.s32.totalorder %s20, 0
      %p87 = por %p85, %p86
      %p88 = scmp.ne.s32.totalorder %s77, %s80
      %p89 = scmp.eq.s32.totalorder %s25, 1
      %p90 = por %p88, %p89
      %p91 = scmp.ne.s32.totalorder %s80, %s81
      %p92 = scmp.eq.s32.totalorder %s25, 0
      %p93 = por %p91, %p92
      %p94 = scmp.ne.s32.totalorder %s80, %s81
      %p95 = scmp.eq.s32.totalorder %s26, 1
      %p96 = por %p94, %p95
      %p98 = scmp.ne.s32.totalorder %s81, %s97
      %p99 = scmp.eq.s32.totalorder %s26, 0
      %p100 = por %p98, %p99
      %s101 = ssub.s32 %s20, %s27
      %p102 = scmp.eq.s32.totalorder %s101, 0
      %s104 = sadd.s32 %s103, 1
      %s105 = scalar_select %p102, %s103, %s104
      %p108 = pneg %p102
      %p109 = scmp.eq.s32.totalorder %s20, 1
      %p110 = por %p108, %p109
      %p111 = scmp.ne.s32.totalorder %s103, %s106
      %p112 = scmp.eq.s32.totalorder %s20, 0
      %p113 = por %p111, %p112
      %p114 = scmp.ne.s32.totalorder %s103, %s106
      %p115 = scmp.eq.s32.totalorder %s25, 1
      %p116 = por %p114, %p115
      %p117 = scmp.ne.s32.totalorder %s106, %s107
      %p118 = scmp.eq.s32.totalorder %s25, 0
      %p119 = por %p117, %p118
      %p120 = scmp.ne.s32.totalorder %s106, %s107
      %p121 = scmp.eq.s32.totalorder %s26, 1
      %p122 = por %p120, %p121
      %p124 = scmp.ne.s32.totalorder %s107, %s123
      %p125 = scmp.eq.s32.totalorder %s26, 0
      %p126 = por %p124, %p125
      %s127 = ssub.s32 %s20, %s27
      %p128 = scmp.eq.s32.totalorder %s127, 0
      %s130 = sadd.s32 %s129, 1
      %s131 = scalar_select %p128, %s129, %s130
      %p134 = pneg %p128
      %p135 = scmp.eq.s32.totalorder %s20, 1
      %p136 = por %p134, %p135
      %p137 = scmp.ne.s32.totalorder %s129, %s132
      %p138 = scmp.eq.s32.totalorder %s20, 0
      %p139 = por %p137, %p138
      %p140 = scmp.ne.s32.totalorder %s129, %s132
      %p141 = scmp.eq.s32.totalorder %s25, 1
      %p142 = por %p140, %p141
      %p143 = scmp.ne.s32.totalorder %s132, %s133
      %p144 = scmp.eq.s32.totalorder %s25, 0
      %p145 = por %p143, %p144
      %p146 = scmp.ne.s32.totalorder %s132, %s133
      %p147 = scmp.eq.s32.totalorder %s26, 1
      %p148 = por %p146, %p147
      %p150 = scmp.ne.s32.totalorder %s133, %s149
      %p151 = scmp.eq.s32.totalorder %s26, 0
      %p152 = por %p150, %p151
      %p153 = scmp.le.s32.totalorder 1, %s20
      %p154 = scmp.lt.s32.totalorder %s20, 3
      %p155 = pnand %p153, %p154
      %p156 = pneg %p155
      // Predicated region
      $region9: #{tpu_custom_call.1} parent=5 // pred_check
        _
      $region10: #{tpu_custom_call.1} parent=5 // pred_check_branch
        %158 = sbr.rel (%p155) target = $region12
      $region11: #{tpu_custom_call.1} parent=5 // pred_region
        %s159 = ssub.s32 %s20, 1
        // Predicated region
        $region13: #{tpu_custom_call.1} parent=11 // pred_check
          %p160 = pneg %p41
        $region14: #{tpu_custom_call.1} parent=11 // pred_check_branch
          %162 = sbr.rel (%p160) target = $region16
        $region15: #{tpu_custom_call.1} parent=11 // pred_region
          %s164 = ssub.s32 512, 512
          %165 = vsyncadd [#allocation3], %s164
          %s166 = sshll.u32 [#allocation2], 4
          %s167 = int_to_ptr.vmem [resolvable:$true] %s166
          %172 = dma.hbm_to_vmem [thread:$0]  %s0, 512, %s167, [#allocation3], 256, 256, 16
        $region16: #{tpu_custom_call.1} parent=11 // pred_fallthru
          _
      $region12: #{tpu_custom_call.1} parent=5 // pred_fallthru
        _
      %p173 = scmp.lt.s32.totalorder %s20, 2
      // Predicated region
      $region17: #{tpu_custom_call.1} parent=5 // pred_check
        %p174 = pneg %p173
      $region18: #{tpu_custom_call.1} parent=5 // pred_check_branch
        %176 = sbr.rel (%p174) target = $region20
      $region19: #{tpu_custom_call.1} parent=5 // pred_region
        // Predicated region
        $region21: #{tpu_custom_call.1} parent=19 // pred_check
          %p177 = pneg %p61
        $region22: #{tpu_custom_call.1} parent=19 // pred_check_branch
          %179 = sbr.rel (%p177) target = $region24
        $region23: #{tpu_custom_call.1} parent=19 // pred_region
          %s180 = sand.u32 %s20, 1
          %s181 = scalar_lea.sflag [#allocation6], %s180
          %s182 = sand.u32 %s51, 1
          %s183 = smul.addr %s182, 4096
          %s184 = scalar_lea.vmem [#allocation5], %s183
          %s186 = ssub.s32 65536, 65536
          %187 = vsyncadd %s181, %s186
          %s188 = smul.addr %s20, 512
          %s189 = smul.addr %s188, 128
          %s190 = scalar_lea.hbm %s1, %s189
          %s191 = sshll.u32 %s184, 4
          %s192 = int_to_ptr.vmem [resolvable:$true] %s191
          %197 = dma.hbm_to_vmem [thread:$0]  %s190, 65536, %s192, %s181, 4096, 4096, 256
        $region24: #{tpu_custom_call.1} parent=19 // pred_fallthru
          _
        // Predicated region
        $region25: #{tpu_custom_call.1} parent=19 // pred_check
          %p198 = pneg %p87
        $region26: #{tpu_custom_call.1} parent=19 // pred_check_branch
          %200 = sbr.rel (%p198) target = $region28
        $region27: #{tpu_custom_call.1} parent=19 // pred_region
          %s201 = sand.u32 %s20, 1
          %s202 = scalar_lea.sflag [#allocation6], %s201
          %s203 = sand.u32 %s77, 1
          %s204 = smul.addr %s203, 32
          %s205 = scalar_lea.vmem [#allocation7], %s204
          %s206 = smul.u32 32, %s20
          %s208 = ssub.s32 512, 512
          %209 = vsyncadd %s202, %s208
          %s210 = smul.addr %s206, 16
          %s211 = scalar_lea.hbm %s2, %s210
          %s213 = sshll.u32 %s205, 4
          %s214 = int_to_ptr.vmem [resolvable:$true] %s213
          %216 = dma.hbm_to_vmem [thread:$0]  %s211, 512, %s214, %s202
        $region28: #{tpu_custom_call.1} parent=19 // pred_fallthru
          _
        // Predicated region
        $region29: #{tpu_custom_call.1} parent=19 // pred_check
          %p217 = pneg %p113
        $region30: #{tpu_custom_call.1} parent=19 // pred_check_branch
          %219 = sbr.rel (%p217) target = $region32
        $region31: #{tpu_custom_call.1} parent=19 // pred_region
          %s220 = sand.u32 %s103, 1
          %s221 = scalar_lea.sflag [#allocation9], %s220
          %s222 = sand.u32 %s103, 1
          %s223 = smul.addr %s222, 32
          %s224 = scalar_lea.vmem [#allocation8], %s223
          %s225 = smul.u32 32, %s20
          %s227 = ssub.s32 512, 512
          %228 = vsyncadd %s221, %s227
          %s229 = smul.addr %s225, 16
          %s230 = scalar_lea.hbm %s3, %s229
          %s232 = sshll.u32 %s224, 4
          %s233 = int_to_ptr.vmem [resolvable:$true] %s232
          %235 = dma.hbm_to_vmem [thread:$0]  %s230, 512, %s233, %s221
        $region32: #{tpu_custom_call.1} parent=19 // pred_fallthru
          _
      $region20: #{tpu_custom_call.1} parent=5 // pred_fallthru
        _
      %p236 = scmp.le.s32.totalorder 1, %s20
      %p237 = scmp.lt.s32.totalorder %s20, 3
      %p238 = pnand %p236, %p237
      %p239 = pneg %p238
      // Predicated region
      $region33: #{tpu_custom_call.1} parent=5 // pred_check
        _
      $region34: #{tpu_custom_call.1} parent=5 // pred_check_branch
        %241 = sbr.rel (%p238) target = $region36
      $region35: #{tpu_custom_call.1} parent=5 // pred_region
        %s242 = ssub.s32 %s20, 1
        // Predicated region
        $region37: #{tpu_custom_call.1} parent=35 // pred_check
          %p243 = pneg %p41
        $region38: #{tpu_custom_call.1} parent=35 // pred_check_branch
          %245 = sbr.rel (%p243) target = $region40
        $region39: #{tpu_custom_call.1} parent=35 // pred_region
          %246 = dma.done [#allocation3], 512
        $region40: #{tpu_custom_call.1} parent=35 // pred_fallthru
          _
        %s247 = sand.u32 %s25, 1
        %s248 = scalar_lea.sflag [#allocation6], %s247
        %s249 = sand.u32 %s54, 1
        %s250 = smul.addr %s249, 4096
        %s251 = scalar_lea.vmem [#allocation5], %s250
        // Predicated region
        $region41: #{tpu_custom_call.1} parent=35 // pred_check
          %p252 = pneg %p67
        $region42: #{tpu_custom_call.1} parent=35 // pred_check_branch
          %254 = sbr.rel (%p252) target = $region44
        $region43: #{tpu_custom_call.1} parent=35 // pred_region
          %255 = dma.done %s248, 65536
        $region44: #{tpu_custom_call.1} parent=35 // pred_fallthru
          _
        %s256 = sand.u32 %s25, 1
        %s257 = scalar_lea.sflag [#allocation6], %s256
        %s258 = sand.u32 %s80, 1
        %s259 = smul.addr %s258, 32
        %s260 = scalar_lea.vmem [#allocation7], %s259
        // Predicated region
        $region45: #{tpu_custom_call.1} parent=35 // pred_check
          %p261 = pneg %p93
        $region46: #{tpu_custom_call.1} parent=35 // pred_check_branch
          %263 = sbr.rel (%p261) target = $region48
        $region47: #{tpu_custom_call.1} parent=35 // pred_region
          %264 = dma.done %s257, 512
        $region48: #{tpu_custom_call.1} parent=35 // pred_fallthru
          _
        %s265 = sand.u32 %s106, 1
        %s266 = scalar_lea.sflag [#allocation9], %s265
        %s267 = sand.u32 %s106, 1
        %s268 = smul.addr %s267, 32
        %s269 = scalar_lea.vmem [#allocation8], %s268
        // Predicated region
        $region49: #{tpu_custom_call.1} parent=35 // pred_check
          %p270 = pneg %p119
        $region50: #{tpu_custom_call.1} parent=35 // pred_check_branch
          %272 = sbr.rel (%p270) target = $region52
        $region51: #{tpu_custom_call.1} parent=35 // pred_region
          %273 = dma.done %s266, 512
        $region52: #{tpu_custom_call.1} parent=35 // pred_fallthru
          _
        %p274 = pneg %p41
        %p275 = pneg %p38
        %s276 = sand.u32 %s25, 1
        %s277 = scalar_lea.sflag [#allocation6], %s276
        %s278 = sand.u32 %s54, 1
        %s279 = smul.addr %s278, 4096
        %s280 = scalar_lea.vmem [#allocation5], %s279
        %p281 = pneg %p67
        %p282 = pneg %p64
        %s283 = sand.u32 %s25, 1
        %s284 = scalar_lea.sflag [#allocation6], %s283
        %s285 = sand.u32 %s80, 1
        %s286 = smul.addr %s285, 32
        %s287 = scalar_lea.vmem [#allocation7], %s286
        %p288 = pneg %p93
        %p289 = pneg %p90
        %s290 = sand.u32 %s106, 1
        %s291 = scalar_lea.sflag [#allocation9], %s290
        %s292 = sand.u32 %s106, 1
        %s293 = smul.addr %s292, 32
        %s294 = scalar_lea.vmem [#allocation8], %s293
        %p295 = pneg %p119
        %p296 = pneg %p116
        %p297 = pneg %p145
        %p298 = pneg %p142
        %s299 = sand.u32 %s132, 1
        %s300 = scalar_lea.sflag [#allocation4], %s299
        %s301 = sand.u32 %s132, 1
        %s302 = smul.addr %s301, 256
        %s303 = scalar_lea.vmem [#allocation10], %s302
        %s304 = smul.u32 32, %s25
        %s305 = smul.u32 32, %s25
        %s306 = smul.u32 32, %s25
        %v307 = vld [vmem:[%s251] sm:$0xff]
        %v308 = vld [vmem:[%s251 + $0x8] sm:$0xff]
        %v309 = vld [vmem:[%s251 + $0x10] sm:$0xff]
        %v310 = vld [vmem:[%s251 + $0x18] sm:$0xff]
        %v311 = vld [vmem:[%s251 + $0x20] sm:$0xff]
        %v312 = vld [vmem:[%s251 + $0x28] sm:$0xff]
        %v313 = vld [vmem:[%s251 + $0x30] sm:$0xff]
        %v314 = vld [vmem:[%s251 + $0x38] sm:$0xff]
        %v315 = vld [vmem:[%s251 + $0x40] sm:$0xff]
        %v316 = vld [vmem:[%s251 + $0x48] sm:$0xff]
        %v317 = vld [vmem:[%s251 + $0x50] sm:$0xff]
        %v318 = vld [vmem:[%s251 + $0x58] sm:$0xff]
        %v319 = vld [vmem:[%s251 + $0x60] sm:$0xff]
        %v320 = vld [vmem:[%s251 + $0x68] sm:$0xff]
        %v321 = vld [vmem:[%s251 + $0x70] sm:$0xff]
        %v322 = vld [vmem:[%s251 + $0x78] sm:$0xff]
        %v323 = vld [vmem:[%s251 + $0x80] sm:$0xff]
        %v324 = vld [vmem:[%s251 + $0x88] sm:$0xff]
        %v325 = vld [vmem:[%s251 + $0x90] sm:$0xff]
        %v326 = vld [vmem:[%s251 + $0x98] sm:$0xff]
        %v327 = vld [vmem:[%s251 + $0xa0] sm:$0xff]
        %v328 = vld [vmem:[%s251 + $0xa8] sm:$0xff]
        %v329 = vld [vmem:[%s251 + $0xb0] sm:$0xff]
        %v330 = vld [vmem:[%s251 + $0xb8] sm:$0xff]
        %v331 = vld [vmem:[%s251 + $0xc0] sm:$0xff]
        %v332 = vld [vmem:[%s251 + $0xc8] sm:$0xff]
        %v333 = vld [vmem:[%s251 + $0xd0] sm:$0xff]
        %v334 = vld [vmem:[%s251 + $0xd8] sm:$0xff]
        %v335 = vld [vmem:[%s251 + $0xe0] sm:$0xff]
        %v336 = vld [vmem:[%s251 + $0xe8] sm:$0xff]
        %v337 = vld [vmem:[%s251 + $0xf0] sm:$0xff]
        %v338 = vld [vmem:[%s251 + $0xf8] sm:$0xff]
        %v339 = vld [vmem:[%s251 + $0x100] sm:$0xff]
        %v340 = vld [vmem:[%s251 + $0x108] sm:$0xff]
        %v341 = vld [vmem:[%s251 + $0x110] sm:$0xff]
        %v342 = vld [vmem:[%s251 + $0x118] sm:$0xff]
        %v343 = vld [vmem:[%s251 + $0x120] sm:$0xff]
        %v344 = vld [vmem:[%s251 + $0x128] sm:$0xff]
        %v345 = vld [vmem:[%s251 + $0x130] sm:$0xff]
        %v346 = vld [vmem:[%s251 + $0x138] sm:$0xff]
        %v347 = vld [vmem:[%s251 + $0x140] sm:$0xff]
        %v348 = vld [vmem:[%s251 + $0x148] sm:$0xff]
        %v349 = vld [vmem:[%s251 + $0x150] sm:$0xff]
        %v350 = vld [vmem:[%s251 + $0x158] sm:$0xff]
        %v351 = vld [vmem:[%s251 + $0x160] sm:$0xff]
        %v352 = vld [vmem:[%s251 + $0x168] sm:$0xff]
        %v353 = vld [vmem:[%s251 + $0x170] sm:$0xff]
        %v354 = vld [vmem:[%s251 + $0x178] sm:$0xff]
        %v355 = vld [vmem:[%s251 + $0x180] sm:$0xff]
        %v356 = vld [vmem:[%s251 + $0x188] sm:$0xff]
        %v357 = vld [vmem:[%s251 + $0x190] sm:$0xff]
        %v358 = vld [vmem:[%s251 + $0x198] sm:$0xff]
        %v359 = vld [vmem:[%s251 + $0x1a0] sm:$0xff]
        %v360 = vld [vmem:[%s251 + $0x1a8] sm:$0xff]
        %v361 = vld [vmem:[%s251 + $0x1b0] sm:$0xff]
        %v362 = vld [vmem:[%s251 + $0x1b8] sm:$0xff]
        %v363 = vld [vmem:[%s251 + $0x1c0] sm:$0xff]
        %v364 = vld [vmem:[%s251 + $0x1c8] sm:$0xff]
        %v365 = vld [vmem:[%s251 + $0x1d0] sm:$0xff]
        %v366 = vld [vmem:[%s251 + $0x1d8] sm:$0xff]
        %v367 = vld [vmem:[%s251 + $0x1e0] sm:$0xff]
        %v368 = vld [vmem:[%s251 + $0x1e8] sm:$0xff]
        %v369 = vld [vmem:[%s251 + $0x1f0] sm:$0xff]
        %v370 = vld [vmem:[%s251 + $0x1f8] sm:$0xff]
        %v371 = vld [vmem:[%s251 + $0x200] sm:$0xff]
        %v372 = vld [vmem:[%s251 + $0x208] sm:$0xff]
        %v373 = vld [vmem:[%s251 + $0x210] sm:$0xff]
        %v374 = vld [vmem:[%s251 + $0x218] sm:$0xff]
        %v375 = vld [vmem:[%s251 + $0x220] sm:$0xff]
        %v376 = vld [vmem:[%s251 + $0x228] sm:$0xff]
        %v377 = vld [vmem:[%s251 + $0x230] sm:$0xff]
        %v378 = vld [vmem:[%s251 + $0x238] sm:$0xff]
        %v379 = vld [vmem:[%s251 + $0x240] sm:$0xff]
        %v380 = vld [vmem:[%s251 + $0x248] sm:$0xff]
        %v381 = vld [vmem:[%s251 + $0x250] sm:$0xff]
        %v382 = vld [vmem:[%s251 + $0x258] sm:$0xff]
        %v383 = vld [vmem:[%s251 + $0x260] sm:$0xff]
        %v384 = vld [vmem:[%s251 + $0x268] sm:$0xff]
        %v385 = vld [vmem:[%s251 + $0x270] sm:$0xff]
        %v386 = vld [vmem:[%s251 + $0x278] sm:$0xff]
        %v387 = vld [vmem:[%s251 + $0x280] sm:$0xff]
        %v388 = vld [vmem:[%s251 + $0x288] sm:$0xff]
        %v389 = vld [vmem:[%s251 + $0x290] sm:$0xff]
        %v390 = vld [vmem:[%s251 + $0x298] sm:$0xff]
        %v391 = vld [vmem:[%s251 + $0x2a0] sm:$0xff]
        %v392 = vld [vmem:[%s251 + $0x2a8] sm:$0xff]
        %v393 = vld [vmem:[%s251 + $0x2b0] sm:$0xff]
        %v394 = vld [vmem:[%s251 + $0x2b8] sm:$0xff]
        %v395 = vld [vmem:[%s251 + $0x2c0] sm:$0xff]
        %v396 = vld [vmem:[%s251 + $0x2c8] sm:$0xff]
        %v397 = vld [vmem:[%s251 + $0x2d0] sm:$0xff]
        %v398 = vld [vmem:[%s251 + $0x2d8] sm:$0xff]
        %v399 = vld [vmem:[%s251 + $0x2e0] sm:$0xff]
        %v400 = vld [vmem:[%s251 + $0x2e8] sm:$0xff]
        %v401 = vld [vmem:[%s251 + $0x2f0] sm:$0xff]
        %v402 = vld [vmem:[%s251 + $0x2f8] sm:$0xff]
        %v403 = vld [vmem:[%s251 + $0x300] sm:$0xff]
        %v404 = vld [vmem:[%s251 + $0x308] sm:$0xff]
        %v405 = vld [vmem:[%s251 + $0x310] sm:$0xff]
        %v406 = vld [vmem:[%s251 + $0x318] sm:$0xff]
        %v407 = vld [vmem:[%s251 + $0x320] sm:$0xff]
        %v408 = vld [vmem:[%s251 + $0x328] sm:$0xff]
        %v409 = vld [vmem:[%s251 + $0x330] sm:$0xff]
        %v410 = vld [vmem:[%s251 + $0x338] sm:$0xff]
        %v411 = vld [vmem:[%s251 + $0x340] sm:$0xff]
        %v412 = vld [vmem:[%s251 + $0x348] sm:$0xff]
        %v413 = vld [vmem:[%s251 + $0x350] sm:$0xff]
        %v414 = vld [vmem:[%s251 + $0x358] sm:$0xff]
        %v415 = vld [vmem:[%s251 + $0x360] sm:$0xff]
        %v416 = vld [vmem:[%s251 + $0x368] sm:$0xff]
        %v417 = vld [vmem:[%s251 + $0x370] sm:$0xff]
        %v418 = vld [vmem:[%s251 + $0x378] sm:$0xff]
        %v419 = vld [vmem:[%s251 + $0x380] sm:$0xff]
        %v420 = vld [vmem:[%s251 + $0x388] sm:$0xff]
        %v421 = vld [vmem:[%s251 + $0x390] sm:$0xff]
        %v422 = vld [vmem:[%s251 + $0x398] sm:$0xff]
        %v423 = vld [vmem:[%s251 + $0x3a0] sm:$0xff]
        %v424 = vld [vmem:[%s251 + $0x3a8] sm:$0xff]
        %v425 = vld [vmem:[%s251 + $0x3b0] sm:$0xff]
        %v426 = vld [vmem:[%s251 + $0x3b8] sm:$0xff]
        %v427 = vld [vmem:[%s251 + $0x3c0] sm:$0xff]
        %v428 = vld [vmem:[%s251 + $0x3c8] sm:$0xff]
        %v429 = vld [vmem:[%s251 + $0x3d0] sm:$0xff]
        %v430 = vld [vmem:[%s251 + $0x3d8] sm:$0xff]
        %v431 = vld [vmem:[%s251 + $0x3e0] sm:$0xff]
        %v432 = vld [vmem:[%s251 + $0x3e8] sm:$0xff]
        %v433 = vld [vmem:[%s251 + $0x3f0] sm:$0xff]
        %v434 = vld [vmem:[%s251 + $0x3f8] sm:$0xff]
        %v435 = vld [vmem:[%s251 + $0x400] sm:$0xff]
        %v436 = vld [vmem:[%s251 + $0x408] sm:$0xff]
        %v437 = vld [vmem:[%s251 + $0x410] sm:$0xff]
        %v438 = vld [vmem:[%s251 + $0x418] sm:$0xff]
        %v439 = vld [vmem:[%s251 + $0x420] sm:$0xff]
        %v440 = vld [vmem:[%s251 + $0x428] sm:$0xff]
        %v441 = vld [vmem:[%s251 + $0x430] sm:$0xff]
        %v442 = vld [vmem:[%s251 + $0x438] sm:$0xff]
        %v443 = vld [vmem:[%s251 + $0x440] sm:$0xff]
        %v444 = vld [vmem:[%s251 + $0x448] sm:$0xff]
        %v445 = vld [vmem:[%s251 + $0x450] sm:$0xff]
        %v446 = vld [vmem:[%s251 + $0x458] sm:$0xff]
        %v447 = vld [vmem:[%s251 + $0x460] sm:$0xff]
        %v448 = vld [vmem:[%s251 + $0x468] sm:$0xff]
        %v449 = vld [vmem:[%s251 + $0x470] sm:$0xff]
        %v450 = vld [vmem:[%s251 + $0x478] sm:$0xff]
        %v451 = vld [vmem:[%s251 + $0x480] sm:$0xff]
        %v452 = vld [vmem:[%s251 + $0x488] sm:$0xff]
        %v453 = vld [vmem:[%s251 + $0x490] sm:$0xff]
        %v454 = vld [vmem:[%s251 + $0x498] sm:$0xff]
        %v455 = vld [vmem:[%s251 + $0x4a0] sm:$0xff]
        %v456 = vld [vmem:[%s251 + $0x4a8] sm:$0xff]
        %v457 = vld [vmem:[%s251 + $0x4b0] sm:$0xff]
        %v458 = vld [vmem:[%s251 + $0x4b8] sm:$0xff]
        %v459 = vld [vmem:[%s251 + $0x4c0] sm:$0xff]
        %v460 = vld [vmem:[%s251 + $0x4c8] sm:$0xff]
        %v461 = vld [vmem:[%s251 + $0x4d0] sm:$0xff]
        %v462 = vld [vmem:[%s251 + $0x4d8] sm:$0xff]
        %v463 = vld [vmem:[%s251 + $0x4e0] sm:$0xff]
        %v464 = vld [vmem:[%s251 + $0x4e8] sm:$0xff]
        %v465 = vld [vmem:[%s251 + $0x4f0] sm:$0xff]
        %v466 = vld [vmem:[%s251 + $0x4f8] sm:$0xff]
        %v467 = vld [vmem:[%s251 + $0x500] sm:$0xff]
        %v468 = vld [vmem:[%s251 + $0x508] sm:$0xff]
        %v469 = vld [vmem:[%s251 + $0x510] sm:$0xff]
        %v470 = vld [vmem:[%s251 + $0x518] sm:$0xff]
        %v471 = vld [vmem:[%s251 + $0x520] sm:$0xff]
        %v472 = vld [vmem:[%s251 + $0x528] sm:$0xff]
        %v473 = vld [vmem:[%s251 + $0x530] sm:$0xff]
        %v474 = vld [vmem:[%s251 + $0x538] sm:$0xff]
        %v475 = vld [vmem:[%s251 + $0x540] sm:$0xff]
        %v476 = vld [vmem:[%s251 + $0x548] sm:$0xff]
        %v477 = vld [vmem:[%s251 + $0x550] sm:$0xff]
        %v478 = vld [vmem:[%s251 + $0x558] sm:$0xff]
        %v479 = vld [vmem:[%s251 + $0x560] sm:$0xff]
        %v480 = vld [vmem:[%s251 + $0x568] sm:$0xff]
        %v481 = vld [vmem:[%s251 + $0x570] sm:$0xff]
        %v482 = vld [vmem:[%s251 + $0x578] sm:$0xff]
        %v483 = vld [vmem:[%s251 + $0x580] sm:$0xff]
        %v484 = vld [vmem:[%s251 + $0x588] sm:$0xff]
        %v485 = vld [vmem:[%s251 + $0x590] sm:$0xff]
        %v486 = vld [vmem:[%s251 + $0x598] sm:$0xff]
        %v487 = vld [vmem:[%s251 + $0x5a0] sm:$0xff]
        %v488 = vld [vmem:[%s251 + $0x5a8] sm:$0xff]
        %v489 = vld [vmem:[%s251 + $0x5b0] sm:$0xff]
        %v490 = vld [vmem:[%s251 + $0x5b8] sm:$0xff]
        %v491 = vld [vmem:[%s251 + $0x5c0] sm:$0xff]
        %v492 = vld [vmem:[%s251 + $0x5c8] sm:$0xff]
        %v493 = vld [vmem:[%s251 + $0x5d0] sm:$0xff]
        %v494 = vld [vmem:[%s251 + $0x5d8] sm:$0xff]
        %v495 = vld [vmem:[%s251 + $0x5e0] sm:$0xff]
        %v496 = vld [vmem:[%s251 + $0x5e8] sm:$0xff]
        %v497 = vld [vmem:[%s251 + $0x5f0] sm:$0xff]
        %v498 = vld [vmem:[%s251 + $0x5f8] sm:$0xff]
        %v499 = vld [vmem:[%s251 + $0x600] sm:$0xff]
        %v500 = vld [vmem:[%s251 + $0x608] sm:$0xff]
        %v501 = vld [vmem:[%s251 + $0x610] sm:$0xff]
        %v502 = vld [vmem:[%s251 + $0x618] sm:$0xff]
        %v503 = vld [vmem:[%s251 + $0x620] sm:$0xff]
        %v504 = vld [vmem:[%s251 + $0x628] sm:$0xff]
        %v505 = vld [vmem:[%s251 + $0x630] sm:$0xff]
        %v506 = vld [vmem:[%s251 + $0x638] sm:$0xff]
        %v507 = vld [vmem:[%s251 + $0x640] sm:$0xff]
        %v508 = vld [vmem:[%s251 + $0x648] sm:$0xff]
        %v509 = vld [vmem:[%s251 + $0x650] sm:$0xff]
        %v510 = vld [vmem:[%s251 + $0x658] sm:$0xff]
        %v511 = vld [vmem:[%s251 + $0x660] sm:$0xff]
        %v512 = vld [vmem:[%s251 + $0x668] sm:$0xff]
        %v513 = vld [vmem:[%s251 + $0x670] sm:$0xff]
        %v514 = vld [vmem:[%s251 + $0x678] sm:$0xff]
        %v515 = vld [vmem:[%s251 + $0x680] sm:$0xff]
        %v516 = vld [vmem:[%s251 + $0x688] sm:$0xff]
        %v517 = vld [vmem:[%s251 + $0x690] sm:$0xff]
        %v518 = vld [vmem:[%s251 + $0x698] sm:$0xff]
        %v519 = vld [vmem:[%s251 + $0x6a0] sm:$0xff]
        %v520 = vld [vmem:[%s251 + $0x6a8] sm:$0xff]
        %v521 = vld [vmem:[%s251 + $0x6b0] sm:$0xff]
        %v522 = vld [vmem:[%s251 + $0x6b8] sm:$0xff]
        %v523 = vld [vmem:[%s251 + $0x6c0] sm:$0xff]
        %v524 = vld [vmem:[%s251 + $0x6c8] sm:$0xff]
        %v525 = vld [vmem:[%s251 + $0x6d0] sm:$0xff]
        %v526 = vld [vmem:[%s251 + $0x6d8] sm:$0xff]
        %v527 = vld [vmem:[%s251 + $0x6e0] sm:$0xff]
        %v528 = vld [vmem:[%s251 + $0x6e8] sm:$0xff]
        %v529 = vld [vmem:[%s251 + $0x6f0] sm:$0xff]
        %v530 = vld [vmem:[%s251 + $0x6f8] sm:$0xff]
        %v531 = vld [vmem:[%s251 + $0x700] sm:$0xff]
        %v532 = vld [vmem:[%s251 + $0x708] sm:$0xff]
        %v533 = vld [vmem:[%s251 + $0x710] sm:$0xff]
        %v534 = vld [vmem:[%s251 + $0x718] sm:$0xff]
        %v535 = vld [vmem:[%s251 + $0x720] sm:$0xff]
        %v536 = vld [vmem:[%s251 + $0x728] sm:$0xff]
        %v537 = vld [vmem:[%s251 + $0x730] sm:$0xff]
        %v538 = vld [vmem:[%s251 + $0x738] sm:$0xff]
        %v539 = vld [vmem:[%s251 + $0x740] sm:$0xff]
        %v540 = vld [vmem:[%s251 + $0x748] sm:$0xff]
        %v541 = vld [vmem:[%s251 + $0x750] sm:$0xff]
        %v542 = vld [vmem:[%s251 + $0x758] sm:$0xff]
        %v543 = vld [vmem:[%s251 + $0x760] sm:$0xff]
        %v544 = vld [vmem:[%s251 + $0x768] sm:$0xff]
        %v545 = vld [vmem:[%s251 + $0x770] sm:$0xff]
        %v546 = vld [vmem:[%s251 + $0x778] sm:$0xff]
        %v547 = vld [vmem:[%s251 + $0x780] sm:$0xff]
        %v548 = vld [vmem:[%s251 + $0x788] sm:$0xff]
        %v549 = vld [vmem:[%s251 + $0x790] sm:$0xff]
        %v550 = vld [vmem:[%s251 + $0x798] sm:$0xff]
        %v551 = vld [vmem:[%s251 + $0x7a0] sm:$0xff]
        %v552 = vld [vmem:[%s251 + $0x7a8] sm:$0xff]
        %v553 = vld [vmem:[%s251 + $0x7b0] sm:$0xff]
        %v554 = vld [vmem:[%s251 + $0x7b8] sm:$0xff]
        %v555 = vld [vmem:[%s251 + $0x7c0] sm:$0xff]
        %v556 = vld [vmem:[%s251 + $0x7c8] sm:$0xff]
        %v557 = vld [vmem:[%s251 + $0x7d0] sm:$0xff]
        %v558 = vld [vmem:[%s251 + $0x7d8] sm:$0xff]
        %v559 = vld [vmem:[%s251 + $0x7e0] sm:$0xff]
        %v560 = vld [vmem:[%s251 + $0x7e8] sm:$0xff]
        %v561 = vld [vmem:[%s251 + $0x7f0] sm:$0xff]
        %v562 = vld [vmem:[%s251 + $0x7f8] sm:$0xff]
        %v563 = vld [vmem:[%s251 + $0x800] sm:$0xff]
        %v564 = vld [vmem:[%s251 + $0x808] sm:$0xff]
        %v565 = vld [vmem:[%s251 + $0x810] sm:$0xff]
        %v566 = vld [vmem:[%s251 + $0x818] sm:$0xff]
        %v567 = vld [vmem:[%s251 + $0x820] sm:$0xff]
        %v568 = vld [vmem:[%s251 + $0x828] sm:$0xff]
        %v569 = vld [vmem:[%s251 + $0x830] sm:$0xff]
        %v570 = vld [vmem:[%s251 + $0x838] sm:$0xff]
        %v571 = vld [vmem:[%s251 + $0x840] sm:$0xff]
        %v572 = vld [vmem:[%s251 + $0x848] sm:$0xff]
        %v573 = vld [vmem:[%s251 + $0x850] sm:$0xff]
        %v574 = vld [vmem:[%s251 + $0x858] sm:$0xff]
        %v575 = vld [vmem:[%s251 + $0x860] sm:$0xff]
        %v576 = vld [vmem:[%s251 + $0x868] sm:$0xff]
        %v577 = vld [vmem:[%s251 + $0x870] sm:$0xff]
        %v578 = vld [vmem:[%s251 + $0x878] sm:$0xff]
        %v579 = vld [vmem:[%s251 + $0x880] sm:$0xff]
        %v580 = vld [vmem:[%s251 + $0x888] sm:$0xff]
        %v581 = vld [vmem:[%s251 + $0x890] sm:$0xff]
        %v582 = vld [vmem:[%s251 + $0x898] sm:$0xff]
        %v583 = vld [vmem:[%s251 + $0x8a0] sm:$0xff]
        %v584 = vld [vmem:[%s251 + $0x8a8] sm:$0xff]
        %v585 = vld [vmem:[%s251 + $0x8b0] sm:$0xff]
        %v586 = vld [vmem:[%s251 + $0x8b8] sm:$0xff]
        %v587 = vld [vmem:[%s251 + $0x8c0] sm:$0xff]
        %v588 = vld [vmem:[%s251 + $0x8c8] sm:$0xff]
        %v589 = vld [vmem:[%s251 + $0x8d0] sm:$0xff]
        %v590 = vld [vmem:[%s251 + $0x8d8] sm:$0xff]
        %v591 = vld [vmem:[%s251 + $0x8e0] sm:$0xff]
        %v592 = vld [vmem:[%s251 + $0x8e8] sm:$0xff]
        %v593 = vld [vmem:[%s251 + $0x8f0] sm:$0xff]
        %v594 = vld [vmem:[%s251 + $0x8f8] sm:$0xff]
        %v595 = vld [vmem:[%s251 + $0x900] sm:$0xff]
        %v596 = vld [vmem:[%s251 + $0x908] sm:$0xff]
        %v597 = vld [vmem:[%s251 + $0x910] sm:$0xff]
        %v598 = vld [vmem:[%s251 + $0x918] sm:$0xff]
        %v599 = vld [vmem:[%s251 + $0x920] sm:$0xff]
        %v600 = vld [vmem:[%s251 + $0x928] sm:$0xff]
        %v601 = vld [vmem:[%s251 + $0x930] sm:$0xff]
        %v602 = vld [vmem:[%s251 + $0x938] sm:$0xff]
        %v603 = vld [vmem:[%s251 + $0x940] sm:$0xff]
        %v604 = vld [vmem:[%s251 + $0x948] sm:$0xff]
        %v605 = vld [vmem:[%s251 + $0x950] sm:$0xff]
        %v606 = vld [vmem:[%s251 + $0x958] sm:$0xff]
        %v607 = vld [vmem:[%s251 + $0x960] sm:$0xff]
        %v608 = vld [vmem:[%s251 + $0x968] sm:$0xff]
        %v609 = vld [vmem:[%s251 + $0x970] sm:$0xff]
        %v610 = vld [vmem:[%s251 + $0x978] sm:$0xff]
        %v611 = vld [vmem:[%s251 + $0x980] sm:$0xff]
        %v612 = vld [vmem:[%s251 + $0x988] sm:$0xff]
        %v613 = vld [vmem:[%s251 + $0x990] sm:$0xff]
        %v614 = vld [vmem:[%s251 + $0x998] sm:$0xff]
        %v615 = vld [vmem:[%s251 + $0x9a0] sm:$0xff]
        %v616 = vld [vmem:[%s251 + $0x9a8] sm:$0xff]
        %v617 = vld [vmem:[%s251 + $0x9b0] sm:$0xff]
        %v618 = vld [vmem:[%s251 + $0x9b8] sm:$0xff]
        %v619 = vld [vmem:[%s251 + $0x9c0] sm:$0xff]
        %v620 = vld [vmem:[%s251 + $0x9c8] sm:$0xff]
        %v621 = vld [vmem:[%s251 + $0x9d0] sm:$0xff]
        %v622 = vld [vmem:[%s251 + $0x9d8] sm:$0xff]
        %v623 = vld [vmem:[%s251 + $0x9e0] sm:$0xff]
        %v624 = vld [vmem:[%s251 + $0x9e8] sm:$0xff]
        %v625 = vld [vmem:[%s251 + $0x9f0] sm:$0xff]
        %v626 = vld [vmem:[%s251 + $0x9f8] sm:$0xff]
        %v627 = vld [vmem:[%s251 + $0xa00] sm:$0xff]
        %v628 = vld [vmem:[%s251 + $0xa08] sm:$0xff]
        %v629 = vld [vmem:[%s251 + $0xa10] sm:$0xff]
        %v630 = vld [vmem:[%s251 + $0xa18] sm:$0xff]
        %v631 = vld [vmem:[%s251 + $0xa20] sm:$0xff]
        %v632 = vld [vmem:[%s251 + $0xa28] sm:$0xff]
        %v633 = vld [vmem:[%s251 + $0xa30] sm:$0xff]
        %v634 = vld [vmem:[%s251 + $0xa38] sm:$0xff]
        %v635 = vld [vmem:[%s251 + $0xa40] sm:$0xff]
        %v636 = vld [vmem:[%s251 + $0xa48] sm:$0xff]
        %v637 = vld [vmem:[%s251 + $0xa50] sm:$0xff]
        %v638 = vld [vmem:[%s251 + $0xa58] sm:$0xff]
        %v639 = vld [vmem:[%s251 + $0xa60] sm:$0xff]
        %v640 = vld [vmem:[%s251 + $0xa68] sm:$0xff]
        %v641 = vld [vmem:[%s251 + $0xa70] sm:$0xff]
        %v642 = vld [vmem:[%s251 + $0xa78] sm:$0xff]
        %v643 = vld [vmem:[%s251 + $0xa80] sm:$0xff]
        %v644 = vld [vmem:[%s251 + $0xa88] sm:$0xff]
        %v645 = vld [vmem:[%s251 + $0xa90] sm:$0xff]
        %v646 = vld [vmem:[%s251 + $0xa98] sm:$0xff]
        %v647 = vld [vmem:[%s251 + $0xaa0] sm:$0xff]
        %v648 = vld [vmem:[%s251 + $0xaa8] sm:$0xff]
        %v649 = vld [vmem:[%s251 + $0xab0] sm:$0xff]
        %v650 = vld [vmem:[%s251 + $0xab8] sm:$0xff]
        %v651 = vld [vmem:[%s251 + $0xac0] sm:$0xff]
        %v652 = vld [vmem:[%s251 + $0xac8] sm:$0xff]
        %v653 = vld [vmem:[%s251 + $0xad0] sm:$0xff]
        %v654 = vld [vmem:[%s251 + $0xad8] sm:$0xff]
        %v655 = vld [vmem:[%s251 + $0xae0] sm:$0xff]
        %v656 = vld [vmem:[%s251 + $0xae8] sm:$0xff]
        %v657 = vld [vmem:[%s251 + $0xaf0] sm:$0xff]
        %v658 = vld [vmem:[%s251 + $0xaf8] sm:$0xff]
        %v659 = vld [vmem:[%s251 + $0xb00] sm:$0xff]
        %v660 = vld [vmem:[%s251 + $0xb08] sm:$0xff]
        %v661 = vld [vmem:[%s251 + $0xb10] sm:$0xff]
        %v662 = vld [vmem:[%s251 + $0xb18] sm:$0xff]
        %v663 = vld [vmem:[%s251 + $0xb20] sm:$0xff]
        %v664 = vld [vmem:[%s251 + $0xb28] sm:$0xff]
        %v665 = vld [vmem:[%s251 + $0xb30] sm:$0xff]
        %v666 = vld [vmem:[%s251 + $0xb38] sm:$0xff]
        %v667 = vld [vmem:[%s251 + $0xb40] sm:$0xff]
        %v668 = vld [vmem:[%s251 + $0xb48] sm:$0xff]
        %v669 = vld [vmem:[%s251 + $0xb50] sm:$0xff]
        %v670 = vld [vmem:[%s251 + $0xb58] sm:$0xff]
        %v671 = vld [vmem:[%s251 + $0xb60] sm:$0xff]
        %v672 = vld [vmem:[%s251 + $0xb68] sm:$0xff]
        %v673 = vld [vmem:[%s251 + $0xb70] sm:$0xff]
        %v674 = vld [vmem:[%s251 + $0xb78] sm:$0xff]
        %v675 = vld [vmem:[%s251 + $0xb80] sm:$0xff]
        %v676 = vld [vmem:[%s251 + $0xb88] sm:$0xff]
        %v677 = vld [vmem:[%s251 + $0xb90] sm:$0xff]
        %v678 = vld [vmem:[%s251 + $0xb98] sm:$0xff]
        %v679 = vld [vmem:[%s251 + $0xba0] sm:$0xff]
        %v680 = vld [vmem:[%s251 + $0xba8] sm:$0xff]
        %v681 = vld [vmem:[%s251 + $0xbb0] sm:$0xff]
        %v682 = vld [vmem:[%s251 + $0xbb8] sm:$0xff]
        %v683 = vld [vmem:[%s251 + $0xbc0] sm:$0xff]
        %v684 = vld [vmem:[%s251 + $0xbc8] sm:$0xff]
        %v685 = vld [vmem:[%s251 + $0xbd0] sm:$0xff]
        %v686 = vld [vmem:[%s251 + $0xbd8] sm:$0xff]
        %v687 = vld [vmem:[%s251 + $0xbe0] sm:$0xff]
        %v688 = vld [vmem:[%s251 + $0xbe8] sm:$0xff]
        %v689 = vld [vmem:[%s251 + $0xbf0] sm:$0xff]
        %v690 = vld [vmem:[%s251 + $0xbf8] sm:$0xff]
        %v691 = vld [vmem:[%s251 + $0xc00] sm:$0xff]
        %v692 = vld [vmem:[%s251 + $0xc08] sm:$0xff]
        %v693 = vld [vmem:[%s251 + $0xc10] sm:$0xff]
        %v694 = vld [vmem:[%s251 + $0xc18] sm:$0xff]
        %v695 = vld [vmem:[%s251 + $0xc20] sm:$0xff]
        %v696 = vld [vmem:[%s251 + $0xc28] sm:$0xff]
        %v697 = vld [vmem:[%s251 + $0xc30] sm:$0xff]
        %v698 = vld [vmem:[%s251 + $0xc38] sm:$0xff]
        %v699 = vld [vmem:[%s251 + $0xc40] sm:$0xff]
        %v700 = vld [vmem:[%s251 + $0xc48] sm:$0xff]
        %v701 = vld [vmem:[%s251 + $0xc50] sm:$0xff]
        %v702 = vld [vmem:[%s251 + $0xc58] sm:$0xff]
        %v703 = vld [vmem:[%s251 + $0xc60] sm:$0xff]
        %v704 = vld [vmem:[%s251 + $0xc68] sm:$0xff]
        %v705 = vld [vmem:[%s251 + $0xc70] sm:$0xff]
        %v706 = vld [vmem:[%s251 + $0xc78] sm:$0xff]
        %v707 = vld [vmem:[%s251 + $0xc80] sm:$0xff]
        %v708 = vld [vmem:[%s251 + $0xc88] sm:$0xff]
        %v709 = vld [vmem:[%s251 + $0xc90] sm:$0xff]
        %v710 = vld [vmem:[%s251 + $0xc98] sm:$0xff]
        %v711 = vld [vmem:[%s251 + $0xca0] sm:$0xff]
        %v712 = vld [vmem:[%s251 + $0xca8] sm:$0xff]
        %v713 = vld [vmem:[%s251 + $0xcb0] sm:$0xff]
        %v714 = vld [vmem:[%s251 + $0xcb8] sm:$0xff]
        %v715 = vld [vmem:[%s251 + $0xcc0] sm:$0xff]
        %v716 = vld [vmem:[%s251 + $0xcc8] sm:$0xff]
        %v717 = vld [vmem:[%s251 + $0xcd0] sm:$0xff]
        %v718 = vld [vmem:[%s251 + $0xcd8] sm:$0xff]
        %v719 = vld [vmem:[%s251 + $0xce0] sm:$0xff]
        %v720 = vld [vmem:[%s251 + $0xce8] sm:$0xff]
        %v721 = vld [vmem:[%s251 + $0xcf0] sm:$0xff]
        %v722 = vld [vmem:[%s251 + $0xcf8] sm:$0xff]
        %v723 = vld [vmem:[%s251 + $0xd00] sm:$0xff]
        %v724 = vld [vmem:[%s251 + $0xd08] sm:$0xff]
        %v725 = vld [vmem:[%s251 + $0xd10] sm:$0xff]
        %v726 = vld [vmem:[%s251 + $0xd18] sm:$0xff]
        %v727 = vld [vmem:[%s251 + $0xd20] sm:$0xff]
        %v728 = vld [vmem:[%s251 + $0xd28] sm:$0xff]
        %v729 = vld [vmem:[%s251 + $0xd30] sm:$0xff]
        %v730 = vld [vmem:[%s251 + $0xd38] sm:$0xff]
        %v731 = vld [vmem:[%s251 + $0xd40] sm:$0xff]
        %v732 = vld [vmem:[%s251 + $0xd48] sm:$0xff]
        %v733 = vld [vmem:[%s251 + $0xd50] sm:$0xff]
        %v734 = vld [vmem:[%s251 + $0xd58] sm:$0xff]
        %v735 = vld [vmem:[%s251 + $0xd60] sm:$0xff]
        %v736 = vld [vmem:[%s251 + $0xd68] sm:$0xff]
        %v737 = vld [vmem:[%s251 + $0xd70] sm:$0xff]
        %v738 = vld [vmem:[%s251 + $0xd78] sm:$0xff]
        %v739 = vld [vmem:[%s251 + $0xd80] sm:$0xff]
        %v740 = vld [vmem:[%s251 + $0xd88] sm:$0xff]
        %v741 = vld [vmem:[%s251 + $0xd90] sm:$0xff]
        %v742 = vld [vmem:[%s251 + $0xd98] sm:$0xff]
        %v743 = vld [vmem:[%s251 + $0xda0] sm:$0xff]
        %v744 = vld [vmem:[%s251 + $0xda8] sm:$0xff]
        %v745 = vld [vmem:[%s251 + $0xdb0] sm:$0xff]
        %v746 = vld [vmem:[%s251 + $0xdb8] sm:$0xff]
        %v747 = vld [vmem:[%s251 + $0xdc0] sm:$0xff]
        %v748 = vld [vmem:[%s251 + $0xdc8] sm:$0xff]
        %v749 = vld [vmem:[%s251 + $0xdd0] sm:$0xff]
        %v750 = vld [vmem:[%s251 + $0xdd8] sm:$0xff]
        %v751 = vld [vmem:[%s251 + $0xde0] sm:$0xff]
        %v752 = vld [vmem:[%s251 + $0xde8] sm:$0xff]
        %v753 = vld [vmem:[%s251 + $0xdf0] sm:$0xff]
        %v754 = vld [vmem:[%s251 + $0xdf8] sm:$0xff]
        %v755 = vld [vmem:[%s251 + $0xe00] sm:$0xff]
        %v756 = vld [vmem:[%s251 + $0xe08] sm:$0xff]
        %v757 = vld [vmem:[%s251 + $0xe10] sm:$0xff]
        %v758 = vld [vmem:[%s251 + $0xe18] sm:$0xff]
        %v759 = vld [vmem:[%s251 + $0xe20] sm:$0xff]
        %v760 = vld [vmem:[%s251 + $0xe28] sm:$0xff]
        %v761 = vld [vmem:[%s251 + $0xe30] sm:$0xff]
        %v762 = vld [vmem:[%s251 + $0xe38] sm:$0xff]
        %v763 = vld [vmem:[%s251 + $0xe40] sm:$0xff]
        %v764 = vld [vmem:[%s251 + $0xe48] sm:$0xff]
        %v765 = vld [vmem:[%s251 + $0xe50] sm:$0xff]
        %v766 = vld [vmem:[%s251 + $0xe58] sm:$0xff]
        %v767 = vld [vmem:[%s251 + $0xe60] sm:$0xff]
        %v768 = vld [vmem:[%s251 + $0xe68] sm:$0xff]
        %v769 = vld [vmem:[%s251 + $0xe70] sm:$0xff]
        %v770 = vld [vmem:[%s251 + $0xe78] sm:$0xff]
        %v771 = vld [vmem:[%s251 + $0xe80] sm:$0xff]
        %v772 = vld [vmem:[%s251 + $0xe88] sm:$0xff]
        %v773 = vld [vmem:[%s251 + $0xe90] sm:$0xff]
        %v774 = vld [vmem:[%s251 + $0xe98] sm:$0xff]
        %v775 = vld [vmem:[%s251 + $0xea0] sm:$0xff]
        %v776 = vld [vmem:[%s251 + $0xea8] sm:$0xff]
        %v777 = vld [vmem:[%s251 + $0xeb0] sm:$0xff]
        %v778 = vld [vmem:[%s251 + $0xeb8] sm:$0xff]
        %v779 = vld [vmem:[%s251 + $0xec0] sm:$0xff]
        %v780 = vld [vmem:[%s251 + $0xec8] sm:$0xff]
        %v781 = vld [vmem:[%s251 + $0xed0] sm:$0xff]
        %v782 = vld [vmem:[%s251 + $0xed8] sm:$0xff]
        %v783 = vld [vmem:[%s251 + $0xee0] sm:$0xff]
        %v784 = vld [vmem:[%s251 + $0xee8] sm:$0xff]
        %v785 = vld [vmem:[%s251 + $0xef0] sm:$0xff]
        %v786 = vld [vmem:[%s251 + $0xef8] sm:$0xff]
        %v787 = vld [vmem:[%s251 + $0xf00] sm:$0xff]
        %v788 = vld [vmem:[%s251 + $0xf08] sm:$0xff]
        %v789 = vld [vmem:[%s251 + $0xf10] sm:$0xff]
        %v790 = vld [vmem:[%s251 + $0xf18] sm:$0xff]
        %v791 = vld [vmem:[%s251 + $0xf20] sm:$0xff]
        %v792 = vld [vmem:[%s251 + $0xf28] sm:$0xff]
        %v793 = vld [vmem:[%s251 + $0xf30] sm:$0xff]
        %v794 = vld [vmem:[%s251 + $0xf38] sm:$0xff]
        %v795 = vld [vmem:[%s251 + $0xf40] sm:$0xff]
        %v796 = vld [vmem:[%s251 + $0xf48] sm:$0xff]
        %v797 = vld [vmem:[%s251 + $0xf50] sm:$0xff]
        %v798 = vld [vmem:[%s251 + $0xf58] sm:$0xff]
        %v799 = vld [vmem:[%s251 + $0xf60] sm:$0xff]
        %v800 = vld [vmem:[%s251 + $0xf68] sm:$0xff]
        %v801 = vld [vmem:[%s251 + $0xf70] sm:$0xff]
        %v802 = vld [vmem:[%s251 + $0xf78] sm:$0xff]
        %v803 = vld [vmem:[%s251 + $0xf80] sm:$0xff]
        %v804 = vld [vmem:[%s251 + $0xf88] sm:$0xff]
        %v805 = vld [vmem:[%s251 + $0xf90] sm:$0xff]
        %v806 = vld [vmem:[%s251 + $0xf98] sm:$0xff]
        %v807 = vld [vmem:[%s251 + $0xfa0] sm:$0xff]
        %v808 = vld [vmem:[%s251 + $0xfa8] sm:$0xff]
        %v809 = vld [vmem:[%s251 + $0xfb0] sm:$0xff]
        %v810 = vld [vmem:[%s251 + $0xfb8] sm:$0xff]
        %v811 = vld [vmem:[%s251 + $0xfc0] sm:$0xff]
        %v812 = vld [vmem:[%s251 + $0xfc8] sm:$0xff]
        %v813 = vld [vmem:[%s251 + $0xfd0] sm:$0xff]
        %v814 = vld [vmem:[%s251 + $0xfd8] sm:$0xff]
        %v815 = vld [vmem:[%s251 + $0xfe0] sm:$0xff]
        %v816 = vld [vmem:[%s251 + $0xfe8] sm:$0xff]
        %v817 = vld [vmem:[%s251 + $0xff0] sm:$0xff]
        %v818 = vld [vmem:[%s251 + $0xff8] sm:$0xff]
        %v819 = vunpack.c.l.s8.bf16 %v307
        %v820 = vunpack.c.l.s8.bf16 %v308
        %v821 = vunpack.c.l.s8.bf16 %v309
        %v822 = vunpack.c.l.s8.bf16 %v310
        %v823 = vunpack.c.l.s8.bf16 %v311
        %v824 = vunpack.c.l.s8.bf16 %v312
        %v825 = vunpack.c.l.s8.bf16 %v313
        %v826 = vunpack.c.l.s8.bf16 %v314
        %v827 = vunpack.c.l.s8.bf16 %v315
        %v828 = vunpack.c.l.s8.bf16 %v316
        %v829 = vunpack.c.l.s8.bf16 %v317
        %v830 = vunpack.c.l.s8.bf16 %v318
        %v831 = vunpack.c.l.s8.bf16 %v319
        %v832 = vunpack.c.l.s8.bf16 %v320
        %v833 = vunpack.c.l.s8.bf16 %v321
        %v834 = vunpack.c.l.s8.bf16 %v322
        %v835 = vunpack.c.l.s8.bf16 %v323
        %v836 = vunpack.c.l.s8.bf16 %v324
        %v837 = vunpack.c.l.s8.bf16 %v325
        %v838 = vunpack.c.l.s8.bf16 %v326
        %v839 = vunpack.c.l.s8.bf16 %v327
        %v840 = vunpack.c.l.s8.bf16 %v328
        %v841 = vunpack.c.l.s8.bf16 %v329
        %v842 = vunpack.c.l.s8.bf16 %v330
        %v843 = vunpack.c.l.s8.bf16 %v331
        %v844 = vunpack.c.l.s8.bf16 %v332
        %v845 = vunpack.c.l.s8.bf16 %v333
        %v846 = vunpack.c.l.s8.bf16 %v334
        %v847 = vunpack.c.l.s8.bf16 %v335
        %v848 = vunpack.c.l.s8.bf16 %v336
        %v849 = vunpack.c.l.s8.bf16 %v337
        %v850 = vunpack.c.l.s8.bf16 %v338
        %v851 = vunpack.c.h.s8.bf16 %v307
        %v852 = vunpack.c.h.s8.bf16 %v308
        %v853 = vunpack.c.h.s8.bf16 %v309
        %v854 = vunpack.c.h.s8.bf16 %v310
        %v855 = vunpack.c.h.s8.bf16 %v311
        %v856 = vunpack.c.h.s8.bf16 %v312
        %v857 = vunpack.c.h.s8.bf16 %v313
        %v858 = vunpack.c.h.s8.bf16 %v314
        %v859 = vunpack.c.h.s8.bf16 %v315
        %v860 = vunpack.c.h.s8.bf16 %v316
        %v861 = vunpack.c.h.s8.bf16 %v317
        %v862 = vunpack.c.h.s8.bf16 %v318
        %v863 = vunpack.c.h.s8.bf16 %v319
        %v864 = vunpack.c.h.s8.bf16 %v320
        %v865 = vunpack.c.h.s8.bf16 %v321
        %v866 = vunpack.c.h.s8.bf16 %v322
        %v867 = vunpack.c.h.s8.bf16 %v323
        %v868 = vunpack.c.h.s8.bf16 %v324
        %v869 = vunpack.c.h.s8.bf16 %v325
        %v870 = vunpack.c.h.s8.bf16 %v326
        %v871 = vunpack.c.h.s8.bf16 %v327
        %v872 = vunpack.c.h.s8.bf16 %v328
        %v873 = vunpack.c.h.s8.bf16 %v329
        %v874 = vunpack.c.h.s8.bf16 %v330
        %v875 = vunpack.c.h.s8.bf16 %v331
        %v876 = vunpack.c.h.s8.bf16 %v332
        %v877 = vunpack.c.h.s8.bf16 %v333
        %v878 = vunpack.c.h.s8.bf16 %v334
        %v879 = vunpack.c.h.s8.bf16 %v335
        %v880 = vunpack.c.h.s8.bf16 %v336
        %v881 = vunpack.c.h.s8.bf16 %v337
        %v882 = vunpack.c.h.s8.bf16 %v338
        %v883 = vunpack.c.l.s8.bf16 %v339
        %v884 = vunpack.c.l.s8.bf16 %v340
        %v885 = vunpack.c.l.s8.bf16 %v341
        %v886 = vunpack.c.l.s8.bf16 %v342
        %v887 = vunpack.c.l.s8.bf16 %v343
        %v888 = vunpack.c.l.s8.bf16 %v344
        %v889 = vunpack.c.l.s8.bf16 %v345
        %v890 = vunpack.c.l.s8.bf16 %v346
        %v891 = vunpack.c.l.s8.bf16 %v347
        %v892 = vunpack.c.l.s8.bf16 %v348
        %v893 = vunpack.c.l.s8.bf16 %v349
        %v894 = vunpack.c.l.s8.bf16 %v350
        %v895 = vunpack.c.l.s8.bf16 %v351
        %v896 = vunpack.c.l.s8.bf16 %v352
        %v897 = vunpack.c.l.s8.bf16 %v353
        %v898 = vunpack.c.l.s8.bf16 %v354
        %v899 = vunpack.c.l.s8.bf16 %v355
        %v900 = vunpack.c.l.s8.bf16 %v356
        %v901 = vunpack.c.l.s8.bf16 %v357
        %v902 = vunpack.c.l.s8.bf16 %v358
        %v903 = vunpack.c.l.s8.bf16 %v359
        %v904 = vunpack.c.l.s8.bf16 %v360
        %v905 = vunpack.c.l.s8.bf16 %v361
        %v906 = vunpack.c.l.s8.bf16 %v362
        %v907 = vunpack.c.l.s8.bf16 %v363
        %v908 = vunpack.c.l.s8.bf16 %v364
        %v909 = vunpack.c.l.s8.bf16 %v365
        %v910 = vunpack.c.l.s8.bf16 %v366
        %v911 = vunpack.c.l.s8.bf16 %v367
        %v912 = vunpack.c.l.s8.bf16 %v368
        %v913 = vunpack.c.l.s8.bf16 %v369
        %v914 = vunpack.c.l.s8.bf16 %v370
        %v915 = vunpack.c.h.s8.bf16 %v339
        %v916 = vunpack.c.h.s8.bf16 %v340
        %v917 = vunpack.c.h.s8.bf16 %v341
        %v918 = vunpack.c.h.s8.bf16 %v342
        %v919 = vunpack.c.h.s8.bf16 %v343
        %v920 = vunpack.c.h.s8.bf16 %v344
        %v921 = vunpack.c.h.s8.bf16 %v345
        %v922 = vunpack.c.h.s8.bf16 %v346
        %v923 = vunpack.c.h.s8.bf16 %v347
        %v924 = vunpack.c.h.s8.bf16 %v348
        %v925 = vunpack.c.h.s8.bf16 %v349
        %v926 = vunpack.c.h.s8.bf16 %v350
        %v927 = vunpack.c.h.s8.bf16 %v351
        %v928 = vunpack.c.h.s8.bf16 %v352
        %v929 = vunpack.c.h.s8.bf16 %v353
        %v930 = vunpack.c.h.s8.bf16 %v354
        %v931 = vunpack.c.h.s8.bf16 %v355
        %v932 = vunpack.c.h.s8.bf16 %v356
        %v933 = vunpack.c.h.s8.bf16 %v357
        %v934 = vunpack.c.h.s8.bf16 %v358
        %v935 = vunpack.c.h.s8.bf16 %v359
        %v936 = vunpack.c.h.s8.bf16 %v360
        %v937 = vunpack.c.h.s8.bf16 %v361
        %v938 = vunpack.c.h.s8.bf16 %v362
        %v939 = vunpack.c.h.s8.bf16 %v363
        %v940 = vunpack.c.h.s8.bf16 %v364
        %v941 = vunpack.c.h.s8.bf16 %v365
        %v942 = vunpack.c.h.s8.bf16 %v366
        %v943 = vunpack.c.h.s8.bf16 %v367
        %v944 = vunpack.c.h.s8.bf16 %v368
        %v945 = vunpack.c.h.s8.bf16 %v369
        %v946 = vunpack.c.h.s8.bf16 %v370
        %v947 = vunpack.c.l.s8.bf16 %v371
        %v948 = vunpack.c.l.s8.bf16 %v372
        %v949 = vunpack.c.l.s8.bf16 %v373
        %v950 = vunpack.c.l.s8.bf16 %v374
        %v951 = vunpack.c.l.s8.bf16 %v375
        %v952 = vunpack.c.l.s8.bf16 %v376
        %v953 = vunpack.c.l.s8.bf16 %v377
        %v954 = vunpack.c.l.s8.bf16 %v378
        %v955 = vunpack.c.l.s8.bf16 %v379
        %v956 = vunpack.c.l.s8.bf16 %v380
        %v957 = vunpack.c.l.s8.bf16 %v381
        %v958 = vunpack.c.l.s8.bf16 %v382
        %v959 = vunpack.c.l.s8.bf16 %v383
        %v960 = vunpack.c.l.s8.bf16 %v384
        %v961 = vunpack.c.l.s8.bf16 %v385
        %v962 = vunpack.c.l.s8.bf16 %v386
        %v963 = vunpack.c.l.s8.bf16 %v387
        %v964 = vunpack.c.l.s8.bf16 %v388
        %v965 = vunpack.c.l.s8.bf16 %v389
        %v966 = vunpack.c.l.s8.bf16 %v390
        %v967 = vunpack.c.l.s8.bf16 %v391
        %v968 = vunpack.c.l.s8.bf16 %v392
        %v969 = vunpack.c.l.s8.bf16 %v393
        %v970 = vunpack.c.l.s8.bf16 %v394
        %v971 = vunpack.c.l.s8.bf16 %v395
        %v972 = vunpack.c.l.s8.bf16 %v396
        %v973 = vunpack.c.l.s8.bf16 %v397
        %v974 = vunpack.c.l.s8.bf16 %v398
        %v975 = vunpack.c.l.s8.bf16 %v399
        %v976 = vunpack.c.l.s8.bf16 %v400
        %v977 = vunpack.c.l.s8.bf16 %v401
        %v978 = vunpack.c.l.s8.bf16 %v402
        %v979 = vunpack.c.h.s8.bf16 %v371
        %v980 = vunpack.c.h.s8.bf16 %v372
        %v981 = vunpack.c.h.s8.bf16 %v373
        %v982 = vunpack.c.h.s8.bf16 %v374
        %v983 = vunpack.c.h.s8.bf16 %v375
        %v984 = vunpack.c.h.s8.bf16 %v376
        %v985 = vunpack.c.h.s8.bf16 %v377
        %v986 = vunpack.c.h.s8.bf16 %v378
        %v987 = vunpack.c.h.s8.bf16 %v379
        %v988 = vunpack.c.h.s8.bf16 %v380
        %v989 = vunpack.c.h.s8.bf16 %v381
        %v990 = vunpack.c.h.s8.bf16 %v382
        %v991 = vunpack.c.h.s8.bf16 %v383
        %v992 = vunpack.c.h.s8.bf16 %v384
        %v993 = vunpack.c.h.s8.bf16 %v385
        %v994 = vunpack.c.h.s8.bf16 %v386
        %v995 = vunpack.c.h.s8.bf16 %v387
        %v996 = vunpack.c.h.s8.bf16 %v388
        %v997 = vunpack.c.h.s8.bf16 %v389
        %v998 = vunpack.c.h.s8.bf16 %v390
        %v999 = vunpack.c.h.s8.bf16 %v391
        %v1000 = vunpack.c.h.s8.bf16 %v392
        %v1001 = vunpack.c.h.s8.bf16 %v393
        %v1002 = vunpack.c.h.s8.bf16 %v394
        %v1003 = vunpack.c.h.s8.bf16 %v395
        %v1004 = vunpack.c.h.s8.bf16 %v396
        %v1005 = vunpack.c.h.s8.bf16 %v397
        %v1006 = vunpack.c.h.s8.bf16 %v398
        %v1007 = vunpack.c.h.s8.bf16 %v399
        %v1008 = vunpack.c.h.s8.bf16 %v400
        %v1009 = vunpack.c.h.s8.bf16 %v401
        %v1010 = vunpack.c.h.s8.bf16 %v402
        %v1011 = vunpack.c.l.s8.bf16 %v403
        %v1012 = vunpack.c.l.s8.bf16 %v404
        %v1013 = vunpack.c.l.s8.bf16 %v405
        %v1014 = vunpack.c.l.s8.bf16 %v406
        %v1015 = vunpack.c.l.s8.bf16 %v407
        %v1016 = vunpack.c.l.s8.bf16 %v408
        %v1017 = vunpack.c.l.s8.bf16 %v409
        %v1018 = vunpack.c.l.s8.bf16 %v410
        %v1019 = vunpack.c.l.s8.bf16 %v411
        %v1020 = vunpack.c.l.s8.bf16 %v412
        %v1021 = vunpack.c.l.s8.bf16 %v413
        %v1022 = vunpack.c.l.s8.bf16 %v414
        %v1023 = vunpack.c.l.s8.bf16 %v415
        %v1024 = vunpack.c.l.s8.bf16 %v416
        %v1025 = vunpack.c.l.s8.bf16 %v417
        %v1026 = vunpack.c.l.s8.bf16 %v418
        %v1027 = vunpack.c.l.s8.bf16 %v419
        %v1028 = vunpack.c.l.s8.bf16 %v420
        %v1029 = vunpack.c.l.s8.bf16 %v421
        %v1030 = vunpack.c.l.s8.bf16 %v422
        %v1031 = vunpack.c.l.s8.bf16 %v423
        %v1032 = vunpack.c.l.s8.bf16 %v424
        %v1033 = vunpack.c.l.s8.bf16 %v425
        %v1034 = vunpack.c.l.s8.bf16 %v426
        %v1035 = vunpack.c.l.s8.bf16 %v427
        %v1036 = vunpack.c.l.s8.bf16 %v428
        %v1037 = vunpack.c.l.s8.bf16 %v429
        %v1038 = vunpack.c.l.s8.bf16 %v430
        %v1039 = vunpack.c.l.s8.bf16 %v431
        %v1040 = vunpack.c.l.s8.bf16 %v432
        %v1041 = vunpack.c.l.s8.bf16 %v433
        %v1042 = vunpack.c.l.s8.bf16 %v434
        %v1043 = vunpack.c.h.s8.bf16 %v403
        %v1044 = vunpack.c.h.s8.bf16 %v404
        %v1045 = vunpack.c.h.s8.bf16 %v405
        %v1046 = vunpack.c.h.s8.bf16 %v406
        %v1047 = vunpack.c.h.s8.bf16 %v407
        %v1048 = vunpack.c.h.s8.bf16 %v408
        %v1049 = vunpack.c.h.s8.bf16 %v409
        %v1050 = vunpack.c.h.s8.bf16 %v410
        %v1051 = vunpack.c.h.s8.bf16 %v411
        %v1052 = vunpack.c.h.s8.bf16 %v412
        %v1053 = vunpack.c.h.s8.bf16 %v413
        %v1054 = vunpack.c.h.s8.bf16 %v414
        %v1055 = vunpack.c.h.s8.bf16 %v415
        %v1056 = vunpack.c.h.s8.bf16 %v416
        %v1057 = vunpack.c.h.s8.bf16 %v417
        %v1058 = vunpack.c.h.s8.bf16 %v418
        %v1059 = vunpack.c.h.s8.bf16 %v419
        %v1060 = vunpack.c.h.s8.bf16 %v420
        %v1061 = vunpack.c.h.s8.bf16 %v421
        %v1062 = vunpack.c.h.s8.bf16 %v422
        %v1063 = vunpack.c.h.s8.bf16 %v423
        %v1064 = vunpack.c.h.s8.bf16 %v424
        %v1065 = vunpack.c.h.s8.bf16 %v425
        %v1066 = vunpack.c.h.s8.bf16 %v426
        %v1067 = vunpack.c.h.s8.bf16 %v427
        %v1068 = vunpack.c.h.s8.bf16 %v428
        %v1069 = vunpack.c.h.s8.bf16 %v429
        %v1070 = vunpack.c.h.s8.bf16 %v430
        %v1071 = vunpack.c.h.s8.bf16 %v431
        %v1072 = vunpack.c.h.s8.bf16 %v432
        %v1073 = vunpack.c.h.s8.bf16 %v433
        %v1074 = vunpack.c.h.s8.bf16 %v434
        %v1075 = vunpack.c.l.s8.bf16 %v435
        %v1076 = vunpack.c.l.s8.bf16 %v436
        %v1077 = vunpack.c.l.s8.bf16 %v437
        %v1078 = vunpack.c.l.s8.bf16 %v438
        %v1079 = vunpack.c.l.s8.bf16 %v439
        %v1080 = vunpack.c.l.s8.bf16 %v440
        %v1081 = vunpack.c.l.s8.bf16 %v441
        %v1082 = vunpack.c.l.s8.bf16 %v442
        %v1083 = vunpack.c.l.s8.bf16 %v443
        %v1084 = vunpack.c.l.s8.bf16 %v444
        %v1085 = vunpack.c.l.s8.bf16 %v445
        %v1086 = vunpack.c.l.s8.bf16 %v446
        %v1087 = vunpack.c.l.s8.bf16 %v447
        %v1088 = vunpack.c.l.s8.bf16 %v448
        %v1089 = vunpack.c.l.s8.bf16 %v449
        %v1090 = vunpack.c.l.s8.bf16 %v450
        %v1091 = vunpack.c.l.s8.bf16 %v451
        %v1092 = vunpack.c.l.s8.bf16 %v452
        %v1093 = vunpack.c.l.s8.bf16 %v453
        %v1094 = vunpack.c.l.s8.bf16 %v454
        %v1095 = vunpack.c.l.s8.bf16 %v455
        %v1096 = vunpack.c.l.s8.bf16 %v456
        %v1097 = vunpack.c.l.s8.bf16 %v457
        %v1098 = vunpack.c.l.s8.bf16 %v458
        %v1099 = vunpack.c.l.s8.bf16 %v459
        %v1100 = vunpack.c.l.s8.bf16 %v460
        %v1101 = vunpack.c.l.s8.bf16 %v461
        %v1102 = vunpack.c.l.s8.bf16 %v462
        %v1103 = vunpack.c.l.s8.bf16 %v463
        %v1104 = vunpack.c.l.s8.bf16 %v464
        %v1105 = vunpack.c.l.s8.bf16 %v465
        %v1106 = vunpack.c.l.s8.bf16 %v466
        %v1107 = vunpack.c.h.s8.bf16 %v435
        %v1108 = vunpack.c.h.s8.bf16 %v436
        %v1109 = vunpack.c.h.s8.bf16 %v437
        %v1110 = vunpack.c.h.s8.bf16 %v438
        %v1111 = vunpack.c.h.s8.bf16 %v439
        %v1112 = vunpack.c.h.s8.bf16 %v440
        %v1113 = vunpack.c.h.s8.bf16 %v441
        %v1114 = vunpack.c.h.s8.bf16 %v442
        %v1115 = vunpack.c.h.s8.bf16 %v443
        %v1116 = vunpack.c.h.s8.bf16 %v444
        %v1117 = vunpack.c.h.s8.bf16 %v445
        %v1118 = vunpack.c.h.s8.bf16 %v446
        %v1119 = vunpack.c.h.s8.bf16 %v447
        %v1120 = vunpack.c.h.s8.bf16 %v448
        %v1121 = vunpack.c.h.s8.bf16 %v449
        %v1122 = vunpack.c.h.s8.bf16 %v450
        %v1123 = vunpack.c.h.s8.bf16 %v451
        %v1124 = vunpack.c.h.s8.bf16 %v452
        %v1125 = vunpack.c.h.s8.bf16 %v453
        %v1126 = vunpack.c.h.s8.bf16 %v454
        %v1127 = vunpack.c.h.s8.bf16 %v455
        %v1128 = vunpack.c.h.s8.bf16 %v456
        %v1129 = vunpack.c.h.s8.bf16 %v457
        %v1130 = vunpack.c.h.s8.bf16 %v458
        %v1131 = vunpack.c.h.s8.bf16 %v459
        %v1132 = vunpack.c.h.s8.bf16 %v460
        %v1133 = vunpack.c.h.s8.bf16 %v461
        %v1134 = vunpack.c.h.s8.bf16 %v462
        %v1135 = vunpack.c.h.s8.bf16 %v463
        %v1136 = vunpack.c.h.s8.bf16 %v464
        %v1137 = vunpack.c.h.s8.bf16 %v465
        %v1138 = vunpack.c.h.s8.bf16 %v466
        %v1139 = vunpack.c.l.s8.bf16 %v467
        %v1140 = vunpack.c.l.s8.bf16 %v468
        %v1141 = vunpack.c.l.s8.bf16 %v469
        %v1142 = vunpack.c.l.s8.bf16 %v470
        %v1143 = vunpack.c.l.s8.bf16 %v471
        %v1144 = vunpack.c.l.s8.bf16 %v472
        %v1145 = vunpack.c.l.s8.bf16 %v473
        %v1146 = vunpack.c.l.s8.bf16 %v474
        %v1147 = vunpack.c.l.s8.bf16 %v475
        %v1148 = vunpack.c.l.s8.bf16 %v476
        %v1149 = vunpack.c.l.s8.bf16 %v477
        %v1150 = vunpack.c.l.s8.bf16 %v478
        %v1151 = vunpack.c.l.s8.bf16 %v479
        %v1152 = vunpack.c.l.s8.bf16 %v480
        %v1153 = vunpack.c.l.s8.bf16 %v481
        %v1154 = vunpack.c.l.s8.bf16 %v482
        %v1155 = vunpack.c.l.s8.bf16 %v483
        %v1156 = vunpack.c.l.s8.bf16 %v484
        %v1157 = vunpack.c.l.s8.bf16 %v485
        %v1158 = vunpack.c.l.s8.bf16 %v486
        %v1159 = vunpack.c.l.s8.bf16 %v487
        %v1160 = vunpack.c.l.s8.bf16 %v488
        %v1161 = vunpack.c.l.s8.bf16 %v489
        %v1162 = vunpack.c.l.s8.bf16 %v490
        %v1163 = vunpack.c.l.s8.bf16 %v491
        %v1164 = vunpack.c.l.s8.bf16 %v492
        %v1165 = vunpack.c.l.s8.bf16 %v493
        %v1166 = vunpack.c.l.s8.bf16 %v494
        %v1167 = vunpack.c.l.s8.bf16 %v495
        %v1168 = vunpack.c.l.s8.bf16 %v496
        %v1169 = vunpack.c.l.s8.bf16 %v497
        %v1170 = vunpack.c.l.s8.bf16 %v498
        %v1171 = vunpack.c.h.s8.bf16 %v467
        %v1172 = vunpack.c.h.s8.bf16 %v468
        %v1173 = vunpack.c.h.s8.bf16 %v469
        %v1174 = vunpack.c.h.s8.bf16 %v470
        %v1175 = vunpack.c.h.s8.bf16 %v471
        %v1176 = vunpack.c.h.s8.bf16 %v472
        %v1177 = vunpack.c.h.s8.bf16 %v473
        %v1178 = vunpack.c.h.s8.bf16 %v474
        %v1179 = vunpack.c.h.s8.bf16 %v475
        %v1180 = vunpack.c.h.s8.bf16 %v476
        %v1181 = vunpack.c.h.s8.bf16 %v477
        %v1182 = vunpack.c.h.s8.bf16 %v478
        %v1183 = vunpack.c.h.s8.bf16 %v479
        %v1184 = vunpack.c.h.s8.bf16 %v480
        %v1185 = vunpack.c.h.s8.bf16 %v481
        %v1186 = vunpack.c.h.s8.bf16 %v482
        %v1187 = vunpack.c.h.s8.bf16 %v483
        %v1188 = vunpack.c.h.s8.bf16 %v484
        %v1189 = vunpack.c.h.s8.bf16 %v485
        %v1190 = vunpack.c.h.s8.bf16 %v486
        %v1191 = vunpack.c.h.s8.bf16 %v487
        %v1192 = vunpack.c.h.s8.bf16 %v488
        %v1193 = vunpack.c.h.s8.bf16 %v489
        %v1194 = vunpack.c.h.s8.bf16 %v490
        %v1195 = vunpack.c.h.s8.bf16 %v491
        %v1196 = vunpack.c.h.s8.bf16 %v492
        %v1197 = vunpack.c.h.s8.bf16 %v493
        %v1198 = vunpack.c.h.s8.bf16 %v494
        %v1199 = vunpack.c.h.s8.bf16 %v495
        %v1200 = vunpack.c.h.s8.bf16 %v496
        %v1201 = vunpack.c.h.s8.bf16 %v497
        %v1202 = vunpack.c.h.s8.bf16 %v498
        %v1203 = vunpack.c.l.s8.bf16 %v499
        %v1204 = vunpack.c.l.s8.bf16 %v500
        %v1205 = vunpack.c.l.s8.bf16 %v501
        %v1206 = vunpack.c.l.s8.bf16 %v502
        %v1207 = vunpack.c.l.s8.bf16 %v503
        %v1208 = vunpack.c.l.s8.bf16 %v504
        %v1209 = vunpack.c.l.s8.bf16 %v505
        %v1210 = vunpack.c.l.s8.bf16 %v506
        %v1211 = vunpack.c.l.s8.bf16 %v507
        %v1212 = vunpack.c.l.s8.bf16 %v508
        %v1213 = vunpack.c.l.s8.bf16 %v509
        %v1214 = vunpack.c.l.s8.bf16 %v510
        %v1215 = vunpack.c.l.s8.bf16 %v511
        %v1216 = vunpack.c.l.s8.bf16 %v512
        %v1217 = vunpack.c.l.s8.bf16 %v513
        %v1218 = vunpack.c.l.s8.bf16 %v514
        %v1219 = vunpack.c.l.s8.bf16 %v515
        %v1220 = vunpack.c.l.s8.bf16 %v516
        %v1221 = vunpack.c.l.s8.bf16 %v517
        %v1222 = vunpack.c.l.s8.bf16 %v518
        %v1223 = vunpack.c.l.s8.bf16 %v519
        %v1224 = vunpack.c.l.s8.bf16 %v520
        %v1225 = vunpack.c.l.s8.bf16 %v521
        %v1226 = vunpack.c.l.s8.bf16 %v522
        %v1227 = vunpack.c.l.s8.bf16 %v523
        %v1228 = vunpack.c.l.s8.bf16 %v524
        %v1229 = vunpack.c.l.s8.bf16 %v525
        %v1230 = vunpack.c.l.s8.bf16 %v526
        %v1231 = vunpack.c.l.s8.bf16 %v527
        %v1232 = vunpack.c.l.s8.bf16 %v528
        %v1233 = vunpack.c.l.s8.bf16 %v529
        %v1234 = vunpack.c.l.s8.bf16 %v530
        %v1235 = vunpack.c.h.s8.bf16 %v499
        %v1236 = vunpack.c.h.s8.bf16 %v500
        %v1237 = vunpack.c.h.s8.bf16 %v501
        %v1238 = vunpack.c.h.s8.bf16 %v502
        %v1239 = vunpack.c.h.s8.bf16 %v503
        %v1240 = vunpack.c.h.s8.bf16 %v504
        %v1241 = vunpack.c.h.s8.bf16 %v505
        %v1242 = vunpack.c.h.s8.bf16 %v506
        %v1243 = vunpack.c.h.s8.bf16 %v507
        %v1244 = vunpack.c.h.s8.bf16 %v508
        %v1245 = vunpack.c.h.s8.bf16 %v509
        %v1246 = vunpack.c.h.s8.bf16 %v510
        %v1247 = vunpack.c.h.s8.bf16 %v511
        %v1248 = vunpack.c.h.s8.bf16 %v512
        %v1249 = vunpack.c.h.s8.bf16 %v513
        %v1250 = vunpack.c.h.s8.bf16 %v514
        %v1251 = vunpack.c.h.s8.bf16 %v515
        %v1252 = vunpack.c.h.s8.bf16 %v516
        %v1253 = vunpack.c.h.s8.bf16 %v517
        %v1254 = vunpack.c.h.s8.bf16 %v518
        %v1255 = vunpack.c.h.s8.bf16 %v519
        %v1256 = vunpack.c.h.s8.bf16 %v520
        %v1257 = vunpack.c.h.s8.bf16 %v521
        %v1258 = vunpack.c.h.s8.bf16 %v522
        %v1259 = vunpack.c.h.s8.bf16 %v523
        %v1260 = vunpack.c.h.s8.bf16 %v524
        %v1261 = vunpack.c.h.s8.bf16 %v525
        %v1262 = vunpack.c.h.s8.bf16 %v526
        %v1263 = vunpack.c.h.s8.bf16 %v527
        %v1264 = vunpack.c.h.s8.bf16 %v528
        %v1265 = vunpack.c.h.s8.bf16 %v529
        %v1266 = vunpack.c.h.s8.bf16 %v530
        %v1267 = vunpack.c.l.s8.bf16 %v531
        %v1268 = vunpack.c.l.s8.bf16 %v532
        %v1269 = vunpack.c.l.s8.bf16 %v533
        %v1270 = vunpack.c.l.s8.bf16 %v534
        %v1271 = vunpack.c.l.s8.bf16 %v535
        %v1272 = vunpack.c.l.s8.bf16 %v536
        %v1273 = vunpack.c.l.s8.bf16 %v537
        %v1274 = vunpack.c.l.s8.bf16 %v538
        %v1275 = vunpack.c.l.s8.bf16 %v539
        %v1276 = vunpack.c.l.s8.bf16 %v540
        %v1277 = vunpack.c.l.s8.bf16 %v541
        %v1278 = vunpack.c.l.s8.bf16 %v542
        %v1279 = vunpack.c.l.s8.bf16 %v543
        %v1280 = vunpack.c.l.s8.bf16 %v544
        %v1281 = vunpack.c.l.s8.bf16 %v545
        %v1282 = vunpack.c.l.s8.bf16 %v546
        %v1283 = vunpack.c.l.s8.bf16 %v547
        %v1284 = vunpack.c.l.s8.bf16 %v548
        %v1285 = vunpack.c.l.s8.bf16 %v549
        %v1286 = vunpack.c.l.s8.bf16 %v550
        %v1287 = vunpack.c.l.s8.bf16 %v551
        %v1288 = vunpack.c.l.s8.bf16 %v552
        %v1289 = vunpack.c.l.s8.bf16 %v553
        %v1290 = vunpack.c.l.s8.bf16 %v554
        %v1291 = vunpack.c.l.s8.bf16 %v555
        %v1292 = vunpack.c.l.s8.bf16 %v556
        %v1293 = vunpack.c.l.s8.bf16 %v557
        %v1294 = vunpack.c.l.s8.bf16 %v558
        %v1295 = vunpack.c.l.s8.bf16 %v559
        %v1296 = vunpack.c.l.s8.bf16 %v560
        %v1297 = vunpack.c.l.s8.bf16 %v561
        %v1298 = vunpack.c.l.s8.bf16 %v562
        %v1299 = vunpack.c.h.s8.bf16 %v531
        %v1300 = vunpack.c.h.s8.bf16 %v532
        %v1301 = vunpack.c.h.s8.bf16 %v533
        %v1302 = vunpack.c.h.s8.bf16 %v534
        %v1303 = vunpack.c.h.s8.bf16 %v535
        %v1304 = vunpack.c.h.s8.bf16 %v536
        %v1305 = vunpack.c.h.s8.bf16 %v537
        %v1306 = vunpack.c.h.s8.bf16 %v538
        %v1307 = vunpack.c.h.s8.bf16 %v539
        %v1308 = vunpack.c.h.s8.bf16 %v540
        %v1309 = vunpack.c.h.s8.bf16 %v541
        %v1310 = vunpack.c.h.s8.bf16 %v542
        %v1311 = vunpack.c.h.s8.bf16 %v543
        %v1312 = vunpack.c.h.s8.bf16 %v544
        %v1313 = vunpack.c.h.s8.bf16 %v545
        %v1314 = vunpack.c.h.s8.bf16 %v546
        %v1315 = vunpack.c.h.s8.bf16 %v547
        %v1316 = vunpack.c.h.s8.bf16 %v548
        %v1317 = vunpack.c.h.s8.bf16 %v549
        %v1318 = vunpack.c.h.s8.bf16 %v550
        %v1319 = vunpack.c.h.s8.bf16 %v551
        %v1320 = vunpack.c.h.s8.bf16 %v552
        %v1321 = vunpack.c.h.s8.bf16 %v553
        %v1322 = vunpack.c.h.s8.bf16 %v554
        %v1323 = vunpack.c.h.s8.bf16 %v555
        %v1324 = vunpack.c.h.s8.bf16 %v556
        %v1325 = vunpack.c.h.s8.bf16 %v557
        %v1326 = vunpack.c.h.s8.bf16 %v558
        %v1327 = vunpack.c.h.s8.bf16 %v559
        %v1328 = vunpack.c.h.s8.bf16 %v560
        %v1329 = vunpack.c.h.s8.bf16 %v561
        %v1330 = vunpack.c.h.s8.bf16 %v562
        %v1331 = vunpack.c.l.s8.bf16 %v563
        %v1332 = vunpack.c.l.s8.bf16 %v564
        %v1333 = vunpack.c.l.s8.bf16 %v565
        %v1334 = vunpack.c.l.s8.bf16 %v566
        %v1335 = vunpack.c.l.s8.bf16 %v567
        %v1336 = vunpack.c.l.s8.bf16 %v568
        %v1337 = vunpack.c.l.s8.bf16 %v569
        %v1338 = vunpack.c.l.s8.bf16 %v570
        %v1339 = vunpack.c.l.s8.bf16 %v571
        %v1340 = vunpack.c.l.s8.bf16 %v572
        %v1341 = vunpack.c.l.s8.bf16 %v573
        %v1342 = vunpack.c.l.s8.bf16 %v574
        %v1343 = vunpack.c.l.s8.bf16 %v575
        %v1344 = vunpack.c.l.s8.bf16 %v576
        %v1345 = vunpack.c.l.s8.bf16 %v577
        %v1346 = vunpack.c.l.s8.bf16 %v578
        %v1347 = vunpack.c.l.s8.bf16 %v579
        %v1348 = vunpack.c.l.s8.bf16 %v580
        %v1349 = vunpack.c.l.s8.bf16 %v581
        %v1350 = vunpack.c.l.s8.bf16 %v582
        %v1351 = vunpack.c.l.s8.bf16 %v583
        %v1352 = vunpack.c.l.s8.bf16 %v584
        %v1353 = vunpack.c.l.s8.bf16 %v585
        %v1354 = vunpack.c.l.s8.bf16 %v586
        %v1355 = vunpack.c.l.s8.bf16 %v587
        %v1356 = vunpack.c.l.s8.bf16 %v588
        %v1357 = vunpack.c.l.s8.bf16 %v589
        %v1358 = vunpack.c.l.s8.bf16 %v590
        %v1359 = vunpack.c.l.s8.bf16 %v591
        %v1360 = vunpack.c.l.s8.bf16 %v592
        %v1361 = vunpack.c.l.s8.bf16 %v593
        %v1362 = vunpack.c.l.s8.bf16 %v594
        %v1363 = vunpack.c.h.s8.bf16 %v563
        %v1364 = vunpack.c.h.s8.bf16 %v564
        %v1365 = vunpack.c.h.s8.bf16 %v565
        %v1366 = vunpack.c.h.s8.bf16 %v566
        %v1367 = vunpack.c.h.s8.bf16 %v567
        %v1368 = vunpack.c.h.s8.bf16 %v568
        %v1369 = vunpack.c.h.s8.bf16 %v569
        %v1370 = vunpack.c.h.s8.bf16 %v570
        %v1371 = vunpack.c.h.s8.bf16 %v571
        %v1372 = vunpack.c.h.s8.bf16 %v572
        %v1373 = vunpack.c.h.s8.bf16 %v573
        %v1374 = vunpack.c.h.s8.bf16 %v574
        %v1375 = vunpack.c.h.s8.bf16 %v575
        %v1376 = vunpack.c.h.s8.bf16 %v576
        %v1377 = vunpack.c.h.s8.bf16 %v577
        %v1378 = vunpack.c.h.s8.bf16 %v578
        %v1379 = vunpack.c.h.s8.bf16 %v579
        %v1380 = vunpack.c.h.s8.bf16 %v580
        %v1381 = vunpack.c.h.s8.bf16 %v581
        %v1382 = vunpack.c.h.s8.bf16 %v582
        %v1383 = vunpack.c.h.s8.bf16 %v583
        %v1384 = vunpack.c.h.s8.bf16 %v584
        %v1385 = vunpack.c.h.s8.bf16 %v585
        %v1386 = vunpack.c.h.s8.bf16 %v586
        %v1387 = vunpack.c.h.s8.bf16 %v587
        %v1388 = vunpack.c.h.s8.bf16 %v588
        %v1389 = vunpack.c.h.s8.bf16 %v589
        %v1390 = vunpack.c.h.s8.bf16 %v590
        %v1391 = vunpack.c.h.s8.bf16 %v591
        %v1392 = vunpack.c.h.s8.bf16 %v592
        %v1393 = vunpack.c.h.s8.bf16 %v593
        %v1394 = vunpack.c.h.s8.bf16 %v594
        %v1395 = vunpack.c.l.s8.bf16 %v595
        %v1396 = vunpack.c.l.s8.bf16 %v596
        %v1397 = vunpack.c.l.s8.bf16 %v597
        %v1398 = vunpack.c.l.s8.bf16 %v598
        %v1399 = vunpack.c.l.s8.bf16 %v599
        %v1400 = vunpack.c.l.s8.bf16 %v600
        %v1401 = vunpack.c.l.s8.bf16 %v601
        %v1402 = vunpack.c.l.s8.bf16 %v602
        %v1403 = vunpack.c.l.s8.bf16 %v603
        %v1404 = vunpack.c.l.s8.bf16 %v604
        %v1405 = vunpack.c.l.s8.bf16 %v605
        %v1406 = vunpack.c.l.s8.bf16 %v606
        %v1407 = vunpack.c.l.s8.bf16 %v607
        %v1408 = vunpack.c.l.s8.bf16 %v608
        %v1409 = vunpack.c.l.s8.bf16 %v609
        %v1410 = vunpack.c.l.s8.bf16 %v610
        %v1411 = vunpack.c.l.s8.bf16 %v611
        %v1412 = vunpack.c.l.s8.bf16 %v612
        %v1413 = vunpack.c.l.s8.bf16 %v613
        %v1414 = vunpack.c.l.s8.bf16 %v614
        %v1415 = vunpack.c.l.s8.bf16 %v615
        %v1416 = vunpack.c.l.s8.bf16 %v616
        %v1417 = vunpack.c.l.s8.bf16 %v617
        %v1418 = vunpack.c.l.s8.bf16 %v618
        %v1419 = vunpack.c.l.s8.bf16 %v619
        %v1420 = vunpack.c.l.s8.bf16 %v620
        %v1421 = vunpack.c.l.s8.bf16 %v621
        %v1422 = vunpack.c.l.s8.bf16 %v622
        %v1423 = vunpack.c.l.s8.bf16 %v623
        %v1424 = vunpack.c.l.s8.bf16 %v624
        %v1425 = vunpack.c.l.s8.bf16 %v625
        %v1426 = vunpack.c.l.s8.bf16 %v626
        %v1427 = vunpack.c.h.s8.bf16 %v595
        %v1428 = vunpack.c.h.s8.bf16 %v596
        %v1429 = vunpack.c.h.s8.bf16 %v597
        %v1430 = vunpack.c.h.s8.bf16 %v598
        %v1431 = vunpack.c.h.s8.bf16 %v599
        %v1432 = vunpack.c.h.s8.bf16 %v600
        %v1433 = vunpack.c.h.s8.bf16 %v601
        %v1434 = vunpack.c.h.s8.bf16 %v602
        %v1435 = vunpack.c.h.s8.bf16 %v603
        %v1436 = vunpack.c.h.s8.bf16 %v604
        %v1437 = vunpack.c.h.s8.bf16 %v605
        %v1438 = vunpack.c.h.s8.bf16 %v606
        %v1439 = vunpack.c.h.s8.bf16 %v607
        %v1440 = vunpack.c.h.s8.bf16 %v608
        %v1441 = vunpack.c.h.s8.bf16 %v609
        %v1442 = vunpack.c.h.s8.bf16 %v610
        %v1443 = vunpack.c.h.s8.bf16 %v611
        %v1444 = vunpack.c.h.s8.bf16 %v612
        %v1445 = vunpack.c.h.s8.bf16 %v613
        %v1446 = vunpack.c.h.s8.bf16 %v614
        %v1447 = vunpack.c.h.s8.bf16 %v615
        %v1448 = vunpack.c.h.s8.bf16 %v616
        %v1449 = vunpack.c.h.s8.bf16 %v617
        %v1450 = vunpack.c.h.s8.bf16 %v618
        %v1451 = vunpack.c.h.s8.bf16 %v619
        %v1452 = vunpack.c.h.s8.bf16 %v620
        %v1453 = vunpack.c.h.s8.bf16 %v621
        %v1454 = vunpack.c.h.s8.bf16 %v622
        %v1455 = vunpack.c.h.s8.bf16 %v623
        %v1456 = vunpack.c.h.s8.bf16 %v624
        %v1457 = vunpack.c.h.s8.bf16 %v625
        %v1458 = vunpack.c.h.s8.bf16 %v626
        %v1459 = vunpack.c.l.s8.bf16 %v627
        %v1460 = vunpack.c.l.s8.bf16 %v628
        %v1461 = vunpack.c.l.s8.bf16 %v629
        %v1462 = vunpack.c.l.s8.bf16 %v630
        %v1463 = vunpack.c.l.s8.bf16 %v631
        %v1464 = vunpack.c.l.s8.bf16 %v632
        %v1465 = vunpack.c.l.s8.bf16 %v633
        %v1466 = vunpack.c.l.s8.bf16 %v634
        %v1467 = vunpack.c.l.s8.bf16 %v635
        %v1468 = vunpack.c.l.s8.bf16 %v636
        %v1469 = vunpack.c.l.s8.bf16 %v637
        %v1470 = vunpack.c.l.s8.bf16 %v638
        %v1471 = vunpack.c.l.s8.bf16 %v639
        %v1472 = vunpack.c.l.s8.bf16 %v640
        %v1473 = vunpack.c.l.s8.bf16 %v641
        %v1474 = vunpack.c.l.s8.bf16 %v642
        %v1475 = vunpack.c.l.s8.bf16 %v643
        %v1476 = vunpack.c.l.s8.bf16 %v644
        %v1477 = vunpack.c.l.s8.bf16 %v645
        %v1478 = vunpack.c.l.s8.bf16 %v646
        %v1479 = vunpack.c.l.s8.bf16 %v647
        %v1480 = vunpack.c.l.s8.bf16 %v648
        %v1481 = vunpack.c.l.s8.bf16 %v649
        %v1482 = vunpack.c.l.s8.bf16 %v650
        %v1483 = vunpack.c.l.s8.bf16 %v651
        %v1484 = vunpack.c.l.s8.bf16 %v652
        %v1485 = vunpack.c.l.s8.bf16 %v653
        %v1486 = vunpack.c.l.s8.bf16 %v654
        %v1487 = vunpack.c.l.s8.bf16 %v655
        %v1488 = vunpack.c.l.s8.bf16 %v656
        %v1489 = vunpack.c.l.s8.bf16 %v657
        %v1490 = vunpack.c.l.s8.bf16 %v658
        %v1491 = vunpack.c.h.s8.bf16 %v627
        %v1492 = vunpack.c.h.s8.bf16 %v628
        %v1493 = vunpack.c.h.s8.bf16 %v629
        %v1494 = vunpack.c.h.s8.bf16 %v630
        %v1495 = vunpack.c.h.s8.bf16 %v631
        %v1496 = vunpack.c.h.s8.bf16 %v632
        %v1497 = vunpack.c.h.s8.bf16 %v633
        %v1498 = vunpack.c.h.s8.bf16 %v634
        %v1499 = vunpack.c.h.s8.bf16 %v635
        %v1500 = vunpack.c.h.s8.bf16 %v636
        %v1501 = vunpack.c.h.s8.bf16 %v637
        %v1502 = vunpack.c.h.s8.bf16 %v638
        %v1503 = vunpack.c.h.s8.bf16 %v639
        %v1504 = vunpack.c.h.s8.bf16 %v640
        %v1505 = vunpack.c.h.s8.bf16 %v641
        %v1506 = vunpack.c.h.s8.bf16 %v642
        %v1507 = vunpack.c.h.s8.bf16 %v643
        %v1508 = vunpack.c.h.s8.bf16 %v644
        %v1509 = vunpack.c.h.s8.bf16 %v645
        %v1510 = vunpack.c.h.s8.bf16 %v646
        %v1511 = vunpack.c.h.s8.bf16 %v647
        %v1512 = vunpack.c.h.s8.bf16 %v648
        %v1513 = vunpack.c.h.s8.bf16 %v649
        %v1514 = vunpack.c.h.s8.bf16 %v650
        %v1515 = vunpack.c.h.s8.bf16 %v651
        %v1516 = vunpack.c.h.s8.bf16 %v652
        %v1517 = vunpack.c.h.s8.bf16 %v653
        %v1518 = vunpack.c.h.s8.bf16 %v654
        %v1519 = vunpack.c.h.s8.bf16 %v655
        %v1520 = vunpack.c.h.s8.bf16 %v656
        %v1521 = vunpack.c.h.s8.bf16 %v657
        %v1522 = vunpack.c.h.s8.bf16 %v658
        %v1523 = vunpack.c.l.s8.bf16 %v659
        %v1524 = vunpack.c.l.s8.bf16 %v660
        %v1525 = vunpack.c.l.s8.bf16 %v661
        %v1526 = vunpack.c.l.s8.bf16 %v662
        %v1527 = vunpack.c.l.s8.bf16 %v663
        %v1528 = vunpack.c.l.s8.bf16 %v664
        %v1529 = vunpack.c.l.s8.bf16 %v665
        %v1530 = vunpack.c.l.s8.bf16 %v666
        %v1531 = vunpack.c.l.s8.bf16 %v667
        %v1532 = vunpack.c.l.s8.bf16 %v668
        %v1533 = vunpack.c.l.s8.bf16 %v669
        %v1534 = vunpack.c.l.s8.bf16 %v670
        %v1535 = vunpack.c.l.s8.bf16 %v671
        %v1536 = vunpack.c.l.s8.bf16 %v672
        %v1537 = vunpack.c.l.s8.bf16 %v673
        %v1538 = vunpack.c.l.s8.bf16 %v674
        %v1539 = vunpack.c.l.s8.bf16 %v675
        %v1540 = vunpack.c.l.s8.bf16 %v676
        %v1541 = vunpack.c.l.s8.bf16 %v677
        %v1542 = vunpack.c.l.s8.bf16 %v678
        %v1543 = vunpack.c.l.s8.bf16 %v679
        %v1544 = vunpack.c.l.s8.bf16 %v680
        %v1545 = vunpack.c.l.s8.bf16 %v681
        %v1546 = vunpack.c.l.s8.bf16 %v682
        %v1547 = vunpack.c.l.s8.bf16 %v683
        %v1548 = vunpack.c.l.s8.bf16 %v684
        %v1549 = vunpack.c.l.s8.bf16 %v685
        %v1550 = vunpack.c.l.s8.bf16 %v686
        %v1551 = vunpack.c.l.s8.bf16 %v687
        %v1552 = vunpack.c.l.s8.bf16 %v688
        %v1553 = vunpack.c.l.s8.bf16 %v689
        %v1554 = vunpack.c.l.s8.bf16 %v690
        %v1555 = vunpack.c.h.s8.bf16 %v659
        %v1556 = vunpack.c.h.s8.bf16 %v660
        %v1557 = vunpack.c.h.s8.bf16 %v661
        %v1558 = vunpack.c.h.s8.bf16 %v662
        %v1559 = vunpack.c.h.s8.bf16 %v663
        %v1560 = vunpack.c.h.s8.bf16 %v664
        %v1561 = vunpack.c.h.s8.bf16 %v665
        %v1562 = vunpack.c.h.s8.bf16 %v666
        %v1563 = vunpack.c.h.s8.bf16 %v667
        %v1564 = vunpack.c.h.s8.bf16 %v668
        %v1565 = vunpack.c.h.s8.bf16 %v669
        %v1566 = vunpack.c.h.s8.bf16 %v670
        %v1567 = vunpack.c.h.s8.bf16 %v671
        %v1568 = vunpack.c.h.s8.bf16 %v672
        %v1569 = vunpack.c.h.s8.bf16 %v673
        %v1570 = vunpack.c.h.s8.bf16 %v674
        %v1571 = vunpack.c.h.s8.bf16 %v675
        %v1572 = vunpack.c.h.s8.bf16 %v676
        %v1573 = vunpack.c.h.s8.bf16 %v677
        %v1574 = vunpack.c.h.s8.bf16 %v678
        %v1575 = vunpack.c.h.s8.bf16 %v679
        %v1576 = vunpack.c.h.s8.bf16 %v680
        %v1577 = vunpack.c.h.s8.bf16 %v681
        %v1578 = vunpack.c.h.s8.bf16 %v682
        %v1579 = vunpack.c.h.s8.bf16 %v683
        %v1580 = vunpack.c.h.s8.bf16 %v684
        %v1581 = vunpack.c.h.s8.bf16 %v685
        %v1582 = vunpack.c.h.s8.bf16 %v686
        %v1583 = vunpack.c.h.s8.bf16 %v687
        %v1584 = vunpack.c.h.s8.bf16 %v688
        %v1585 = vunpack.c.h.s8.bf16 %v689
        %v1586 = vunpack.c.h.s8.bf16 %v690
        %v1587 = vunpack.c.l.s8.bf16 %v691
        %v1588 = vunpack.c.l.s8.bf16 %v692
        %v1589 = vunpack.c.l.s8.bf16 %v693
        %v1590 = vunpack.c.l.s8.bf16 %v694
        %v1591 = vunpack.c.l.s8.bf16 %v695
        %v1592 = vunpack.c.l.s8.bf16 %v696
        %v1593 = vunpack.c.l.s8.bf16 %v697
        %v1594 = vunpack.c.l.s8.bf16 %v698
        %v1595 = vunpack.c.l.s8.bf16 %v699
        %v1596 = vunpack.c.l.s8.bf16 %v700
        %v1597 = vunpack.c.l.s8.bf16 %v701
        %v1598 = vunpack.c.l.s8.bf16 %v702
        %v1599 = vunpack.c.l.s8.bf16 %v703
        %v1600 = vunpack.c.l.s8.bf16 %v704
        %v1601 = vunpack.c.l.s8.bf16 %v705
        %v1602 = vunpack.c.l.s8.bf16 %v706
        %v1603 = vunpack.c.l.s8.bf16 %v707
        %v1604 = vunpack.c.l.s8.bf16 %v708
        %v1605 = vunpack.c.l.s8.bf16 %v709
        %v1606 = vunpack.c.l.s8.bf16 %v710
        %v1607 = vunpack.c.l.s8.bf16 %v711
        %v1608 = vunpack.c.l.s8.bf16 %v712
        %v1609 = vunpack.c.l.s8.bf16 %v713
        %v1610 = vunpack.c.l.s8.bf16 %v714
        %v1611 = vunpack.c.l.s8.bf16 %v715
        %v1612 = vunpack.c.l.s8.bf16 %v716
        %v1613 = vunpack.c.l.s8.bf16 %v717
        %v1614 = vunpack.c.l.s8.bf16 %v718
        %v1615 = vunpack.c.l.s8.bf16 %v719
        %v1616 = vunpack.c.l.s8.bf16 %v720
        %v1617 = vunpack.c.l.s8.bf16 %v721
        %v1618 = vunpack.c.l.s8.bf16 %v722
        %v1619 = vunpack.c.h.s8.bf16 %v691
        %v1620 = vunpack.c.h.s8.bf16 %v692
        %v1621 = vunpack.c.h.s8.bf16 %v693
        %v1622 = vunpack.c.h.s8.bf16 %v694
        %v1623 = vunpack.c.h.s8.bf16 %v695
        %v1624 = vunpack.c.h.s8.bf16 %v696
        %v1625 = vunpack.c.h.s8.bf16 %v697
        %v1626 = vunpack.c.h.s8.bf16 %v698
        %v1627 = vunpack.c.h.s8.bf16 %v699
        %v1628 = vunpack.c.h.s8.bf16 %v700
        %v1629 = vunpack.c.h.s8.bf16 %v701
        %v1630 = vunpack.c.h.s8.bf16 %v702
        %v1631 = vunpack.c.h.s8.bf16 %v703
        %v1632 = vunpack.c.h.s8.bf16 %v704
        %v1633 = vunpack.c.h.s8.bf16 %v705
        %v1634 = vunpack.c.h.s8.bf16 %v706
        %v1635 = vunpack.c.h.s8.bf16 %v707
        %v1636 = vunpack.c.h.s8.bf16 %v708
        %v1637 = vunpack.c.h.s8.bf16 %v709
        %v1638 = vunpack.c.h.s8.bf16 %v710
        %v1639 = vunpack.c.h.s8.bf16 %v711
        %v1640 = vunpack.c.h.s8.bf16 %v712
        %v1641 = vunpack.c.h.s8.bf16 %v713
        %v1642 = vunpack.c.h.s8.bf16 %v714
        %v1643 = vunpack.c.h.s8.bf16 %v715
        %v1644 = vunpack.c.h.s8.bf16 %v716
        %v1645 = vunpack.c.h.s8.bf16 %v717
        %v1646 = vunpack.c.h.s8.bf16 %v718
        %v1647 = vunpack.c.h.s8.bf16 %v719
        %v1648 = vunpack.c.h.s8.bf16 %v720
        %v1649 = vunpack.c.h.s8.bf16 %v721
        %v1650 = vunpack.c.h.s8.bf16 %v722
        %v1651 = vunpack.c.l.s8.bf16 %v723
        %v1652 = vunpack.c.l.s8.bf16 %v724
        %v1653 = vunpack.c.l.s8.bf16 %v725
        %v1654 = vunpack.c.l.s8.bf16 %v726
        %v1655 = vunpack.c.l.s8.bf16 %v727
        %v1656 = vunpack.c.l.s8.bf16 %v728
        %v1657 = vunpack.c.l.s8.bf16 %v729
        %v1658 = vunpack.c.l.s8.bf16 %v730
        %v1659 = vunpack.c.l.s8.bf16 %v731
        %v1660 = vunpack.c.l.s8.bf16 %v732
        %v1661 = vunpack.c.l.s8.bf16 %v733
        %v1662 = vunpack.c.l.s8.bf16 %v734
        %v1663 = vunpack.c.l.s8.bf16 %v735
        %v1664 = vunpack.c.l.s8.bf16 %v736
        %v1665 = vunpack.c.l.s8.bf16 %v737
        %v1666 = vunpack.c.l.s8.bf16 %v738
        %v1667 = vunpack.c.l.s8.bf16 %v739
        %v1668 = vunpack.c.l.s8.bf16 %v740
        %v1669 = vunpack.c.l.s8.bf16 %v741
        %v1670 = vunpack.c.l.s8.bf16 %v742
        %v1671 = vunpack.c.l.s8.bf16 %v743
        %v1672 = vunpack.c.l.s8.bf16 %v744
        %v1673 = vunpack.c.l.s8.bf16 %v745
        %v1674 = vunpack.c.l.s8.bf16 %v746
        %v1675 = vunpack.c.l.s8.bf16 %v747
        %v1676 = vunpack.c.l.s8.bf16 %v748
        %v1677 = vunpack.c.l.s8.bf16 %v749
        %v1678 = vunpack.c.l.s8.bf16 %v750
        %v1679 = vunpack.c.l.s8.bf16 %v751
        %v1680 = vunpack.c.l.s8.bf16 %v752
        %v1681 = vunpack.c.l.s8.bf16 %v753
        %v1682 = vunpack.c.l.s8.bf16 %v754
        %v1683 = vunpack.c.h.s8.bf16 %v723
        %v1684 = vunpack.c.h.s8.bf16 %v724
        %v1685 = vunpack.c.h.s8.bf16 %v725
        %v1686 = vunpack.c.h.s8.bf16 %v726
        %v1687 = vunpack.c.h.s8.bf16 %v727
        %v1688 = vunpack.c.h.s8.bf16 %v728
        %v1689 = vunpack.c.h.s8.bf16 %v729
        %v1690 = vunpack.c.h.s8.bf16 %v730
        %v1691 = vunpack.c.h.s8.bf16 %v731
        %v1692 = vunpack.c.h.s8.bf16 %v732
        %v1693 = vunpack.c.h.s8.bf16 %v733
        %v1694 = vunpack.c.h.s8.bf16 %v734
        %v1695 = vunpack.c.h.s8.bf16 %v735
        %v1696 = vunpack.c.h.s8.bf16 %v736
        %v1697 = vunpack.c.h.s8.bf16 %v737
        %v1698 = vunpack.c.h.s8.bf16 %v738
        %v1699 = vunpack.c.h.s8.bf16 %v739
        %v1700 = vunpack.c.h.s8.bf16 %v740
        %v1701 = vunpack.c.h.s8.bf16 %v741
        %v1702 = vunpack.c.h.s8.bf16 %v742
        %v1703 = vunpack.c.h.s8.bf16 %v743
        %v1704 = vunpack.c.h.s8.bf16 %v744
        %v1705 = vunpack.c.h.s8.bf16 %v745
        %v1706 = vunpack.c.h.s8.bf16 %v746
        %v1707 = vunpack.c.h.s8.bf16 %v747
        %v1708 = vunpack.c.h.s8.bf16 %v748
        %v1709 = vunpack.c.h.s8.bf16 %v749
        %v1710 = vunpack.c.h.s8.bf16 %v750
        %v1711 = vunpack.c.h.s8.bf16 %v751
        %v1712 = vunpack.c.h.s8.bf16 %v752
        %v1713 = vunpack.c.h.s8.bf16 %v753
        %v1714 = vunpack.c.h.s8.bf16 %v754
        %v1715 = vunpack.c.l.s8.bf16 %v755
        %v1716 = vunpack.c.l.s8.bf16 %v756
        %v1717 = vunpack.c.l.s8.bf16 %v757
        %v1718 = vunpack.c.l.s8.bf16 %v758
        %v1719 = vunpack.c.l.s8.bf16 %v759
        %v1720 = vunpack.c.l.s8.bf16 %v760
        %v1721 = vunpack.c.l.s8.bf16 %v761
        %v1722 = vunpack.c.l.s8.bf16 %v762
        %v1723 = vunpack.c.l.s8.bf16 %v763
        %v1724 = vunpack.c.l.s8.bf16 %v764
        %v1725 = vunpack.c.l.s8.bf16 %v765
        %v1726 = vunpack.c.l.s8.bf16 %v766
        %v1727 = vunpack.c.l.s8.bf16 %v767
        %v1728 = vunpack.c.l.s8.bf16 %v768
        %v1729 = vunpack.c.l.s8.bf16 %v769
        %v1730 = vunpack.c.l.s8.bf16 %v770
        %v1731 = vunpack.c.l.s8.bf16 %v771
        %v1732 = vunpack.c.l.s8.bf16 %v772
        %v1733 = vunpack.c.l.s8.bf16 %v773
        %v1734 = vunpack.c.l.s8.bf16 %v774
        %v1735 = vunpack.c.l.s8.bf16 %v775
        %v1736 = vunpack.c.l.s8.bf16 %v776
        %v1737 = vunpack.c.l.s8.bf16 %v777
        %v1738 = vunpack.c.l.s8.bf16 %v778
        %v1739 = vunpack.c.l.s8.bf16 %v779
        %v1740 = vunpack.c.l.s8.bf16 %v780
        %v1741 = vunpack.c.l.s8.bf16 %v781
        %v1742 = vunpack.c.l.s8.bf16 %v782
        %v1743 = vunpack.c.l.s8.bf16 %v783
        %v1744 = vunpack.c.l.s8.bf16 %v784
        %v1745 = vunpack.c.l.s8.bf16 %v785
        %v1746 = vunpack.c.l.s8.bf16 %v786
        %v1747 = vunpack.c.h.s8.bf16 %v755
        %v1748 = vunpack.c.h.s8.bf16 %v756
        %v1749 = vunpack.c.h.s8.bf16 %v757
        %v1750 = vunpack.c.h.s8.bf16 %v758
        %v1751 = vunpack.c.h.s8.bf16 %v759
        %v1752 = vunpack.c.h.s8.bf16 %v760
        %v1753 = vunpack.c.h.s8.bf16 %v761
        %v1754 = vunpack.c.h.s8.bf16 %v762
        %v1755 = vunpack.c.h.s8.bf16 %v763
        %v1756 = vunpack.c.h.s8.bf16 %v764
        %v1757 = vunpack.c.h.s8.bf16 %v765
        %v1758 = vunpack.c.h.s8.bf16 %v766
        %v1759 = vunpack.c.h.s8.bf16 %v767
        %v1760 = vunpack.c.h.s8.bf16 %v768
        %v1761 = vunpack.c.h.s8.bf16 %v769
        %v1762 = vunpack.c.h.s8.bf16 %v770
        %v1763 = vunpack.c.h.s8.bf16 %v771
        %v1764 = vunpack.c.h.s8.bf16 %v772
        %v1765 = vunpack.c.h.s8.bf16 %v773
        %v1766 = vunpack.c.h.s8.bf16 %v774
        %v1767 = vunpack.c.h.s8.bf16 %v775
        %v1768 = vunpack.c.h.s8.bf16 %v776
        %v1769 = vunpack.c.h.s8.bf16 %v777
        %v1770 = vunpack.c.h.s8.bf16 %v778
        %v1771 = vunpack.c.h.s8.bf16 %v779
        %v1772 = vunpack.c.h.s8.bf16 %v780
        %v1773 = vunpack.c.h.s8.bf16 %v781
        %v1774 = vunpack.c.h.s8.bf16 %v782
        %v1775 = vunpack.c.h.s8.bf16 %v783
        %v1776 = vunpack.c.h.s8.bf16 %v784
        %v1777 = vunpack.c.h.s8.bf16 %v785
        %v1778 = vunpack.c.h.s8.bf16 %v786
        %v1779 = vunpack.c.l.s8.bf16 %v787
        %v1780 = vunpack.c.l.s8.bf16 %v788
        %v1781 = vunpack.c.l.s8.bf16 %v789
        %v1782 = vunpack.c.l.s8.bf16 %v790
        %v1783 = vunpack.c.l.s8.bf16 %v791
        %v1784 = vunpack.c.l.s8.bf16 %v792
        %v1785 = vunpack.c.l.s8.bf16 %v793
        %v1786 = vunpack.c.l.s8.bf16 %v794
        %v1787 = vunpack.c.l.s8.bf16 %v795
        %v1788 = vunpack.c.l.s8.bf16 %v796
        %v1789 = vunpack.c.l.s8.bf16 %v797
        %v1790 = vunpack.c.l.s8.bf16 %v798
        %v1791 = vunpack.c.l.s8.bf16 %v799
        %v1792 = vunpack.c.l.s8.bf16 %v800
        %v1793 = vunpack.c.l.s8.bf16 %v801
        %v1794 = vunpack.c.l.s8.bf16 %v802
        %v1795 = vunpack.c.l.s8.bf16 %v803
        %v1796 = vunpack.c.l.s8.bf16 %v804
        %v1797 = vunpack.c.l.s8.bf16 %v805
        %v1798 = vunpack.c.l.s8.bf16 %v806
        %v1799 = vunpack.c.l.s8.bf16 %v807
        %v1800 = vunpack.c.l.s8.bf16 %v808
        %v1801 = vunpack.c.l.s8.bf16 %v809
        %v1802 = vunpack.c.l.s8.bf16 %v810
        %v1803 = vunpack.c.l.s8.bf16 %v811
        %v1804 = vunpack.c.l.s8.bf16 %v812
        %v1805 = vunpack.c.l.s8.bf16 %v813
        %v1806 = vunpack.c.l.s8.bf16 %v814
        %v1807 = vunpack.c.l.s8.bf16 %v815
        %v1808 = vunpack.c.l.s8.bf16 %v816
        %v1809 = vunpack.c.l.s8.bf16 %v817
        %v1810 = vunpack.c.l.s8.bf16 %v818
        %v1811 = vunpack.c.h.s8.bf16 %v787
        %v1812 = vunpack.c.h.s8.bf16 %v788
        %v1813 = vunpack.c.h.s8.bf16 %v789
        %v1814 = vunpack.c.h.s8.bf16 %v790
        %v1815 = vunpack.c.h.s8.bf16 %v791
        %v1816 = vunpack.c.h.s8.bf16 %v792
        %v1817 = vunpack.c.h.s8.bf16 %v793
        %v1818 = vunpack.c.h.s8.bf16 %v794
        %v1819 = vunpack.c.h.s8.bf16 %v795
        %v1820 = vunpack.c.h.s8.bf16 %v796
        %v1821 = vunpack.c.h.s8.bf16 %v797
        %v1822 = vunpack.c.h.s8.bf16 %v798
        %v1823 = vunpack.c.h.s8.bf16 %v799
        %v1824 = vunpack.c.h.s8.bf16 %v800
        %v1825 = vunpack.c.h.s8.bf16 %v801
        %v1826 = vunpack.c.h.s8.bf16 %v802
        %v1827 = vunpack.c.h.s8.bf16 %v803
        %v1828 = vunpack.c.h.s8.bf16 %v804
        %v1829 = vunpack.c.h.s8.bf16 %v805
        %v1830 = vunpack.c.h.s8.bf16 %v806
        %v1831 = vunpack.c.h.s8.bf16 %v807
        %v1832 = vunpack.c.h.s8.bf16 %v808
        %v1833 = vunpack.c.h.s8.bf16 %v809
        %v1834 = vunpack.c.h.s8.bf16 %v810
        %v1835 = vunpack.c.h.s8.bf16 %v811
        %v1836 = vunpack.c.h.s8.bf16 %v812
        %v1837 = vunpack.c.h.s8.bf16 %v813
        %v1838 = vunpack.c.h.s8.bf16 %v814
        %v1839 = vunpack.c.h.s8.bf16 %v815
        %v1840 = vunpack.c.h.s8.bf16 %v816
        %v1841 = vunpack.c.h.s8.bf16 %v817
        %v1842 = vunpack.c.h.s8.bf16 %v818
        %v1843 = vld [vmem:[#allocation2] sm:$0xff]
        %v1844 = vld [vmem:[#allocation2 + $0x8] sm:$0xff]
        %v1845 = vld [vmem:[#allocation2 + $0x10] sm:$0xff]
        %v1846 = vld [vmem:[#allocation2 + $0x18] sm:$0xff]
        %v1851 = vunpack.c.l.b16 %v1843
        %v1852 = vunpack.c.h.b16 %v1843
        %v1853 = vunpack.c.l.b16 %v1844
        %v1854 = vunpack.c.h.b16 %v1844
        %v1855 = vunpack.c.l.b16 %v1845
        %v1856 = vunpack.c.h.b16 %v1845
        %v1857 = vunpack.c.l.b16 %v1846
        %v1858 = vunpack.c.h.b16 %v1846
        %v1859 = vpack.c.b16 %v1855, %v1851
        %v1860 = vpack.c.b16 %v1856, %v1852
        %v1861 = vpack.c.b16 %v1857, %v1853
        %v1862 = vpack.c.b16 %v1858, %v1854
        %1867 = vmatprep.subr.bf16.mxu0 %v820
        %1868 = vmatpush1.bf16.msra.mxu0 %v819
        %1869 = vmatprep.subr.bf16.mxu0 %v852
        %1870 = vmatpush1.bf16.msra.mxu0 %v851
        %1871 = vmatprep.subr.bf16.mxu0 %v884
        %1872 = vmatpush1.bf16.msra.mxu0 %v883
        %1873 = vmatprep.subr.bf16.mxu0 %v916
        %1874 = vmatpush1.bf16.msra.mxu0 %v915
        %1875 = vmatprep.subr.bf16.mxu0 %v948
        %1876 = vmatpush1.bf16.msra.mxu0 %v947
        %1877 = vmatprep.subr.bf16.mxu0 %v980
        %1878 = vmatpush1.bf16.msra.mxu0 %v979
        %1879 = vmatprep.subr.bf16.mxu0 %v1012
        %1880 = vmatpush1.bf16.msra.mxu0 %v1011
        %1881 = vmatprep.subr.bf16.mxu0 %v1044
        %1882 = vmatpush1.bf16.msra.mxu0 %v1043
        %1883 = vmatprep.subr.bf16.mxu0 %v1076
        %1884 = vmatpush1.bf16.msra.mxu0 %v1075
        %1885 = vmatprep.subr.bf16.mxu0 %v1108
        %1886 = vmatpush1.bf16.msra.mxu0 %v1107
        %1887 = vmatprep.subr.bf16.mxu0 %v1140
        %1888 = vmatpush1.bf16.msra.mxu0 %v1139
        %1889 = vmatprep.subr.bf16.mxu0 %v1172
        %1890 = vmatpush1.bf16.msra.mxu0 %v1171
        %1891 = vmatprep.subr.bf16.mxu0 %v1204
        %1892 = vmatpush1.bf16.msra.mxu0 %v1203
        %1893 = vmatprep.subr.bf16.mxu0 %v1236
        %1894 = vmatpush1.bf16.msra.mxu0 %v1235
        %1895 = vmatprep.subr.bf16.mxu0 %v1268
        %1896 = vmatpush1.bf16.msra.mxu0 %v1267
        %1897 = vmatprep.subr.bf16.mxu0 %v1300
        %1898 = vmatpush1.bf16.msra.mxu0 %v1299
        %1899 = vmatprep.mubr.bf16.mxu0 %v1860
        %1900 = vmatmul.mubr.bf16.gmra.mrb[0].mxu0 %v1859
        %v1901 = vpop.f32.mrb[0].mxu0
        %v1902 = vadd.f32 0.0, %v1901
        %v1903 = vpop.f32.mrb[0].mxu0
        %v1904 = vadd.f32 0.0, %v1903
        %v1905 = vpop.f32.mrb[0].mxu0
        %v1906 = vadd.f32 0.0, %v1905
        %v1907 = vpop.f32.mrb[0].mxu0
        %v1908 = vadd.f32 0.0, %v1907
        %1909 = vdwg.mxu0
        %1910 = vmatprep.subr.bf16.mxu0 %v1332
        %1911 = vmatpush1.bf16.msra.mxu0 %v1331
        %1912 = vmatprep.subr.bf16.mxu0 %v1364
        %1913 = vmatpush1.bf16.msra.mxu0 %v1363
        %1914 = vmatprep.subr.bf16.mxu0 %v1396
        %1915 = vmatpush1.bf16.msra.mxu0 %v1395
        %1916 = vmatprep.subr.bf16.mxu0 %v1428
        %1917 = vmatpush1.bf16.msra.mxu0 %v1427
        %1918 = vmatprep.subr.bf16.mxu0 %v1460
        %1919 = vmatpush1.bf16.msra.mxu0 %v1459
        %1920 = vmatprep.subr.bf16.mxu0 %v1492
        %1921 = vmatpush1.bf16.msra.mxu0 %v1491
        %1922 = vmatprep.subr.bf16.mxu0 %v1524
        %1923 = vmatpush1.bf16.msra.mxu0 %v1523
        %1924 = vmatprep.subr.bf16.mxu0 %v1556
        %1925 = vmatpush1.bf16.msra.mxu0 %v1555
        %1926 = vmatprep.subr.bf16.mxu0 %v1588
        %1927 = vmatpush1.bf16.msra.mxu0 %v1587
        %1928 = vmatprep.subr.bf16.mxu0 %v1620
        %1929 = vmatpush1.bf16.msra.mxu0 %v1619
        %1930 = vmatprep.subr.bf16.mxu0 %v1652
        %1931 = vmatpush1.bf16.msra.mxu0 %v1651
        %1932 = vmatprep.subr.bf16.mxu0 %v1684
        %1933 = vmatpush1.bf16.msra.mxu0 %v1683
        %1934 = vmatprep.subr.bf16.mxu0 %v1716
        %1935 = vmatpush1.bf16.msra.mxu0 %v1715
        %1936 = vmatprep.subr.bf16.mxu0 %v1748
        %1937 = vmatpush1.bf16.msra.mxu0 %v1747
        %1938 = vmatprep.subr.bf16.mxu0 %v1780
        %1939 = vmatpush1.bf16.msra.mxu0 %v1779
        %1940 = vmatprep.subr.bf16.mxu0 %v1812
        %1941 = vmatpush1.bf16.msra.mxu0 %v1811
        %1942 = vmatprep.mubr.bf16.mxu0 %v1862
        %1943 = vmatmul.mubr.bf16.gmra.mrb[0].mxu0 %v1861
        %v1944 = vpop.f32.mrb[0].mxu0
        %v1945 = vadd.f32 %v1902, %v1944
        %v1946 = vpop.f32.mrb[0].mxu0
        %v1947 = vadd.f32 %v1904, %v1946
        %v1948 = vpop.f32.mrb[0].mxu0
        %v1949 = vadd.f32 %v1906, %v1948
        %v1950 = vpop.f32.mrb[0].mxu0
        %v1951 = vadd.f32 %v1908, %v1950
        %1952 = vdwg.mxu0
        %1953 = vmatprep.subr.bf16.mxu0 %v822
        %1954 = vmatpush1.bf16.msra.mxu0 %v821
        %1955 = vmatprep.subr.bf16.mxu0 %v854
        %1956 = vmatpush1.bf16.msra.mxu0 %v853
        %1957 = vmatprep.subr.bf16.mxu0 %v886
        %1958 = vmatpush1.bf16.msra.mxu0 %v885
        %1959 = vmatprep.subr.bf16.mxu0 %v918
        %1960 = vmatpush1.bf16.msra.mxu0 %v917
        %1961 = vmatprep.subr.bf16.mxu0 %v950
        %1962 = vmatpush1.bf16.msra.mxu0 %v949
        %1963 = vmatprep.subr.bf16.mxu0 %v982
        %1964 = vmatpush1.bf16.msra.mxu0 %v981
        %1965 = vmatprep.subr.bf16.mxu0 %v1014
        %1966 = vmatpush1.bf16.msra.mxu0 %v1013
        %1967 = vmatprep.subr.bf16.mxu0 %v1046
        %1968 = vmatpush1.bf16.msra.mxu0 %v1045
        %1969 = vmatprep.subr.bf16.mxu0 %v1078
        %1970 = vmatpush1.bf16.msra.mxu0 %v1077
        %1971 = vmatprep.subr.bf16.mxu0 %v1110
        %1972 = vmatpush1.bf16.msra.mxu0 %v1109
        %1973 = vmatprep.subr.bf16.mxu0 %v1142
        %1974 = vmatpush1.bf16.msra.mxu0 %v1141
        %1975 = vmatprep.subr.bf16.mxu0 %v1174
        %1976 = vmatpush1.bf16.msra.mxu0 %v1173
        %1977 = vmatprep.subr.bf16.mxu0 %v1206
        %1978 = vmatpush1.bf16.msra.mxu0 %v1205
        %1979 = vmatprep.subr.bf16.mxu0 %v1238
        %1980 = vmatpush1.bf16.msra.mxu0 %v1237
        %1981 = vmatprep.subr.bf16.mxu0 %v1270
        %1982 = vmatpush1.bf16.msra.mxu0 %v1269
        %1983 = vmatprep.subr.bf16.mxu0 %v1302
        %1984 = vmatpush1.bf16.msra.mxu0 %v1301
        %1985 = vmatprep.mubr.bf16.mxu0 %v1860
        %1986 = vmatmul.mubr.bf16.gmra.mrb[0].mxu0 %v1859
        %v1987 = vpop.f32.mrb[0].mxu0
        %v1988 = vadd.f32 0.0, %v1987
        %v1989 = vpop.f32.mrb[0].mxu0
        %v1990 = vadd.f32 0.0, %v1989
        %v1991 = vpop.f32.mrb[0].mxu0
        %v1992 = vadd.f32 0.0, %v1991
        %v1993 = vpop.f32.mrb[0].mxu0
        %v1994 = vadd.f32 0.0, %v1993
        %1995 = vdwg.mxu0
        %1996 = vmatprep.subr.bf16.mxu0 %v1334
        %1997 = vmatpush1.bf16.msra.mxu0 %v1333
        %1998 = vmatprep.subr.bf16.mxu0 %v1366
        %1999 = vmatpush1.bf16.msra.mxu0 %v1365
        %2000 = vmatprep.subr.bf16.mxu0 %v1398
        %2001 = vmatpush1.bf16.msra.mxu0 %v1397
        %2002 = vmatprep.subr.bf16.mxu0 %v1430
        %2003 = vmatpush1.bf16.msra.mxu0 %v1429
        %2004 = vmatprep.subr.bf16.mxu0 %v1462
        %2005 = vmatpush1.bf16.msra.mxu0 %v1461
        %2006 = vmatprep.subr.bf16.mxu0 %v1494
        %2007 = vmatpush1.bf16.msra.mxu0 %v1493
        %2008 = vmatprep.subr.bf16.mxu0 %v1526
        %2009 = vmatpush1.bf16.msra.mxu0 %v1525
        %2010 = vmatprep.subr.bf16.mxu0 %v1558
        %2011 = vmatpush1.bf16.msra.mxu0 %v1557
        %2012 = vmatprep.subr.bf16.mxu0 %v1590
        %2013 = vmatpush1.bf16.msra.mxu0 %v1589
        %2014 = vmatprep.subr.bf16.mxu0 %v1622
        %2015 = vmatpush1.bf16.msra.mxu0 %v1621
        %2016 = vmatprep.subr.bf16.mxu0 %v1654
        %2017 = vmatpush1.bf16.msra.mxu0 %v1653
        %2018 = vmatprep.subr.bf16.mxu0 %v1686
        %2019 = vmatpush1.bf16.msra.mxu0 %v1685
        %2020 = vmatprep.subr.bf16.mxu0 %v1718
        %2021 = vmatpush1.bf16.msra.mxu0 %v1717
        %2022 = vmatprep.subr.bf16.mxu0 %v1750
        %2023 = vmatpush1.bf16.msra.mxu0 %v1749
        %2024 = vmatprep.subr.bf16.mxu0 %v1782
        %2025 = vmatpush1.bf16.msra.mxu0 %v1781
        %2026 = vmatprep.subr.bf16.mxu0 %v1814
        %2027 = vmatpush1.bf16.msra.mxu0 %v1813
        %2028 = vmatprep.mubr.bf16.mxu0 %v1862
        %2029 = vmatmul.mubr.bf16.gmra.mrb[0].mxu0 %v1861
        %v2030 = vpop.f32.mrb[0].mxu0
        %v2031 = vadd.f32 %v1988, %v2030
        %v2032 = vpop.f32.mrb[0].mxu0
        %v2033 = vadd.f32 %v1990, %v2032
        %v2034 = vpop.f32.mrb[0].mxu0
        %v2035 = vadd.f32 %v1992, %v2034
        %v2036 = vpop.f32.mrb[0].mxu0
        %v2037 = vadd.f32 %v1994, %v2036
        %2038 = vdwg.mxu0
        %2039 = vmatprep.subr.bf16.mxu0 %v824
        %2040 = vmatpush1.bf16.msra.mxu0 %v823
        %2041 = vmatprep.subr.bf16.mxu0 %v856
        %2042 = vmatpush1.bf16.msra.mxu0 %v855
        %2043 = vmatprep.subr.bf16.mxu0 %v888
        %2044 = vmatpush1.bf16.msra.mxu0 %v887
        %2045 = vmatprep.subr.bf16.mxu0 %v920
        %2046 = vmatpush1.bf16.msra.mxu0 %v919
        %2047 = vmatprep.subr.bf16.mxu0 %v952
        %2048 = vmatpush1.bf16.msra.mxu0 %v951
        %2049 = vmatprep.subr.bf16.mxu0 %v984
        %2050 = vmatpush1.bf16.msra.mxu0 %v983
        %2051 = vmatprep.subr.bf16.mxu0 %v1016
        %2052 = vmatpush1.bf16.msra.mxu0 %v1015
        %2053 = vmatprep.subr.bf16.mxu0 %v1048
        %2054 = vmatpush1.bf16.msra.mxu0 %v1047
        %2055 = vmatprep.subr.bf16.mxu0 %v1080
        %2056 = vmatpush1.bf16.msra.mxu0 %v1079
        %2057 = vmatprep.subr.bf16.mxu0 %v1112
        %2058 = vmatpush1.bf16.msra.mxu0 %v1111
        %2059 = vmatprep.subr.bf16.mxu0 %v1144
        %2060 = vmatpush1.bf16.msra.mxu0 %v1143
        %2061 = vmatprep.subr.bf16.mxu0 %v1176
        %2062 = vmatpush1.bf16.msra.mxu0 %v1175
        %2063 = vmatprep.subr.bf16.mxu0 %v1208
        %2064 = vmatpush1.bf16.msra.mxu0 %v1207
        %2065 = vmatprep.subr.bf16.mxu0 %v1240
        %2066 = vmatpush1.bf16.msra.mxu0 %v1239
        %2067 = vmatprep.subr.bf16.mxu0 %v1272
        %2068 = vmatpush1.bf16.msra.mxu0 %v1271
        %2069 = vmatprep.subr.bf16.mxu0 %v1304
        %2070 = vmatpush1.bf16.msra.mxu0 %v1303
        %2071 = vmatprep.mubr.bf16.mxu0 %v1860
        %2072 = vmatmul.mubr.bf16.gmra.mrb[0].mxu0 %v1859
        %v2073 = vpop.f32.mrb[0].mxu0
        %v2074 = vadd.f32 0.0, %v2073
        %v2075 = vpop.f32.mrb[0].mxu0
        %v2076 = vadd.f32 0.0, %v2075
        %v2077 = vpop.f32.mrb[0].mxu0
        %v2078 = vadd.f32 0.0, %v2077
        %v2079 = vpop.f32.mrb[0].mxu0
        %v2080 = vadd.f32 0.0, %v2079
        %2081 = vdwg.mxu0
        %2082 = vmatprep.subr.bf16.mxu0 %v1336
        %2083 = vmatpush1.bf16.msra.mxu0 %v1335
        %2084 = vmatprep.subr.bf16.mxu0 %v1368
        %2085 = vmatpush1.bf16.msra.mxu0 %v1367
        %2086 = vmatprep.subr.bf16.mxu0 %v1400
        %2087 = vmatpush1.bf16.msra.mxu0 %v1399
        %2088 = vmatprep.subr.bf16.mxu0 %v1432
        %2089 = vmatpush1.bf16.msra.mxu0 %v1431
        %2090 = vmatprep.subr.bf16.mxu0 %v1464
        %2091 = vmatpush1.bf16.msra.mxu0 %v1463
        %2092 = vmatprep.subr.bf16.mxu0 %v1496
        %2093 = vmatpush1.bf16.msra.mxu0 %v1495
        %2094 = vmatprep.subr.bf16.mxu0 %v1528
        %2095 = vmatpush1.bf16.msra.mxu0 %v1527
        %2096 = vmatprep.subr.bf16.mxu0 %v1560
        %2097 = vmatpush1.bf16.msra.mxu0 %v1559
        %2098 = vmatprep.subr.bf16.mxu0 %v1592
        %2099 = vmatpush1.bf16.msra.mxu0 %v1591
        %2100 = vmatprep.subr.bf16.mxu0 %v1624
        %2101 = vmatpush1.bf16.msra.mxu0 %v1623
        %2102 = vmatprep.subr.bf16.mxu0 %v1656
        %2103 = vmatpush1.bf16.msra.mxu0 %v1655
        %2104 = vmatprep.subr.bf16.mxu0 %v1688
        %2105 = vmatpush1.bf16.msra.mxu0 %v1687
        %2106 = vmatprep.subr.bf16.mxu0 %v1720
        %2107 = vmatpush1.bf16.msra.mxu0 %v1719
        %2108 = vmatprep.subr.bf16.mxu0 %v1752
        %2109 = vmatpush1.bf16.msra.mxu0 %v1751
        %2110 = vmatprep.subr.bf16.mxu0 %v1784
        %2111 = vmatpush1.bf16.msra.mxu0 %v1783
        %2112 = vmatprep.subr.bf16.mxu0 %v1816
        %2113 = vmatpush1.bf16.msra.mxu0 %v1815
        %2114 = vmatprep.mubr.bf16.mxu0 %v1862
        %2115 = vmatmul.mubr.bf16.gmra.mrb[0].mxu0 %v1861
        %v2116 = vpop.f32.mrb[0].mxu0
        %v2117 = vadd.f32 %v2074, %v2116
        %v2118 = vpop.f32.mrb[0].mxu0
        %v2119 = vadd.f32 %v2076, %v2118
        %v2120 = vpop.f32.mrb[0].mxu0
        %v2121 = vadd.f32 %v2078, %v2120
        %v2122 = vpop.f32.mrb[0].mxu0
        %v2123 = vadd.f32 %v2080, %v2122
        %2124 = vdwg.mxu0
        %2125 = vmatprep.subr.bf16.mxu0 %v826
        %2126 = vmatpush1.bf16.msra.mxu0 %v825
        %2127 = vmatprep.subr.bf16.mxu0 %v858
        %2128 = vmatpush1.bf16.msra.mxu0 %v857
        %2129 = vmatprep.subr.bf16.mxu0 %v890
        %2130 = vmatpush1.bf16.msra.mxu0 %v889
        %2131 = vmatprep.subr.bf16.mxu0 %v922
        %2132 = vmatpush1.bf16.msra.mxu0 %v921
        %2133 = vmatprep.subr.bf16.mxu0 %v954
        %2134 = vmatpush1.bf16.msra.mxu0 %v953
        %2135 = vmatprep.subr.bf16.mxu0 %v986
        %2136 = vmatpush1.bf16.msra.mxu0 %v985
        %2137 = vmatprep.subr.bf16.mxu0 %v1018
        %2138 = vmatpush1.bf16.msra.mxu0 %v1017
        %2139 = vmatprep.subr.bf16.mxu0 %v1050
        %2140 = vmatpush1.bf16.msra.mxu0 %v1049
        %2141 = vmatprep.subr.bf16.mxu0 %v1082
        %2142 = vmatpush1.bf16.msra.mxu0 %v1081
        %2143 = vmatprep.subr.bf16.mxu0 %v1114
        %2144 = vmatpush1.bf16.msra.mxu0 %v1113
        %2145 = vmatprep.subr.bf16.mxu0 %v1146
        %2146 = vmatpush1.bf16.msra.mxu0 %v1145
        %2147 = vmatprep.subr.bf16.mxu0 %v1178
        %2148 = vmatpush1.bf16.msra.mxu0 %v1177
        %2149 = vmatprep.subr.bf16.mxu0 %v1210
        %2150 = vmatpush1.bf16.msra.mxu0 %v1209
        %2151 = vmatprep.subr.bf16.mxu0 %v1242
        %2152 = vmatpush1.bf16.msra.mxu0 %v1241
        %2153 = vmatprep.subr.bf16.mxu0 %v1274
        %2154 = vmatpush1.bf16.msra.mxu0 %v1273
        %2155 = vmatprep.subr.bf16.mxu0 %v1306
        %2156 = vmatpush1.bf16.msra.mxu0 %v1305
        %2157 = vmatprep.mubr.bf16.mxu0 %v1860
        %2158 = vmatmul.mubr.bf16.gmra.mrb[0].mxu0 %v1859
        %v2159 = vpop.f32.mrb[0].mxu0
        %v2160 = vadd.f32 0.0, %v2159
        %v2161 = vpop.f32.mrb[0].mxu0
        %v2162 = vadd.f32 0.0, %v2161
        %v2163 = vpop.f32.mrb[0].mxu0
        %v2164 = vadd.f32 0.0, %v2163
        %v2165 = vpop.f32.mrb[0].mxu0
        %v2166 = vadd.f32 0.0, %v2165
        %2167 = vdwg.mxu0
        %2168 = vmatprep.subr.bf16.mxu0 %v1338
        %2169 = vmatpush1.bf16.msra.mxu0 %v1337
        %2170 = vmatprep.subr.bf16.mxu0 %v1370
        %2171 = vmatpush1.bf16.msra.mxu0 %v1369
        %2172 = vmatprep.subr.bf16.mxu0 %v1402
        %2173 = vmatpush1.bf16.msra.mxu0 %v1401
        %2174 = vmatprep.subr.bf16.mxu0 %v1434
        %2175 = vmatpush1.bf16.msra.mxu0 %v1433
        %2176 = vmatprep.subr.bf16.mxu0 %v1466
        %2177 = vmatpush1.bf16.msra.mxu0 %v1465
        %2178 = vmatprep.subr.bf16.mxu0 %v1498
        %2179 = vmatpush1.bf16.msra.mxu0 %v1497
        %2180 = vmatprep.subr.bf16.mxu0 %v1530
        %2181 = vmatpush1.bf16.msra.mxu0 %v1529
        %2182 = vmatprep.subr.bf16.mxu0 %v1562
        %2183 = vmatpush1.bf16.msra.mxu0 %v1561
        %2184 = vmatprep.subr.bf16.mxu0 %v1594
        %2185 = vmatpush1.bf16.msra.mxu0 %v1593
        %2186 = vmatprep.subr.bf16.mxu0 %v1626
        %2187 = vmatpush1.bf16.msra.mxu0 %v1625
        %2188 = vmatprep.subr.bf16.mxu0 %v1658
        %2189 = vmatpush1.bf16.msra.mxu0 %v1657
        %2190 = vmatprep.subr.bf16.mxu0 %v1690
        %2191 = vmatpush1.bf16.msra.mxu0 %v1689
        %2192 = vmatprep.subr.bf16.mxu0 %v1722
        %2193 = vmatpush1.bf16.msra.mxu0 %v1721
        %2194 = vmatprep.subr.bf16.mxu0 %v1754
        %2195 = vmatpush1.bf16.msra.mxu0 %v1753
        %2196 = vmatprep.subr.bf16.mxu0 %v1786
        %2197 = vmatpush1.bf16.msra.mxu0 %v1785
        %2198 = vmatprep.subr.bf16.mxu0 %v1818
        %2199 = vmatpush1.bf16.msra.mxu0 %v1817
        %2200 = vmatprep.mubr.bf16.mxu0 %v1862
        %2201 = vmatmul.mubr.bf16.gmra.mrb[0].mxu0 %v1861
        %v2202 = vpop.f32.mrb[0].mxu0
        %v2203 = vadd.f32 %v2160, %v2202
        %v2204 = vpop.f32.mrb[0].mxu0
        %v2205 = vadd.f32 %v2162, %v2204
        %v2206 = vpop.f32.mrb[0].mxu0
        %v2207 = vadd.f32 %v2164, %v2206
        %v2208 = vpop.f32.mrb[0].mxu0
        %v2209 = vadd.f32 %v2166, %v2208
        %2210 = vdwg.mxu0
        %2211 = vmatprep.subr.bf16.mxu0 %v828
        %2212 = vmatpush1.bf16.msra.mxu0 %v827
        %2213 = vmatprep.subr.bf16.mxu0 %v860
        %2214 = vmatpush1.bf16.msra.mxu0 %v859
        %2215 = vmatprep.subr.bf16.mxu0 %v892
        %2216 = vmatpush1.bf16.msra.mxu0 %v891
        %2217 = vmatprep.subr.bf16.mxu0 %v924
        %2218 = vmatpush1.bf16.msra.mxu0 %v923
        %2219 = vmatprep.subr.bf16.mxu0 %v956
        %2220 = vmatpush1.bf16.msra.mxu0 %v955
        %2221 = vmatprep.subr.bf16.mxu0 %v988
        %2222 = vmatpush1.bf16.msra.mxu0 %v987
        %2223 = vmatprep.subr.bf16.mxu0 %v1020
        %2224 = vmatpush1.bf16.msra.mxu0 %v1019
        %2225 = vmatprep.subr.bf16.mxu0 %v1052
        %2226 = vmatpush1.bf16.msra.mxu0 %v1051
        %2227 = vmatprep.subr.bf16.mxu0 %v1084
        %2228 = vmatpush1.bf16.msra.mxu0 %v1083
        %2229 = vmatprep.subr.bf16.mxu0 %v1116
        %2230 = vmatpush1.bf16.msra.mxu0 %v1115
        %2231 = vmatprep.subr.bf16.mxu0 %v1148
        %2232 = vmatpush1.bf16.msra.mxu0 %v1147
        %2233 = vmatprep.subr.bf16.mxu0 %v1180
        %2234 = vmatpush1.bf16.msra.mxu0 %v1179
        %2235 = vmatprep.subr.bf16.mxu0 %v1212
        %2236 = vmatpush1.bf16.msra.mxu0 %v1211
        %2237 = vmatprep.subr.bf16.mxu0 %v1244
        %2238 = vmatpush1.bf16.msra.mxu0 %v1243
        %2239 = vmatprep.subr.bf16.mxu0 %v1276
        %2240 = vmatpush1.bf16.msra.mxu0 %v1275
        %2241 = vmatprep.subr.bf16.mxu0 %v1308
        %2242 = vmatpush1.bf16.msra.mxu0 %v1307
        %2243 = vmatprep.mubr.bf16.mxu0 %v1860
        %2244 = vmatmul.mubr.bf16.gmra.mrb[0].mxu0 %v1859
        %v2245 = vpop.f32.mrb[0].mxu0
        %v2246 = vadd.f32 0.0, %v2245
        %v2247 = vpop.f32.mrb[0].mxu0
        %v2248 = vadd.f32 0.0, %v2247
        %v2249 = vpop.f32.mrb[0].mxu0
        %v2250 = vadd.f32 0.0, %v2249
        %v2251 = vpop.f32.mrb[0].mxu0
        %v2252 = vadd.f32 0.0, %v2251
        %2253 = vdwg.mxu0
        %2254 = vmatprep.subr.bf16.mxu0 %v1340
        %2255 = vmatpush1.bf16.msra.mxu0 %v1339
        %2256 = vmatprep.subr.bf16.mxu0 %v1372
        %2257 = vmatpush1.bf16.msra.mxu0 %v1371
        %2258 = vmatprep.subr.bf16.mxu0 %v1404
        %2259 = vmatpush1.bf16.msra.mxu0 %v1403
        %2260 = vmatprep.subr.bf16.mxu0 %v1436
        %2261 = vmatpush1.bf16.msra.mxu0 %v1435
        %2262 = vmatprep.subr.bf16.mxu0 %v1468
        %2263 = vmatpush1.bf16.msra.mxu0 %v1467
        %2264 = vmatprep.subr.bf16.mxu0 %v1500
        %2265 = vmatpush1.bf16.msra.mxu0 %v1499
        %2266 = vmatprep.subr.bf16.mxu0 %v1532
        %2267 = vmatpush1.bf16.msra.mxu0 %v1531
        %2268 = vmatprep.subr.bf16.mxu0 %v1564
        %2269 = vmatpush1.bf16.msra.mxu0 %v1563
        %2270 = vmatprep.subr.bf16.mxu0 %v1596
        %2271 = vmatpush1.bf16.msra.mxu0 %v1595
        %2272 = vmatprep.subr.bf16.mxu0 %v1628
        %2273 = vmatpush1.bf16.msra.mxu0 %v1627
        %2274 = vmatprep.subr.bf16.mxu0 %v1660
        %2275 = vmatpush1.bf16.msra.mxu0 %v1659
        %2276 = vmatprep.subr.bf16.mxu0 %v1692
        %2277 = vmatpush1.bf16.msra.mxu0 %v1691
        %2278 = vmatprep.subr.bf16.mxu0 %v1724
        %2279 = vmatpush1.bf16.msra.mxu0 %v1723
        %2280 = vmatprep.subr.bf16.mxu0 %v1756
        %2281 = vmatpush1.bf16.msra.mxu0 %v1755
        %2282 = vmatprep.subr.bf16.mxu0 %v1788
        %2283 = vmatpush1.bf16.msra.mxu0 %v1787
        %2284 = vmatprep.subr.bf16.mxu0 %v1820
        %2285 = vmatpush1.bf16.msra.mxu0 %v1819
        %2286 = vmatprep.mubr.bf16.mxu0 %v1862
        %2287 = vmatmul.mubr.bf16.gmra.mrb[0].mxu0 %v1861
        %v2288 = vpop.f32.mrb[0].mxu0
        %v2289 = vadd.f32 %v2246, %v2288
        %v2290 = vpop.f32.mrb[0].mxu0
        %v2291 = vadd.f32 %v2248, %v2290
        %v2292 = vpop.f32.mrb[0].mxu0
        %v2293 = vadd.f32 %v2250, %v2292
        %v2294 = vpop.f32.mrb[0].mxu0
        %v2295 = vadd.f32 %v2252, %v2294
        %2296 = vdwg.mxu0
        %2297 = vmatprep.subr.bf16.mxu0 %v830
        %2298 = vmatpush1.bf16.msra.mxu0 %v829
        %2299 = vmatprep.subr.bf16.mxu0 %v862
        %2300 = vmatpush1.bf16.msra.mxu0 %v861
        %2301 = vmatprep.subr.bf16.mxu0 %v894
        %2302 = vmatpush1.bf16.msra.mxu0 %v893
        %2303 = vmatprep.subr.bf16.mxu0 %v926
        %2304 = vmatpush1.bf16.msra.mxu0 %v925
        %2305 = vmatprep.subr.bf16.mxu0 %v958
        %2306 = vmatpush1.bf16.msra.mxu0 %v957
        %2307 = vmatprep.subr.bf16.mxu0 %v990
        %2308 = vmatpush1.bf16.msra.mxu0 %v989
        %2309 = vmatprep.subr.bf16.mxu0 %v1022
        %2310 = vmatpush1.bf16.msra.mxu0 %v1021
        %2311 = vmatprep.subr.bf16.mxu0 %v1054
        %2312 = vmatpush1.bf16.msra.mxu0 %v1053
        %2313 = vmatprep.subr.bf16.mxu0 %v1086
        %2314 = vmatpush1.bf16.msra.mxu0 %v1085
        %2315 = vmatprep.subr.bf16.mxu0 %v1118
        %2316 = vmatpush1.bf16.msra.mxu0 %v1117
        %2317 = vmatprep.subr.bf16.mxu0 %v1150
        %2318 = vmatpush1.bf16.msra.mxu0 %v1149
        %2319 = vmatprep.subr.bf16.mxu0 %v1182
        %2320 = vmatpush1.bf16.msra.mxu0 %v1181
        %2321 = vmatprep.subr.bf16.mxu0 %v1214
        %2322 = vmatpush1.bf16.msra.mxu0 %v1213
        %2323 = vmatprep.subr.bf16.mxu0 %v1246
        %2324 = vmatpush1.bf16.msra.mxu0 %v1245
        %2325 = vmatprep.subr.bf16.mxu0 %v1278
        %2326 = vmatpush1.bf16.msra.mxu0 %v1277
        %2327 = vmatprep.subr.bf16.mxu0 %v1310
        %2328 = vmatpush1.bf16.msra.mxu0 %v1309
        %2329 = vmatprep.mubr.bf16.mxu0 %v1860
        %2330 = vmatmul.mubr.bf16.gmra.mrb[0].mxu0 %v1859
        %v2331 = vpop.f32.mrb[0].mxu0
        %v2332 = vadd.f32 0.0, %v2331
        %v2333 = vpop.f32.mrb[0].mxu0
        %v2334 = vadd.f32 0.0, %v2333
        %v2335 = vpop.f32.mrb[0].mxu0
        %v2336 = vadd.f32 0.0, %v2335
        %v2337 = vpop.f32.mrb[0].mxu0
        %v2338 = vadd.f32 0.0, %v2337
        %2339 = vdwg.mxu0
        %2340 = vmatprep.subr.bf16.mxu0 %v1342
        %2341 = vmatpush1.bf16.msra.mxu0 %v1341
        %2342 = vmatprep.subr.bf16.mxu0 %v1374
        %2343 = vmatpush1.bf16.msra.mxu0 %v1373
        %2344 = vmatprep.subr.bf16.mxu0 %v1406
        %2345 = vmatpush1.bf16.msra.mxu0 %v1405
        %2346 = vmatprep.subr.bf16.mxu0 %v1438
        %2347 = vmatpush1.bf16.msra.mxu0 %v1437
        %2348 = vmatprep.subr.bf16.mxu0 %v1470
        %2349 = vmatpush1.bf16.msra.mxu0 %v1469
        %2350 = vmatprep.subr.bf16.mxu0 %v1502
        %2351 = vmatpush1.bf16.msra.mxu0 %v1501
        %2352 = vmatprep.subr.bf16.mxu0 %v1534
        %2353 = vmatpush1.bf16.msra.mxu0 %v1533
        %2354 = vmatprep.subr.bf16.mxu0 %v1566
        %2355 = vmatpush1.bf16.msra.mxu0 %v1565
        %2356 = vmatprep.subr.bf16.mxu0 %v1598
        %2357 = vmatpush1.bf16.msra.mxu0 %v1597
        %2358 = vmatprep.subr.bf16.mxu0 %v1630
        %2359 = vmatpush1.bf16.msra.mxu0 %v1629
        %2360 = vmatprep.subr.bf16.mxu0 %v1662
        %2361 = vmatpush1.bf16.msra.mxu0 %v1661
        %2362 = vmatprep.subr.bf16.mxu0 %v1694
        %2363 = vmatpush1.bf16.msra.mxu0 %v1693
        %2364 = vmatprep.subr.bf16.mxu0 %v1726
        %2365 = vmatpush1.bf16.msra.mxu0 %v1725
        %2366 = vmatprep.subr.bf16.mxu0 %v1758
        %2367 = vmatpush1.bf16.msra.mxu0 %v1757
        %2368 = vmatprep.subr.bf16.mxu0 %v1790
        %2369 = vmatpush1.bf16.msra.mxu0 %v1789
        %2370 = vmatprep.subr.bf16.mxu0 %v1822
        %2371 = vmatpush1.bf16.msra.mxu0 %v1821
        %2372 = vmatprep.mubr.bf16.mxu0 %v1862
        %2373 = vmatmul.mubr.bf16.gmra.mrb[0].mxu0 %v1861
        %v2374 = vpop.f32.mrb[0].mxu0
        %v2375 = vadd.f32 %v2332, %v2374
        %v2376 = vpop.f32.mrb[0].mxu0
        %v2377 = vadd.f32 %v2334, %v2376
        %v2378 = vpop.f32.mrb[0].mxu0
        %v2379 = vadd.f32 %v2336, %v2378
        %v2380 = vpop.f32.mrb[0].mxu0
        %v2381 = vadd.f32 %v2338, %v2380
        %2382 = vdwg.mxu0
        %2383 = vmatprep.subr.bf16.mxu0 %v832
        %2384 = vmatpush1.bf16.msra.mxu0 %v831
        %2385 = vmatprep.subr.bf16.mxu0 %v864
        %2386 = vmatpush1.bf16.msra.mxu0 %v863
        %2387 = vmatprep.subr.bf16.mxu0 %v896
        %2388 = vmatpush1.bf16.msra.mxu0 %v895
        %2389 = vmatprep.subr.bf16.mxu0 %v928
        %2390 = vmatpush1.bf16.msra.mxu0 %v927
        %2391 = vmatprep.subr.bf16.mxu0 %v960
        %2392 = vmatpush1.bf16.msra.mxu0 %v959
        %2393 = vmatprep.subr.bf16.mxu0 %v992
        %2394 = vmatpush1.bf16.msra.mxu0 %v991
        %2395 = vmatprep.subr.bf16.mxu0 %v1024
        %2396 = vmatpush1.bf16.msra.mxu0 %v1023
        %2397 = vmatprep.subr.bf16.mxu0 %v1056
        %2398 = vmatpush1.bf16.msra.mxu0 %v1055
        %2399 = vmatprep.subr.bf16.mxu0 %v1088
        %2400 = vmatpush1.bf16.msra.mxu0 %v1087
        %2401 = vmatprep.subr.bf16.mxu0 %v1120
        %2402 = vmatpush1.bf16.msra.mxu0 %v1119
        %2403 = vmatprep.subr.bf16.mxu0 %v1152
        %2404 = vmatpush1.bf16.msra.mxu0 %v1151
        %2405 = vmatprep.subr.bf16.mxu0 %v1184
        %2406 = vmatpush1.bf16.msra.mxu0 %v1183
        %2407 = vmatprep.subr.bf16.mxu0 %v1216
        %2408 = vmatpush1.bf16.msra.mxu0 %v1215
        %2409 = vmatprep.subr.bf16.mxu0 %v1248
        %2410 = vmatpush1.bf16.msra.mxu0 %v1247
        %2411 = vmatprep.subr.bf16.mxu0 %v1280
        %2412 = vmatpush1.bf16.msra.mxu0 %v1279
        %2413 = vmatprep.subr.bf16.mxu0 %v1312
        %2414 = vmatpush1.bf16.msra.mxu0 %v1311
        %2415 = vmatprep.mubr.bf16.mxu0 %v1860
        %2416 = vmatmul.mubr.bf16.gmra.mrb[0].mxu0 %v1859
        %v2417 = vpop.f32.mrb[0].mxu0
        %v2418 = vadd.f32 0.0, %v2417
        %v2419 = vpop.f32.mrb[0].mxu0
        %v2420 = vadd.f32 0.0, %v2419
        %v2421 = vpop.f32.mrb[0].mxu0
        %v2422 = vadd.f32 0.0, %v2421
        %v2423 = vpop.f32.mrb[0].mxu0
        %v2424 = vadd.f32 0.0, %v2423
        %2425 = vdwg.mxu0
        %2426 = vmatprep.subr.bf16.mxu0 %v1344
        %2427 = vmatpush1.bf16.msra.mxu0 %v1343
        %2428 = vmatprep.subr.bf16.mxu0 %v1376
        %2429 = vmatpush1.bf16.msra.mxu0 %v1375
        %2430 = vmatprep.subr.bf16.mxu0 %v1408
        %2431 = vmatpush1.bf16.msra.mxu0 %v1407
        %2432 = vmatprep.subr.bf16.mxu0 %v1440
        %2433 = vmatpush1.bf16.msra.mxu0 %v1439
        %2434 = vmatprep.subr.bf16.mxu0 %v1472
        %2435 = vmatpush1.bf16.msra.mxu0 %v1471
        %2436 = vmatprep.subr.bf16.mxu0 %v1504
        %2437 = vmatpush1.bf16.msra.mxu0 %v1503
        %2438 = vmatprep.subr.bf16.mxu0 %v1536
        %2439 = vmatpush1.bf16.msra.mxu0 %v1535
        %2440 = vmatprep.subr.bf16.mxu0 %v1568
        %2441 = vmatpush1.bf16.msra.mxu0 %v1567
        %2442 = vmatprep.subr.bf16.mxu0 %v1600
        %2443 = vmatpush1.bf16.msra.mxu0 %v1599
        %2444 = vmatprep.subr.bf16.mxu0 %v1632
        %2445 = vmatpush1.bf16.msra.mxu0 %v1631
        %2446 = vmatprep.subr.bf16.mxu0 %v1664
        %2447 = vmatpush1.bf16.msra.mxu0 %v1663
        %2448 = vmatprep.subr.bf16.mxu0 %v1696
        %2449 = vmatpush1.bf16.msra.mxu0 %v1695
        %2450 = vmatprep.subr.bf16.mxu0 %v1728
        %2451 = vmatpush1.bf16.msra.mxu0 %v1727
        %2452 = vmatprep.subr.bf16.mxu0 %v1760
        %2453 = vmatpush1.bf16.msra.mxu0 %v1759
        %2454 = vmatprep.subr.bf16.mxu0 %v1792
        %2455 = vmatpush1.bf16.msra.mxu0 %v1791
        %2456 = vmatprep.subr.bf16.mxu0 %v1824
        %2457 = vmatpush1.bf16.msra.mxu0 %v1823
        %2458 = vmatprep.mubr.bf16.mxu0 %v1862
        %2459 = vmatmul.mubr.bf16.gmra.mrb[0].mxu0 %v1861
        %v2460 = vpop.f32.mrb[0].mxu0
        %v2461 = vadd.f32 %v2418, %v2460
        %v2462 = vpop.f32.mrb[0].mxu0
        %v2463 = vadd.f32 %v2420, %v2462
        %v2464 = vpop.f32.mrb[0].mxu0
        %v2465 = vadd.f32 %v2422, %v2464
        %v2466 = vpop.f32.mrb[0].mxu0
        %v2467 = vadd.f32 %v2424, %v2466
        %2468 = vdwg.mxu0
        %2469 = vmatprep.subr.bf16.mxu0 %v834
        %2470 = vmatpush1.bf16.msra.mxu0 %v833
        %2471 = vmatprep.subr.bf16.mxu0 %v866
        %2472 = vmatpush1.bf16.msra.mxu0 %v865
        %2473 = vmatprep.subr.bf16.mxu0 %v898
        %2474 = vmatpush1.bf16.msra.mxu0 %v897
        %2475 = vmatprep.subr.bf16.mxu0 %v930
        %2476 = vmatpush1.bf16.msra.mxu0 %v929
        %2477 = vmatprep.subr.bf16.mxu0 %v962
        %2478 = vmatpush1.bf16.msra.mxu0 %v961
        %2479 = vmatprep.subr.bf16.mxu0 %v994
        %2480 = vmatpush1.bf16.msra.mxu0 %v993
        %2481 = vmatprep.subr.bf16.mxu0 %v1026
        %2482 = vmatpush1.bf16.msra.mxu0 %v1025
        %2483 = vmatprep.subr.bf16.mxu0 %v1058
        %2484 = vmatpush1.bf16.msra.mxu0 %v1057
        %2485 = vmatprep.subr.bf16.mxu0 %v1090
        %2486 = vmatpush1.bf16.msra.mxu0 %v1089
        %2487 = vmatprep.subr.bf16.mxu0 %v1122
        %2488 = vmatpush1.bf16.msra.mxu0 %v1121
        %2489 = vmatprep.subr.bf16.mxu0 %v1154
        %2490 = vmatpush1.bf16.msra.mxu0 %v1153
        %2491 = vmatprep.subr.bf16.mxu0 %v1186
        %2492 = vmatpush1.bf16.msra.mxu0 %v1185
        %2493 = vmatprep.subr.bf16.mxu0 %v1218
        %2494 = vmatpush1.bf16.msra.mxu0 %v1217
        %2495 = vmatprep.subr.bf16.mxu0 %v1250
        %2496 = vmatpush1.bf16.msra.mxu0 %v1249
        %2497 = vmatprep.subr.bf16.mxu0 %v1282
        %2498 = vmatpush1.bf16.msra.mxu0 %v1281
        %2499 = vmatprep.subr.bf16.mxu0 %v1314
        %2500 = vmatpush1.bf16.msra.mxu0 %v1313
        %2501 = vmatprep.mubr.bf16.mxu0 %v1860
        %2502 = vmatmul.mubr.bf16.gmra.mrb[0].mxu0 %v1859
        %v2503 = vpop.f32.mrb[0].mxu0
        %v2504 = vadd.f32 0.0, %v2503
        %v2505 = vpop.f32.mrb[0].mxu0
        %v2506 = vadd.f32 0.0, %v2505
        %v2507 = vpop.f32.mrb[0].mxu0
        %v2508 = vadd.f32 0.0, %v2507
        %v2509 = vpop.f32.mrb[0].mxu0
        %v2510 = vadd.f32 0.0, %v2509
        %2511 = vdwg.mxu0
        %2512 = vmatprep.subr.bf16.mxu0 %v1346
        %2513 = vmatpush1.bf16.msra.mxu0 %v1345
        %2514 = vmatprep.subr.bf16.mxu0 %v1378
        %2515 = vmatpush1.bf16.msra.mxu0 %v1377
        %2516 = vmatprep.subr.bf16.mxu0 %v1410
        %2517 = vmatpush1.bf16.msra.mxu0 %v1409
        %2518 = vmatprep.subr.bf16.mxu0 %v1442
        %2519 = vmatpush1.bf16.msra.mxu0 %v1441
        %2520 = vmatprep.subr.bf16.mxu0 %v1474
        %2521 = vmatpush1.bf16.msra.mxu0 %v1473
        %2522 = vmatprep.subr.bf16.mxu0 %v1506
        %2523 = vmatpush1.bf16.msra.mxu0 %v1505
        %2524 = vmatprep.subr.bf16.mxu0 %v1538
        %2525 = vmatpush1.bf16.msra.mxu0 %v1537
        %2526 = vmatprep.subr.bf16.mxu0 %v1570
        %2527 = vmatpush1.bf16.msra.mxu0 %v1569
        %2528 = vmatprep.subr.bf16.mxu0 %v1602
        %2529 = vmatpush1.bf16.msra.mxu0 %v1601
        %2530 = vmatprep.subr.bf16.mxu0 %v1634
        %2531 = vmatpush1.bf16.msra.mxu0 %v1633
        %2532 = vmatprep.subr.bf16.mxu0 %v1666
        %2533 = vmatpush1.bf16.msra.mxu0 %v1665
        %2534 = vmatprep.subr.bf16.mxu0 %v1698
        %2535 = vmatpush1.bf16.msra.mxu0 %v1697
        %2536 = vmatprep.subr.bf16.mxu0 %v1730
        %2537 = vmatpush1.bf16.msra.mxu0 %v1729
        %2538 = vmatprep.subr.bf16.mxu0 %v1762
        %2539 = vmatpush1.bf16.msra.mxu0 %v1761
        %2540 = vmatprep.subr.bf16.mxu0 %v1794
        %2541 = vmatpush1.bf16.msra.mxu0 %v1793
        %2542 = vmatprep.subr.bf16.mxu0 %v1826
        %2543 = vmatpush1.bf16.msra.mxu0 %v1825
        %2544 = vmatprep.mubr.bf16.mxu0 %v1862
        %2545 = vmatmul.mubr.bf16.gmra.mrb[0].mxu0 %v1861
        %v2546 = vpop.f32.mrb[0].mxu0
        %v2547 = vadd.f32 %v2504, %v2546
        %v2548 = vpop.f32.mrb[0].mxu0
        %v2549 = vadd.f32 %v2506, %v2548
        %v2550 = vpop.f32.mrb[0].mxu0
        %v2551 = vadd.f32 %v2508, %v2550
        %v2552 = vpop.f32.mrb[0].mxu0
        %v2553 = vadd.f32 %v2510, %v2552
        %2554 = vdwg.mxu0
        %2555 = vmatprep.subr.bf16.mxu0 %v836
        %2556 = vmatpush1.bf16.msra.mxu0 %v835
        %2557 = vmatprep.subr.bf16.mxu0 %v868
        %2558 = vmatpush1.bf16.msra.mxu0 %v867
        %2559 = vmatprep.subr.bf16.mxu0 %v900
        %2560 = vmatpush1.bf16.msra.mxu0 %v899
        %2561 = vmatprep.subr.bf16.mxu0 %v932
        %2562 = vmatpush1.bf16.msra.mxu0 %v931
        %2563 = vmatprep.subr.bf16.mxu0 %v964
        %2564 = vmatpush1.bf16.msra.mxu0 %v963
        %2565 = vmatprep.subr.bf16.mxu0 %v996
        %2566 = vmatpush1.bf16.msra.mxu0 %v995
        %2567 = vmatprep.subr.bf16.mxu0 %v1028
        %2568 = vmatpush1.bf16.msra.mxu0 %v1027
        %2569 = vmatprep.subr.bf16.mxu0 %v1060
        %2570 = vmatpush1.bf16.msra.mxu0 %v1059
        %2571 = vmatprep.subr.bf16.mxu0 %v1092
        %2572 = vmatpush1.bf16.msra.mxu0 %v1091
        %2573 = vmatprep.subr.bf16.mxu0 %v1124
        %2574 = vmatpush1.bf16.msra.mxu0 %v1123
        %2575 = vmatprep.subr.bf16.mxu0 %v1156
        %2576 = vmatpush1.bf16.msra.mxu0 %v1155
        %2577 = vmatprep.subr.bf16.mxu0 %v1188
        %2578 = vmatpush1.bf16.msra.mxu0 %v1187
        %2579 = vmatprep.subr.bf16.mxu0 %v1220
        %2580 = vmatpush1.bf16.msra.mxu0 %v1219
        %2581 = vmatprep.subr.bf16.mxu0 %v1252
        %2582 = vmatpush1.bf16.msra.mxu0 %v1251
        %2583 = vmatprep.subr.bf16.mxu0 %v1284
        %2584 = vmatpush1.bf16.msra.mxu0 %v1283
        %2585 = vmatprep.subr.bf16.mxu0 %v1316
        %2586 = vmatpush1.bf16.msra.mxu0 %v1315
        %2587 = vmatprep.mubr.bf16.mxu0 %v1860
        %2588 = vmatmul.mubr.bf16.gmra.mrb[0].mxu0 %v1859
        %v2589 = vpop.f32.mrb[0].mxu0
        %v2590 = vadd.f32 0.0, %v2589
        %v2591 = vpop.f32.mrb[0].mxu0
        %v2592 = vadd.f32 0.0, %v2591
        %v2593 = vpop.f32.mrb[0].mxu0
        %v2594 = vadd.f32 0.0, %v2593
        %v2595 = vpop.f32.mrb[0].mxu0
        %v2596 = vadd.f32 0.0, %v2595
        %2597 = vdwg.mxu0
        %2598 = vmatprep.subr.bf16.mxu0 %v1348
        %2599 = vmatpush1.bf16.msra.mxu0 %v1347
        %2600 = vmatprep.subr.bf16.mxu0 %v1380
        %2601 = vmatpush1.bf16.msra.mxu0 %v1379
        %2602 = vmatprep.subr.bf16.mxu0 %v1412
        %2603 = vmatpush1.bf16.msra.mxu0 %v1411
        %2604 = vmatprep.subr.bf16.mxu0 %v1444
        %2605 = vmatpush1.bf16.msra.mxu0 %v1443
        %2606 = vmatprep.subr.bf16.mxu0 %v1476
        %2607 = vmatpush1.bf16.msra.mxu0 %v1475
        %2608 = vmatprep.subr.bf16.mxu0 %v1508
        %2609 = vmatpush1.bf16.msra.mxu0 %v1507
        %2610 = vmatprep.subr.bf16.mxu0 %v1540
        %2611 = vmatpush1.bf16.msra.mxu0 %v1539
        %2612 = vmatprep.subr.bf16.mxu0 %v1572
        %2613 = vmatpush1.bf16.msra.mxu0 %v1571
        %2614 = vmatprep.subr.bf16.mxu0 %v1604
        %2615 = vmatpush1.bf16.msra.mxu0 %v1603
        %2616 = vmatprep.subr.bf16.mxu0 %v1636
        %2617 = vmatpush1.bf16.msra.mxu0 %v1635
        %2618 = vmatprep.subr.bf16.mxu0 %v1668
        %2619 = vmatpush1.bf16.msra.mxu0 %v1667
        %2620 = vmatprep.subr.bf16.mxu0 %v1700
        %2621 = vmatpush1.bf16.msra.mxu0 %v1699
        %2622 = vmatprep.subr.bf16.mxu0 %v1732
        %2623 = vmatpush1.bf16.msra.mxu0 %v1731
        %2624 = vmatprep.subr.bf16.mxu0 %v1764
        %2625 = vmatpush1.bf16.msra.mxu0 %v1763
        %2626 = vmatprep.subr.bf16.mxu0 %v1796
        %2627 = vmatpush1.bf16.msra.mxu0 %v1795
        %2628 = vmatprep.subr.bf16.mxu0 %v1828
        %2629 = vmatpush1.bf16.msra.mxu0 %v1827
        %2630 = vmatprep.mubr.bf16.mxu0 %v1862
        %2631 = vmatmul.mubr.bf16.gmra.mrb[0].mxu0 %v1861
        %v2632 = vpop.f32.mrb[0].mxu0
        %v2633 = vadd.f32 %v2590, %v2632
        %v2634 = vpop.f32.mrb[0].mxu0
        %v2635 = vadd.f32 %v2592, %v2634
        %v2636 = vpop.f32.mrb[0].mxu0
        %v2637 = vadd.f32 %v2594, %v2636
        %v2638 = vpop.f32.mrb[0].mxu0
        %v2639 = vadd.f32 %v2596, %v2638
        %2640 = vdwg.mxu0
        %2641 = vmatprep.subr.bf16.mxu0 %v838
        %2642 = vmatpush1.bf16.msra.mxu0 %v837
        %2643 = vmatprep.subr.bf16.mxu0 %v870
        %2644 = vmatpush1.bf16.msra.mxu0 %v869
        %2645 = vmatprep.subr.bf16.mxu0 %v902
        %2646 = vmatpush1.bf16.msra.mxu0 %v901
        %2647 = vmatprep.subr.bf16.mxu0 %v934
        %2648 = vmatpush1.bf16.msra.mxu0 %v933
        %2649 = vmatprep.subr.bf16.mxu0 %v966
        %2650 = vmatpush1.bf16.msra.mxu0 %v965
        %2651 = vmatprep.subr.bf16.mxu0 %v998
        %2652 = vmatpush1.bf16.msra.mxu0 %v997
        %2653 = vmatprep.subr.bf16.mxu0 %v1030
        %2654 = vmatpush1.bf16.msra.mxu0 %v1029
        %2655 = vmatprep.subr.bf16.mxu0 %v1062
        %2656 = vmatpush1.bf16.msra.mxu0 %v1061
        %2657 = vmatprep.subr.bf16.mxu0 %v1094
        %2658 = vmatpush1.bf16.msra.mxu0 %v1093
        %2659 = vmatprep.subr.bf16.mxu0 %v1126
        %2660 = vmatpush1.bf16.msra.mxu0 %v1125
        %2661 = vmatprep.subr.bf16.mxu0 %v1158
        %2662 = vmatpush1.bf16.msra.mxu0 %v1157
        %2663 = vmatprep.subr.bf16.mxu0 %v1190
        %2664 = vmatpush1.bf16.msra.mxu0 %v1189
        %2665 = vmatprep.subr.bf16.mxu0 %v1222
        %2666 = vmatpush1.bf16.msra.mxu0 %v1221
        %2667 = vmatprep.subr.bf16.mxu0 %v1254
        %2668 = vmatpush1.bf16.msra.mxu0 %v1253
        %2669 = vmatprep.subr.bf16.mxu0 %v1286
        %2670 = vmatpush1.bf16.msra.mxu0 %v1285
        %2671 = vmatprep.subr.bf16.mxu0 %v1318
        %2672 = vmatpush1.bf16.msra.mxu0 %v1317
        %2673 = vmatprep.mubr.bf16.mxu0 %v1860
        %2674 = vmatmul.mubr.bf16.gmra.mrb[0].mxu0 %v1859
        %v2675 = vpop.f32.mrb[0].mxu0
        %v2676 = vadd.f32 0.0, %v2675
        %v2677 = vpop.f32.mrb[0].mxu0
        %v2678 = vadd.f32 0.0, %v2677
        %v2679 = vpop.f32.mrb[0].mxu0
        %v2680 = vadd.f32 0.0, %v2679
        %v2681 = vpop.f32.mrb[0].mxu0
        %v2682 = vadd.f32 0.0, %v2681
        %2683 = vdwg.mxu0
        %2684 = vmatprep.subr.bf16.mxu0 %v1350
        %2685 = vmatpush1.bf16.msra.mxu0 %v1349
        %2686 = vmatprep.subr.bf16.mxu0 %v1382
        %2687 = vmatpush1.bf16.msra.mxu0 %v1381
        %2688 = vmatprep.subr.bf16.mxu0 %v1414
        %2689 = vmatpush1.bf16.msra.mxu0 %v1413
        %2690 = vmatprep.subr.bf16.mxu0 %v1446
        %2691 = vmatpush1.bf16.msra.mxu0 %v1445
        %2692 = vmatprep.subr.bf16.mxu0 %v1478
        %2693 = vmatpush1.bf16.msra.mxu0 %v1477
        %2694 = vmatprep.subr.bf16.mxu0 %v1510
        %2695 = vmatpush1.bf16.msra.mxu0 %v1509
        %2696 = vmatprep.subr.bf16.mxu0 %v1542
        %2697 = vmatpush1.bf16.msra.mxu0 %v1541
        %2698 = vmatprep.subr.bf16.mxu0 %v1574
        %2699 = vmatpush1.bf16.msra.mxu0 %v1573
        %2700 = vmatprep.subr.bf16.mxu0 %v1606
        %2701 = vmatpush1.bf16.msra.mxu0 %v1605
        %2702 = vmatprep.subr.bf16.mxu0 %v1638
        %2703 = vmatpush1.bf16.msra.mxu0 %v1637
        %2704 = vmatprep.subr.bf16.mxu0 %v1670
        %2705 = vmatpush1.bf16.msra.mxu0 %v1669
        %2706 = vmatprep.subr.bf16.mxu0 %v1702
        %2707 = vmatpush1.bf16.msra.mxu0 %v1701
        %2708 = vmatprep.subr.bf16.mxu0 %v1734
        %2709 = vmatpush1.bf16.msra.mxu0 %v1733
        %2710 = vmatprep.subr.bf16.mxu0 %v1766
        %2711 = vmatpush1.bf16.msra.mxu0 %v1765
        %2712 = vmatprep.subr.bf16.mxu0 %v1798
        %2713 = vmatpush1.bf16.msra.mxu0 %v1797
        %2714 = vmatprep.subr.bf16.mxu0 %v1830
        %2715 = vmatpush1.bf16.msra.mxu0 %v1829
        %2716 = vmatprep.mubr.bf16.mxu0 %v1862
        %2717 = vmatmul.mubr.bf16.gmra.mrb[0].mxu0 %v1861
        %v2718 = vpop.f32.mrb[0].mxu0
        %v2719 = vadd.f32 %v2676, %v2718
        %v2720 = vpop.f32.mrb[0].mxu0
        %v2721 = vadd.f32 %v2678, %v2720
        %v2722 = vpop.f32.mrb[0].mxu0
        %v2723 = vadd.f32 %v2680, %v2722
        %v2724 = vpop.f32.mrb[0].mxu0
        %v2725 = vadd.f32 %v2682, %v2724
        %2726 = vdwg.mxu0
        %2727 = vmatprep.subr.bf16.mxu0 %v840
        %2728 = vmatpush1.bf16.msra.mxu0 %v839
        %2729 = vmatprep.subr.bf16.mxu0 %v872
        %2730 = vmatpush1.bf16.msra.mxu0 %v871
        %2731 = vmatprep.subr.bf16.mxu0 %v904
        %2732 = vmatpush1.bf16.msra.mxu0 %v903
        %2733 = vmatprep.subr.bf16.mxu0 %v936
        %2734 = vmatpush1.bf16.msra.mxu0 %v935
        %2735 = vmatprep.subr.bf16.mxu0 %v968
        %2736 = vmatpush1.bf16.msra.mxu0 %v967
        %2737 = vmatprep.subr.bf16.mxu0 %v1000
        %2738 = vmatpush1.bf16.msra.mxu0 %v999
        %2739 = vmatprep.subr.bf16.mxu0 %v1032
        %2740 = vmatpush1.bf16.msra.mxu0 %v1031
        %2741 = vmatprep.subr.bf16.mxu0 %v1064
        %2742 = vmatpush1.bf16.msra.mxu0 %v1063
        %2743 = vmatprep.subr.bf16.mxu0 %v1096
        %2744 = vmatpush1.bf16.msra.mxu0 %v1095
        %2745 = vmatprep.subr.bf16.mxu0 %v1128
        %2746 = vmatpush1.bf16.msra.mxu0 %v1127
        %2747 = vmatprep.subr.bf16.mxu0 %v1160
        %2748 = vmatpush1.bf16.msra.mxu0 %v1159
        %2749 = vmatprep.subr.bf16.mxu0 %v1192
        %2750 = vmatpush1.bf16.msra.mxu0 %v1191
        %2751 = vmatprep.subr.bf16.mxu0 %v1224
        %2752 = vmatpush1.bf16.msra.mxu0 %v1223
        %2753 = vmatprep.subr.bf16.mxu0 %v1256
        %2754 = vmatpush1.bf16.msra.mxu0 %v1255
        %2755 = vmatprep.subr.bf16.mxu0 %v1288
        %2756 = vmatpush1.bf16.msra.mxu0 %v1287
        %2757 = vmatprep.subr.bf16.mxu0 %v1320
        %2758 = vmatpush1.bf16.msra.mxu0 %v1319
        %2759 = vmatprep.mubr.bf16.mxu0 %v1860
        %2760 = vmatmul.mubr.bf16.gmra.mrb[0].mxu0 %v1859
        %v2761 = vpop.f32.mrb[0].mxu0
        %v2762 = vadd.f32 0.0, %v2761
        %v2763 = vpop.f32.mrb[0].mxu0
        %v2764 = vadd.f32 0.0, %v2763
        %v2765 = vpop.f32.mrb[0].mxu0
        %v2766 = vadd.f32 0.0, %v2765
        %v2767 = vpop.f32.mrb[0].mxu0
        %v2768 = vadd.f32 0.0, %v2767
        %2769 = vdwg.mxu0
        %2770 = vmatprep.subr.bf16.mxu0 %v1352
        %2771 = vmatpush1.bf16.msra.mxu0 %v1351
        %2772 = vmatprep.subr.bf16.mxu0 %v1384
        %2773 = vmatpush1.bf16.msra.mxu0 %v1383
        %2774 = vmatprep.subr.bf16.mxu0 %v1416
        %2775 = vmatpush1.bf16.msra.mxu0 %v1415
        %2776 = vmatprep.subr.bf16.mxu0 %v1448
        %2777 = vmatpush1.bf16.msra.mxu0 %v1447
        %2778 = vmatprep.subr.bf16.mxu0 %v1480
        %2779 = vmatpush1.bf16.msra.mxu0 %v1479
        %2780 = vmatprep.subr.bf16.mxu0 %v1512
        %2781 = vmatpush1.bf16.msra.mxu0 %v1511
        %2782 = vmatprep.subr.bf16.mxu0 %v1544
        %2783 = vmatpush1.bf16.msra.mxu0 %v1543
        %2784 = vmatprep.subr.bf16.mxu0 %v1576
        %2785 = vmatpush1.bf16.msra.mxu0 %v1575
        %2786 = vmatprep.subr.bf16.mxu0 %v1608
        %2787 = vmatpush1.bf16.msra.mxu0 %v1607
        %2788 = vmatprep.subr.bf16.mxu0 %v1640
        %2789 = vmatpush1.bf16.msra.mxu0 %v1639
        %2790 = vmatprep.subr.bf16.mxu0 %v1672
        %2791 = vmatpush1.bf16.msra.mxu0 %v1671
        %2792 = vmatprep.subr.bf16.mxu0 %v1704
        %2793 = vmatpush1.bf16.msra.mxu0 %v1703
        %2794 = vmatprep.subr.bf16.mxu0 %v1736
        %2795 = vmatpush1.bf16.msra.mxu0 %v1735
        %2796 = vmatprep.subr.bf16.mxu0 %v1768
        %2797 = vmatpush1.bf16.msra.mxu0 %v1767
        %2798 = vmatprep.subr.bf16.mxu0 %v1800
        %2799 = vmatpush1.bf16.msra.mxu0 %v1799
        %2800 = vmatprep.subr.bf16.mxu0 %v1832
        %2801 = vmatpush1.bf16.msra.mxu0 %v1831
        %2802 = vmatprep.mubr.bf16.mxu0 %v1862
        %2803 = vmatmul.mubr.bf16.gmra.mrb[0].mxu0 %v1861
        %v2804 = vpop.f32.mrb[0].mxu0
        %v2805 = vadd.f32 %v2762, %v2804
        %v2806 = vpop.f32.mrb[0].mxu0
        %v2807 = vadd.f32 %v2764, %v2806
        %v2808 = vpop.f32.mrb[0].mxu0
        %v2809 = vadd.f32 %v2766, %v2808
        %v2810 = vpop.f32.mrb[0].mxu0
        %v2811 = vadd.f32 %v2768, %v2810
        %2812 = vdwg.mxu0
        %2813 = vmatprep.subr.bf16.mxu0 %v842
        %2814 = vmatpush1.bf16.msra.mxu0 %v841
        %2815 = vmatprep.subr.bf16.mxu0 %v874
        %2816 = vmatpush1.bf16.msra.mxu0 %v873
        %2817 = vmatprep.subr.bf16.mxu0 %v906
        %2818 = vmatpush1.bf16.msra.mxu0 %v905
        %2819 = vmatprep.subr.bf16.mxu0 %v938
        %2820 = vmatpush1.bf16.msra.mxu0 %v937
        %2821 = vmatprep.subr.bf16.mxu0 %v970
        %2822 = vmatpush1.bf16.msra.mxu0 %v969
        %2823 = vmatprep.subr.bf16.mxu0 %v1002
        %2824 = vmatpush1.bf16.msra.mxu0 %v1001
        %2825 = vmatprep.subr.bf16.mxu0 %v1034
        %2826 = vmatpush1.bf16.msra.mxu0 %v1033
        %2827 = vmatprep.subr.bf16.mxu0 %v1066
        %2828 = vmatpush1.bf16.msra.mxu0 %v1065
        %2829 = vmatprep.subr.bf16.mxu0 %v1098
        %2830 = vmatpush1.bf16.msra.mxu0 %v1097
        %2831 = vmatprep.subr.bf16.mxu0 %v1130
        %2832 = vmatpush1.bf16.msra.mxu0 %v1129
        %2833 = vmatprep.subr.bf16.mxu0 %v1162
        %2834 = vmatpush1.bf16.msra.mxu0 %v1161
        %2835 = vmatprep.subr.bf16.mxu0 %v1194
        %2836 = vmatpush1.bf16.msra.mxu0 %v1193
        %2837 = vmatprep.subr.bf16.mxu0 %v1226
        %2838 = vmatpush1.bf16.msra.mxu0 %v1225
        %2839 = vmatprep.subr.bf16.mxu0 %v1258
        %2840 = vmatpush1.bf16.msra.mxu0 %v1257
        %2841 = vmatprep.subr.bf16.mxu0 %v1290
        %2842 = vmatpush1.bf16.msra.mxu0 %v1289
        %2843 = vmatprep.subr.bf16.mxu0 %v1322
        %2844 = vmatpush1.bf16.msra.mxu0 %v1321
        %2845 = vmatprep.mubr.bf16.mxu0 %v1860
        %2846 = vmatmul.mubr.bf16.gmra.mrb[0].mxu0 %v1859
        %v2847 = vpop.f32.mrb[0].mxu0
        %v2848 = vadd.f32 0.0, %v2847
        %v2849 = vpop.f32.mrb[0].mxu0
        %v2850 = vadd.f32 0.0, %v2849
        %v2851 = vpop.f32.mrb[0].mxu0
        %v2852 = vadd.f32 0.0, %v2851
        %v2853 = vpop.f32.mrb[0].mxu0
        %v2854 = vadd.f32 0.0, %v2853
        %2855 = vdwg.mxu0
        %2856 = vmatprep.subr.bf16.mxu0 %v1354
        %2857 = vmatpush1.bf16.msra.mxu0 %v1353
        %2858 = vmatprep.subr.bf16.mxu0 %v1386
        %2859 = vmatpush1.bf16.msra.mxu0 %v1385
        %2860 = vmatprep.subr.bf16.mxu0 %v1418
        %2861 = vmatpush1.bf16.msra.mxu0 %v1417
        %2862 = vmatprep.subr.bf16.mxu0 %v1450
        %2863 = vmatpush1.bf16.msra.mxu0 %v1449
        %2864 = vmatprep.subr.bf16.mxu0 %v1482
        %2865 = vmatpush1.bf16.msra.mxu0 %v1481
        %2866 = vmatprep.subr.bf16.mxu0 %v1514
        %2867 = vmatpush1.bf16.msra.mxu0 %v1513
        %2868 = vmatprep.subr.bf16.mxu0 %v1546
        %2869 = vmatpush1.bf16.msra.mxu0 %v1545
        %2870 = vmatprep.subr.bf16.mxu0 %v1578
        %2871 = vmatpush1.bf16.msra.mxu0 %v1577
        %2872 = vmatprep.subr.bf16.mxu0 %v1610
        %2873 = vmatpush1.bf16.msra.mxu0 %v1609
        %2874 = vmatprep.subr.bf16.mxu0 %v1642
        %2875 = vmatpush1.bf16.msra.mxu0 %v1641
        %2876 = vmatprep.subr.bf16.mxu0 %v1674
        %2877 = vmatpush1.bf16.msra.mxu0 %v1673
        %2878 = vmatprep.subr.bf16.mxu0 %v1706
        %2879 = vmatpush1.bf16.msra.mxu0 %v1705
        %2880 = vmatprep.subr.bf16.mxu0 %v1738
        %2881 = vmatpush1.bf16.msra.mxu0 %v1737
        %2882 = vmatprep.subr.bf16.mxu0 %v1770
        %2883 = vmatpush1.bf16.msra.mxu0 %v1769
        %2884 = vmatprep.subr.bf16.mxu0 %v1802
        %2885 = vmatpush1.bf16.msra.mxu0 %v1801
        %2886 = vmatprep.subr.bf16.mxu0 %v1834
        %2887 = vmatpush1.bf16.msra.mxu0 %v1833
        %2888 = vmatprep.mubr.bf16.mxu0 %v1862
        %2889 = vmatmul.mubr.bf16.gmra.mrb[0].mxu0 %v1861
        %v2890 = vpop.f32.mrb[0].mxu0
        %v2891 = vadd.f32 %v2848, %v2890
        %v2892 = vpop.f32.mrb[0].mxu0
        %v2893 = vadd.f32 %v2850, %v2892
        %v2894 = vpop.f32.mrb[0].mxu0
        %v2895 = vadd.f32 %v2852, %v2894
        %v2896 = vpop.f32.mrb[0].mxu0
        %v2897 = vadd.f32 %v2854, %v2896
        %2898 = vdwg.mxu0
        %2899 = vmatprep.subr.bf16.mxu0 %v844
        %2900 = vmatpush1.bf16.msra.mxu0 %v843
        %2901 = vmatprep.subr.bf16.mxu0 %v876
        %2902 = vmatpush1.bf16.msra.mxu0 %v875
        %2903 = vmatprep.subr.bf16.mxu0 %v908
        %2904 = vmatpush1.bf16.msra.mxu0 %v907
        %2905 = vmatprep.subr.bf16.mxu0 %v940
        %2906 = vmatpush1.bf16.msra.mxu0 %v939
        %2907 = vmatprep.subr.bf16.mxu0 %v972
        %2908 = vmatpush1.bf16.msra.mxu0 %v971
        %2909 = vmatprep.subr.bf16.mxu0 %v1004
        %2910 = vmatpush1.bf16.msra.mxu0 %v1003
        %2911 = vmatprep.subr.bf16.mxu0 %v1036
        %2912 = vmatpush1.bf16.msra.mxu0 %v1035
        %2913 = vmatprep.subr.bf16.mxu0 %v1068
        %2914 = vmatpush1.bf16.msra.mxu0 %v1067
        %2915 = vmatprep.subr.bf16.mxu0 %v1100
        %2916 = vmatpush1.bf16.msra.mxu0 %v1099
        %2917 = vmatprep.subr.bf16.mxu0 %v1132
        %2918 = vmatpush1.bf16.msra.mxu0 %v1131
        %2919 = vmatprep.subr.bf16.mxu0 %v1164
        %2920 = vmatpush1.bf16.msra.mxu0 %v1163
        %2921 = vmatprep.subr.bf16.mxu0 %v1196
        %2922 = vmatpush1.bf16.msra.mxu0 %v1195
        %2923 = vmatprep.subr.bf16.mxu0 %v1228
        %2924 = vmatpush1.bf16.msra.mxu0 %v1227
        %2925 = vmatprep.subr.bf16.mxu0 %v1260
        %2926 = vmatpush1.bf16.msra.mxu0 %v1259
        %2927 = vmatprep.subr.bf16.mxu0 %v1292
        %2928 = vmatpush1.bf16.msra.mxu0 %v1291
        %2929 = vmatprep.subr.bf16.mxu0 %v1324
        %2930 = vmatpush1.bf16.msra.mxu0 %v1323
        %2931 = vmatprep.mubr.bf16.mxu0 %v1860
        %2932 = vmatmul.mubr.bf16.gmra.mrb[0].mxu0 %v1859
        %v2933 = vpop.f32.mrb[0].mxu0
        %v2934 = vadd.f32 0.0, %v2933
        %v2935 = vpop.f32.mrb[0].mxu0
        %v2936 = vadd.f32 0.0, %v2935
        %v2937 = vpop.f32.mrb[0].mxu0
        %v2938 = vadd.f32 0.0, %v2937
        %v2939 = vpop.f32.mrb[0].mxu0
        %v2940 = vadd.f32 0.0, %v2939
        %2941 = vdwg.mxu0
        %2942 = vmatprep.subr.bf16.mxu0 %v1356
        %2943 = vmatpush1.bf16.msra.mxu0 %v1355
        %2944 = vmatprep.subr.bf16.mxu0 %v1388
        %2945 = vmatpush1.bf16.msra.mxu0 %v1387
        %2946 = vmatprep.subr.bf16.mxu0 %v1420
        %2947 = vmatpush1.bf16.msra.mxu0 %v1419
        %2948 = vmatprep.subr.bf16.mxu0 %v1452
        %2949 = vmatpush1.bf16.msra.mxu0 %v1451
        %2950 = vmatprep.subr.bf16.mxu0 %v1484
        %2951 = vmatpush1.bf16.msra.mxu0 %v1483
        %2952 = vmatprep.subr.bf16.mxu0 %v1516
        %2953 = vmatpush1.bf16.msra.mxu0 %v1515
        %2954 = vmatprep.subr.bf16.mxu0 %v1548
        %2955 = vmatpush1.bf16.msra.mxu0 %v1547
        %2956 = vmatprep.subr.bf16.mxu0 %v1580
        %2957 = vmatpush1.bf16.msra.mxu0 %v1579
        %2958 = vmatprep.subr.bf16.mxu0 %v1612
        %2959 = vmatpush1.bf16.msra.mxu0 %v1611
        %2960 = vmatprep.subr.bf16.mxu0 %v1644
        %2961 = vmatpush1.bf16.msra.mxu0 %v1643
        %2962 = vmatprep.subr.bf16.mxu0 %v1676
        %2963 = vmatpush1.bf16.msra.mxu0 %v1675
        %2964 = vmatprep.subr.bf16.mxu0 %v1708
        %2965 = vmatpush1.bf16.msra.mxu0 %v1707
        %2966 = vmatprep.subr.bf16.mxu0 %v1740
        %2967 = vmatpush1.bf16.msra.mxu0 %v1739
        %2968 = vmatprep.subr.bf16.mxu0 %v1772
        %2969 = vmatpush1.bf16.msra.mxu0 %v1771
        %2970 = vmatprep.subr.bf16.mxu0 %v1804
        %2971 = vmatpush1.bf16.msra.mxu0 %v1803
        %2972 = vmatprep.subr.bf16.mxu0 %v1836
        %2973 = vmatpush1.bf16.msra.mxu0 %v1835
        %2974 = vmatprep.mubr.bf16.mxu0 %v1862
        %2975 = vmatmul.mubr.bf16.gmra.mrb[0].mxu0 %v1861
        %v2976 = vpop.f32.mrb[0].mxu0
        %v2977 = vadd.f32 %v2934, %v2976
        %v2978 = vpop.f32.mrb[0].mxu0
        %v2979 = vadd.f32 %v2936, %v2978
        %v2980 = vpop.f32.mrb[0].mxu0
        %v2981 = vadd.f32 %v2938, %v2980
        %v2982 = vpop.f32.mrb[0].mxu0
        %v2983 = vadd.f32 %v2940, %v2982
        %2984 = vdwg.mxu0
        %2985 = vmatprep.subr.bf16.mxu0 %v846
        %2986 = vmatpush1.bf16.msra.mxu0 %v845
        %2987 = vmatprep.subr.bf16.mxu0 %v878
        %2988 = vmatpush1.bf16.msra.mxu0 %v877
        %2989 = vmatprep.subr.bf16.mxu0 %v910
        %2990 = vmatpush1.bf16.msra.mxu0 %v909
        %2991 = vmatprep.subr.bf16.mxu0 %v942
        %2992 = vmatpush1.bf16.msra.mxu0 %v941
        %2993 = vmatprep.subr.bf16.mxu0 %v974
        %2994 = vmatpush1.bf16.msra.mxu0 %v973
        %2995 = vmatprep.subr.bf16.mxu0 %v1006
        %2996 = vmatpush1.bf16.msra.mxu0 %v1005
        %2997 = vmatprep.subr.bf16.mxu0 %v1038
        %2998 = vmatpush1.bf16.msra.mxu0 %v1037
        %2999 = vmatprep.subr.bf16.mxu0 %v1070
        %3000 = vmatpush1.bf16.msra.mxu0 %v1069
        %3001 = vmatprep.subr.bf16.mxu0 %v1102
        %3002 = vmatpush1.bf16.msra.mxu0 %v1101
        %3003 = vmatprep.subr.bf16.mxu0 %v1134
        %3004 = vmatpush1.bf16.msra.mxu0 %v1133
        %3005 = vmatprep.subr.bf16.mxu0 %v1166
        %3006 = vmatpush1.bf16.msra.mxu0 %v1165
        %3007 = vmatprep.subr.bf16.mxu0 %v1198
        %3008 = vmatpush1.bf16.msra.mxu0 %v1197
        %3009 = vmatprep.subr.bf16.mxu0 %v1230
        %3010 = vmatpush1.bf16.msra.mxu0 %v1229
        %3011 = vmatprep.subr.bf16.mxu0 %v1262
        %3012 = vmatpush1.bf16.msra.mxu0 %v1261
        %3013 = vmatprep.subr.bf16.mxu0 %v1294
        %3014 = vmatpush1.bf16.msra.mxu0 %v1293
        %3015 = vmatprep.subr.bf16.mxu0 %v1326
        %3016 = vmatpush1.bf16.msra.mxu0 %v1325
        %3017 = vmatprep.mubr.bf16.mxu0 %v1860
        %3018 = vmatmul.mubr.bf16.gmra.mrb[0].mxu0 %v1859
        %v3019 = vpop.f32.mrb[0].mxu0
        %v3020 = vadd.f32 0.0, %v3019
        %v3021 = vpop.f32.mrb[0].mxu0
        %v3022 = vadd.f32 0.0, %v3021
        %v3023 = vpop.f32.mrb[0].mxu0
        %v3024 = vadd.f32 0.0, %v3023
        %v3025 = vpop.f32.mrb[0].mxu0
        %v3026 = vadd.f32 0.0, %v3025
        %3027 = vdwg.mxu0
        %3028 = vmatprep.subr.bf16.mxu0 %v1358
        %3029 = vmatpush1.bf16.msra.mxu0 %v1357
        %3030 = vmatprep.subr.bf16.mxu0 %v1390
        %3031 = vmatpush1.bf16.msra.mxu0 %v1389
        %3032 = vmatprep.subr.bf16.mxu0 %v1422
        %3033 = vmatpush1.bf16.msra.mxu0 %v1421
        %3034 = vmatprep.subr.bf16.mxu0 %v1454
        %3035 = vmatpush1.bf16.msra.mxu0 %v1453
        %3036 = vmatprep.subr.bf16.mxu0 %v1486
        %3037 = vmatpush1.bf16.msra.mxu0 %v1485
        %3038 = vmatprep.subr.bf16.mxu0 %v1518
        %3039 = vmatpush1.bf16.msra.mxu0 %v1517
        %3040 = vmatprep.subr.bf16.mxu0 %v1550
        %3041 = vmatpush1.bf16.msra.mxu0 %v1549
        %3042 = vmatprep.subr.bf16.mxu0 %v1582
        %3043 = vmatpush1.bf16.msra.mxu0 %v1581
        %3044 = vmatprep.subr.bf16.mxu0 %v1614
        %3045 = vmatpush1.bf16.msra.mxu0 %v1613
        %3046 = vmatprep.subr.bf16.mxu0 %v1646
        %3047 = vmatpush1.bf16.msra.mxu0 %v1645
        %3048 = vmatprep.subr.bf16.mxu0 %v1678
        %3049 = vmatpush1.bf16.msra.mxu0 %v1677
        %3050 = vmatprep.subr.bf16.mxu0 %v1710
        %3051 = vmatpush1.bf16.msra.mxu0 %v1709
        %3052 = vmatprep.subr.bf16.mxu0 %v1742
        %3053 = vmatpush1.bf16.msra.mxu0 %v1741
        %3054 = vmatprep.subr.bf16.mxu0 %v1774
        %3055 = vmatpush1.bf16.msra.mxu0 %v1773
        %3056 = vmatprep.subr.bf16.mxu0 %v1806
        %3057 = vmatpush1.bf16.msra.mxu0 %v1805
        %3058 = vmatprep.subr.bf16.mxu0 %v1838
        %3059 = vmatpush1.bf16.msra.mxu0 %v1837
        %3060 = vmatprep.mubr.bf16.mxu0 %v1862
        %3061 = vmatmul.mubr.bf16.gmra.mrb[0].mxu0 %v1861
        %v3062 = vpop.f32.mrb[0].mxu0
        %v3063 = vadd.f32 %v3020, %v3062
        %v3064 = vpop.f32.mrb[0].mxu0
        %v3065 = vadd.f32 %v3022, %v3064
        %v3066 = vpop.f32.mrb[0].mxu0
        %v3067 = vadd.f32 %v3024, %v3066
        %v3068 = vpop.f32.mrb[0].mxu0
        %v3069 = vadd.f32 %v3026, %v3068
        %3070 = vdwg.mxu0
        %3071 = vmatprep.subr.bf16.mxu0 %v848
        %3072 = vmatpush1.bf16.msra.mxu0 %v847
        %3073 = vmatprep.subr.bf16.mxu0 %v880
        %3074 = vmatpush1.bf16.msra.mxu0 %v879
        %3075 = vmatprep.subr.bf16.mxu0 %v912
        %3076 = vmatpush1.bf16.msra.mxu0 %v911
        %3077 = vmatprep.subr.bf16.mxu0 %v944
        %3078 = vmatpush1.bf16.msra.mxu0 %v943
        %3079 = vmatprep.subr.bf16.mxu0 %v976
        %3080 = vmatpush1.bf16.msra.mxu0 %v975
        %3081 = vmatprep.subr.bf16.mxu0 %v1008
        %3082 = vmatpush1.bf16.msra.mxu0 %v1007
        %3083 = vmatprep.subr.bf16.mxu0 %v1040
        %3084 = vmatpush1.bf16.msra.mxu0 %v1039
        %3085 = vmatprep.subr.bf16.mxu0 %v1072
        %3086 = vmatpush1.bf16.msra.mxu0 %v1071
        %3087 = vmatprep.subr.bf16.mxu0 %v1104
        %3088 = vmatpush1.bf16.msra.mxu0 %v1103
        %3089 = vmatprep.subr.bf16.mxu0 %v1136
        %3090 = vmatpush1.bf16.msra.mxu0 %v1135
        %3091 = vmatprep.subr.bf16.mxu0 %v1168
        %3092 = vmatpush1.bf16.msra.mxu0 %v1167
        %3093 = vmatprep.subr.bf16.mxu0 %v1200
        %3094 = vmatpush1.bf16.msra.mxu0 %v1199
        %3095 = vmatprep.subr.bf16.mxu0 %v1232
        %3096 = vmatpush1.bf16.msra.mxu0 %v1231
        %3097 = vmatprep.subr.bf16.mxu0 %v1264
        %3098 = vmatpush1.bf16.msra.mxu0 %v1263
        %3099 = vmatprep.subr.bf16.mxu0 %v1296
        %3100 = vmatpush1.bf16.msra.mxu0 %v1295
        %3101 = vmatprep.subr.bf16.mxu0 %v1328
        %3102 = vmatpush1.bf16.msra.mxu0 %v1327
        %3103 = vmatprep.mubr.bf16.mxu0 %v1860
        %3104 = vmatmul.mubr.bf16.gmra.mrb[0].mxu0 %v1859
        %v3105 = vpop.f32.mrb[0].mxu0
        %v3106 = vadd.f32 0.0, %v3105
        %v3107 = vpop.f32.mrb[0].mxu0
        %v3108 = vadd.f32 0.0, %v3107
        %v3109 = vpop.f32.mrb[0].mxu0
        %v3110 = vadd.f32 0.0, %v3109
        %v3111 = vpop.f32.mrb[0].mxu0
        %v3112 = vadd.f32 0.0, %v3111
        %3113 = vdwg.mxu0
        %3114 = vmatprep.subr.bf16.mxu0 %v1360
        %3115 = vmatpush1.bf16.msra.mxu0 %v1359
        %3116 = vmatprep.subr.bf16.mxu0 %v1392
        %3117 = vmatpush1.bf16.msra.mxu0 %v1391
        %3118 = vmatprep.subr.bf16.mxu0 %v1424
        %3119 = vmatpush1.bf16.msra.mxu0 %v1423
        %3120 = vmatprep.subr.bf16.mxu0 %v1456
        %3121 = vmatpush1.bf16.msra.mxu0 %v1455
        %3122 = vmatprep.subr.bf16.mxu0 %v1488
        %3123 = vmatpush1.bf16.msra.mxu0 %v1487
        %3124 = vmatprep.subr.bf16.mxu0 %v1520
        %3125 = vmatpush1.bf16.msra.mxu0 %v1519
        %3126 = vmatprep.subr.bf16.mxu0 %v1552
        %3127 = vmatpush1.bf16.msra.mxu0 %v1551
        %3128 = vmatprep.subr.bf16.mxu0 %v1584
        %3129 = vmatpush1.bf16.msra.mxu0 %v1583
        %3130 = vmatprep.subr.bf16.mxu0 %v1616
        %3131 = vmatpush1.bf16.msra.mxu0 %v1615
        %3132 = vmatprep.subr.bf16.mxu0 %v1648
        %3133 = vmatpush1.bf16.msra.mxu0 %v1647
        %3134 = vmatprep.subr.bf16.mxu0 %v1680
        %3135 = vmatpush1.bf16.msra.mxu0 %v1679
        %3136 = vmatprep.subr.bf16.mxu0 %v1712
        %3137 = vmatpush1.bf16.msra.mxu0 %v1711
        %3138 = vmatprep.subr.bf16.mxu0 %v1744
        %3139 = vmatpush1.bf16.msra.mxu0 %v1743
        %3140 = vmatprep.subr.bf16.mxu0 %v1776
        %3141 = vmatpush1.bf16.msra.mxu0 %v1775
        %3142 = vmatprep.subr.bf16.mxu0 %v1808
        %3143 = vmatpush1.bf16.msra.mxu0 %v1807
        %3144 = vmatprep.subr.bf16.mxu0 %v1840
        %3145 = vmatpush1.bf16.msra.mxu0 %v1839
        %3146 = vmatprep.mubr.bf16.mxu0 %v1862
        %3147 = vmatmul.mubr.bf16.gmra.mrb[0].mxu0 %v1861
        %v3148 = vpop.f32.mrb[0].mxu0
        %v3149 = vadd.f32 %v3106, %v3148
        %v3150 = vpop.f32.mrb[0].mxu0
        %v3151 = vadd.f32 %v3108, %v3150
        %v3152 = vpop.f32.mrb[0].mxu0
        %v3153 = vadd.f32 %v3110, %v3152
        %v3154 = vpop.f32.mrb[0].mxu0
        %v3155 = vadd.f32 %v3112, %v3154
        %3156 = vdwg.mxu0
        %3157 = vmatprep.subr.bf16.mxu0 %v850
        %3158 = vmatpush1.bf16.msra.mxu0 %v849
        %3159 = vmatprep.subr.bf16.mxu0 %v882
        %3160 = vmatpush1.bf16.msra.mxu0 %v881
        %3161 = vmatprep.subr.bf16.mxu0 %v914
        %3162 = vmatpush1.bf16.msra.mxu0 %v913
        %3163 = vmatprep.subr.bf16.mxu0 %v946
        %3164 = vmatpush1.bf16.msra.mxu0 %v945
        %3165 = vmatprep.subr.bf16.mxu0 %v978
        %3166 = vmatpush1.bf16.msra.mxu0 %v977
        %3167 = vmatprep.subr.bf16.mxu0 %v1010
        %3168 = vmatpush1.bf16.msra.mxu0 %v1009
        %3169 = vmatprep.subr.bf16.mxu0 %v1042
        %3170 = vmatpush1.bf16.msra.mxu0 %v1041
        %3171 = vmatprep.subr.bf16.mxu0 %v1074
        %3172 = vmatpush1.bf16.msra.mxu0 %v1073
        %3173 = vmatprep.subr.bf16.mxu0 %v1106
        %3174 = vmatpush1.bf16.msra.mxu0 %v1105
        %3175 = vmatprep.subr.bf16.mxu0 %v1138
        %3176 = vmatpush1.bf16.msra.mxu0 %v1137
        %3177 = vmatprep.subr.bf16.mxu0 %v1170
        %3178 = vmatpush1.bf16.msra.mxu0 %v1169
        %3179 = vmatprep.subr.bf16.mxu0 %v1202
        %3180 = vmatpush1.bf16.msra.mxu0 %v1201
        %3181 = vmatprep.subr.bf16.mxu0 %v1234
        %3182 = vmatpush1.bf16.msra.mxu0 %v1233
        %3183 = vmatprep.subr.bf16.mxu0 %v1266
        %3184 = vmatpush1.bf16.msra.mxu0 %v1265
        %3185 = vmatprep.subr.bf16.mxu0 %v1298
        %3186 = vmatpush1.bf16.msra.mxu0 %v1297
        %3187 = vmatprep.subr.bf16.mxu0 %v1330
        %3188 = vmatpush1.bf16.msra.mxu0 %v1329
        %3189 = vmatprep.mubr.bf16.mxu0 %v1860
        %3190 = vmatmul.mubr.bf16.gmra.mrb[0].mxu0 %v1859
        %v3191 = vpop.f32.mrb[0].mxu0
        %v3192 = vadd.f32 0.0, %v3191
        %v3193 = vpop.f32.mrb[0].mxu0
        %v3194 = vadd.f32 0.0, %v3193
        %v3195 = vpop.f32.mrb[0].mxu0
        %v3196 = vadd.f32 0.0, %v3195
        %v3197 = vpop.f32.mrb[0].mxu0
        %v3198 = vadd.f32 0.0, %v3197
        %3199 = vdwg.mxu0
        %3200 = vmatprep.subr.bf16.mxu0 %v1362
        %3201 = vmatpush1.bf16.msra.mxu0 %v1361
        %3202 = vmatprep.subr.bf16.mxu0 %v1394
        %3203 = vmatpush1.bf16.msra.mxu0 %v1393
        %3204 = vmatprep.subr.bf16.mxu0 %v1426
        %3205 = vmatpush1.bf16.msra.mxu0 %v1425
        %3206 = vmatprep.subr.bf16.mxu0 %v1458
        %3207 = vmatpush1.bf16.msra.mxu0 %v1457
        %3208 = vmatprep.subr.bf16.mxu0 %v1490
        %3209 = vmatpush1.bf16.msra.mxu0 %v1489
        %3210 = vmatprep.subr.bf16.mxu0 %v1522
        %3211 = vmatpush1.bf16.msra.mxu0 %v1521
        %3212 = vmatprep.subr.bf16.mxu0 %v1554
        %3213 = vmatpush1.bf16.msra.mxu0 %v1553
        %3214 = vmatprep.subr.bf16.mxu0 %v1586
        %3215 = vmatpush1.bf16.msra.mxu0 %v1585
        %3216 = vmatprep.subr.bf16.mxu0 %v1618
        %3217 = vmatpush1.bf16.msra.mxu0 %v1617
        %3218 = vmatprep.subr.bf16.mxu0 %v1650
        %3219 = vmatpush1.bf16.msra.mxu0 %v1649
        %3220 = vmatprep.subr.bf16.mxu0 %v1682
        %3221 = vmatpush1.bf16.msra.mxu0 %v1681
        %3222 = vmatprep.subr.bf16.mxu0 %v1714
        %3223 = vmatpush1.bf16.msra.mxu0 %v1713
        %3224 = vmatprep.subr.bf16.mxu0 %v1746
        %3225 = vmatpush1.bf16.msra.mxu0 %v1745
        %3226 = vmatprep.subr.bf16.mxu0 %v1778
        %3227 = vmatpush1.bf16.msra.mxu0 %v1777
        %3228 = vmatprep.subr.bf16.mxu0 %v1810
        %3229 = vmatpush1.bf16.msra.mxu0 %v1809
        %3230 = vmatprep.subr.bf16.mxu0 %v1842
        %3231 = vmatpush1.bf16.msra.mxu0 %v1841
        %3232 = vmatprep.mubr.bf16.mxu0 %v1862
        %3233 = vmatmul.mubr.bf16.gmra.mrb[0].mxu0 %v1861
        %v3234 = vpop.f32.mrb[0].mxu0
        %v3235 = vadd.f32 %v3192, %v3234
        %v3236 = vpop.f32.mrb[0].mxu0
        %v3237 = vadd.f32 %v3194, %v3236
        %v3238 = vpop.f32.mrb[0].mxu0
        %v3239 = vadd.f32 %v3196, %v3238
        %v3240 = vpop.f32.mrb[0].mxu0
        %v3241 = vadd.f32 %v3198, %v3240
        %3242 = vdwg.mxu0
        %v3243 = vld [vmem:[%s260] sm:$0xff]
        %v3244 = vld [vmem:[%s260 + $0x8] sm:$0xff]
        %v3245 = vld [vmem:[%s260 + $0x10] sm:$0xff]
        %v3246 = vld [vmem:[%s260 + $0x18] sm:$0xff]
        %v3251 = vlaneseq
        %v3252 = vshrl.u32 %v3251, 7
        %v3253 = vsub.s32 0, %v3252
        %v3254 = vrot.slane %v3243, %v3253
        %v3255 = vlaneseq
        %v3256 = vshrl.u32 %v3255, 7
        %v3257 = vsub.s32 1, %v3256
        %v3258 = vrot.slane %v3243, %v3257
        %v3259 = vlaneseq
        %v3260 = vshrl.u32 %v3259, 7
        %v3261 = vsub.s32 2, %v3260
        %v3262 = vrot.slane %v3243, %v3261
        %v3263 = vlaneseq
        %v3264 = vshrl.u32 %v3263, 7
        %v3265 = vsub.s32 3, %v3264
        %v3266 = vrot.slane %v3243, %v3265
        %v3267 = vlaneseq
        %v3268 = vshrl.u32 %v3267, 7
        %v3269 = vsub.s32 4, %v3268
        %v3270 = vrot.slane %v3243, %v3269
        %v3271 = vlaneseq
        %v3272 = vshrl.u32 %v3271, 7
        %v3273 = vsub.s32 5, %v3272
        %v3274 = vrot.slane %v3243, %v3273
        %v3275 = vlaneseq
        %v3276 = vshrl.u32 %v3275, 7
        %v3277 = vsub.s32 6, %v3276
        %v3278 = vrot.slane %v3243, %v3277
        %v3279 = vlaneseq
        %v3280 = vshrl.u32 %v3279, 7
        %v3281 = vsub.s32 7, %v3280
        %v3282 = vrot.slane %v3243, %v3281
        %v3283 = vlaneseq
        %v3284 = vshrl.u32 %v3283, 7
        %v3285 = vsub.s32 0, %v3284
        %v3286 = vrot.slane %v3244, %v3285
        %v3287 = vlaneseq
        %v3288 = vshrl.u32 %v3287, 7
        %v3289 = vsub.s32 1, %v3288
        %v3290 = vrot.slane %v3244, %v3289
        %v3291 = vlaneseq
        %v3292 = vshrl.u32 %v3291, 7
        %v3293 = vsub.s32 2, %v3292
        %v3294 = vrot.slane %v3244, %v3293
        %v3295 = vlaneseq
        %v3296 = vshrl.u32 %v3295, 7
        %v3297 = vsub.s32 3, %v3296
        %v3298 = vrot.slane %v3244, %v3297
        %v3299 = vlaneseq
        %v3300 = vshrl.u32 %v3299, 7
        %v3301 = vsub.s32 4, %v3300
        %v3302 = vrot.slane %v3244, %v3301
        %v3303 = vlaneseq
        %v3304 = vshrl.u32 %v3303, 7
        %v3305 = vsub.s32 5, %v3304
        %v3306 = vrot.slane %v3244, %v3305
        %v3307 = vlaneseq
        %v3308 = vshrl.u32 %v3307, 7
        %v3309 = vsub.s32 6, %v3308
        %v3310 = vrot.slane %v3244, %v3309
        %v3311 = vlaneseq
        %v3312 = vshrl.u32 %v3311, 7
        %v3313 = vsub.s32 7, %v3312
        %v3314 = vrot.slane %v3244, %v3313
        %v3315 = vlaneseq
        %v3316 = vshrl.u32 %v3315, 7
        %v3317 = vsub.s32 0, %v3316
        %v3318 = vrot.slane %v3245, %v3317
        %v3319 = vlaneseq
        %v3320 = vshrl.u32 %v3319, 7
        %v3321 = vsub.s32 1, %v3320
        %v3322 = vrot.slane %v3245, %v3321
        %v3323 = vlaneseq
        %v3324 = vshrl.u32 %v3323, 7
        %v3325 = vsub.s32 2, %v3324
        %v3326 = vrot.slane %v3245, %v3325
        %v3327 = vlaneseq
        %v3328 = vshrl.u32 %v3327, 7
        %v3329 = vsub.s32 3, %v3328
        %v3330 = vrot.slane %v3245, %v3329
        %v3331 = vlaneseq
        %v3332 = vshrl.u32 %v3331, 7
        %v3333 = vsub.s32 4, %v3332
        %v3334 = vrot.slane %v3245, %v3333
        %v3335 = vlaneseq
        %v3336 = vshrl.u32 %v3335, 7
        %v3337 = vsub.s32 5, %v3336
        %v3338 = vrot.slane %v3245, %v3337
        %v3339 = vlaneseq
        %v3340 = vshrl.u32 %v3339, 7
        %v3341 = vsub.s32 6, %v3340
        %v3342 = vrot.slane %v3245, %v3341
        %v3343 = vlaneseq
        %v3344 = vshrl.u32 %v3343, 7
        %v3345 = vsub.s32 7, %v3344
        %v3346 = vrot.slane %v3245, %v3345
        %v3347 = vlaneseq
        %v3348 = vshrl.u32 %v3347, 7
        %v3349 = vsub.s32 0, %v3348
        %v3350 = vrot.slane %v3246, %v3349
        %v3351 = vlaneseq
        %v3352 = vshrl.u32 %v3351, 7
        %v3353 = vsub.s32 1, %v3352
        %v3354 = vrot.slane %v3246, %v3353
        %v3355 = vlaneseq
        %v3356 = vshrl.u32 %v3355, 7
        %v3357 = vsub.s32 2, %v3356
        %v3358 = vrot.slane %v3246, %v3357
        %v3359 = vlaneseq
        %v3360 = vshrl.u32 %v3359, 7
        %v3361 = vsub.s32 3, %v3360
        %v3362 = vrot.slane %v3246, %v3361
        %v3363 = vlaneseq
        %v3364 = vshrl.u32 %v3363, 7
        %v3365 = vsub.s32 4, %v3364
        %v3366 = vrot.slane %v3246, %v3365
        %v3367 = vlaneseq
        %v3368 = vshrl.u32 %v3367, 7
        %v3369 = vsub.s32 5, %v3368
        %v3370 = vrot.slane %v3246, %v3369
        %v3371 = vlaneseq
        %v3372 = vshrl.u32 %v3371, 7
        %v3373 = vsub.s32 6, %v3372
        %v3374 = vrot.slane %v3246, %v3373
        %v3375 = vlaneseq
        %v3376 = vshrl.u32 %v3375, 7
        %v3377 = vsub.s32 7, %v3376
        %v3378 = vrot.slane %v3246, %v3377
        %v3411 = vmul.f32 %v1945, %v3254
        %v3412 = vmul.f32 %v1947, %v3258
        %v3413 = vmul.f32 %v2031, %v3262
        %v3414 = vmul.f32 %v2033, %v3266
        %v3415 = vmul.f32 %v2117, %v3270
        %v3416 = vmul.f32 %v2119, %v3274
        %v3417 = vmul.f32 %v2203, %v3278
        %v3418 = vmul.f32 %v2205, %v3282
        %v3419 = vmul.f32 %v2289, %v3286
        %v3420 = vmul.f32 %v2291, %v3290
        %v3421 = vmul.f32 %v2375, %v3294
        %v3422 = vmul.f32 %v2377, %v3298
        %v3423 = vmul.f32 %v2461, %v3302
        %v3424 = vmul.f32 %v2463, %v3306
        %v3425 = vmul.f32 %v2547, %v3310
        %v3426 = vmul.f32 %v2549, %v3314
        %v3427 = vmul.f32 %v2633, %v3318
        %v3428 = vmul.f32 %v2635, %v3322
        %v3429 = vmul.f32 %v2719, %v3326
        %v3430 = vmul.f32 %v2721, %v3330
        %v3431 = vmul.f32 %v2805, %v3334
        %v3432 = vmul.f32 %v2807, %v3338
        %v3433 = vmul.f32 %v2891, %v3342
        %v3434 = vmul.f32 %v2893, %v3346
        %v3435 = vmul.f32 %v2977, %v3350
        %v3436 = vmul.f32 %v2979, %v3354
        %v3437 = vmul.f32 %v3063, %v3358
        %v3438 = vmul.f32 %v3065, %v3362
        %v3439 = vmul.f32 %v3149, %v3366
        %v3440 = vmul.f32 %v3151, %v3370
        %v3441 = vmul.f32 %v3235, %v3374
        %v3442 = vmul.f32 %v3237, %v3378
        %v3443 = vmul.f32 %v1949, %v3254
        %v3444 = vmul.f32 %v1951, %v3258
        %v3445 = vmul.f32 %v2035, %v3262
        %v3446 = vmul.f32 %v2037, %v3266
        %v3447 = vmul.f32 %v2121, %v3270
        %v3448 = vmul.f32 %v2123, %v3274
        %v3449 = vmul.f32 %v2207, %v3278
        %v3450 = vmul.f32 %v2209, %v3282
        %v3451 = vmul.f32 %v2293, %v3286
        %v3452 = vmul.f32 %v2295, %v3290
        %v3453 = vmul.f32 %v2379, %v3294
        %v3454 = vmul.f32 %v2381, %v3298
        %v3455 = vmul.f32 %v2465, %v3302
        %v3456 = vmul.f32 %v2467, %v3306
        %v3457 = vmul.f32 %v2551, %v3310
        %v3458 = vmul.f32 %v2553, %v3314
        %v3459 = vmul.f32 %v2637, %v3318
        %v3460 = vmul.f32 %v2639, %v3322
        %v3461 = vmul.f32 %v2723, %v3326
        %v3462 = vmul.f32 %v2725, %v3330
        %v3463 = vmul.f32 %v2809, %v3334
        %v3464 = vmul.f32 %v2811, %v3338
        %v3465 = vmul.f32 %v2895, %v3342
        %v3466 = vmul.f32 %v2897, %v3346
        %v3467 = vmul.f32 %v2981, %v3350
        %v3468 = vmul.f32 %v2983, %v3354
        %v3469 = vmul.f32 %v3067, %v3358
        %v3470 = vmul.f32 %v3069, %v3362
        %v3471 = vmul.f32 %v3153, %v3366
        %v3472 = vmul.f32 %v3155, %v3370
        %v3473 = vmul.f32 %v3239, %v3374
        %v3474 = vmul.f32 %v3241, %v3378
        %v3475 = vld [vmem:[%s269] sm:$0xff]
        %v3476 = vld [vmem:[%s269 + $0x8] sm:$0xff]
        %v3477 = vld [vmem:[%s269 + $0x10] sm:$0xff]
        %v3478 = vld [vmem:[%s269 + $0x18] sm:$0xff]
        %v3483 = vlaneseq
        %v3484 = vshrl.u32 %v3483, 7
        %v3485 = vsub.s32 0, %v3484
        %v3486 = vrot.slane %v3475, %v3485
        %v3487 = vlaneseq
        %v3488 = vshrl.u32 %v3487, 7
        %v3489 = vsub.s32 1, %v3488
        %v3490 = vrot.slane %v3475, %v3489
        %v3491 = vlaneseq
        %v3492 = vshrl.u32 %v3491, 7
        %v3493 = vsub.s32 2, %v3492
        %v3494 = vrot.slane %v3475, %v3493
        %v3495 = vlaneseq
        %v3496 = vshrl.u32 %v3495, 7
        %v3497 = vsub.s32 3, %v3496
        %v3498 = vrot.slane %v3475, %v3497
        %v3499 = vlaneseq
        %v3500 = vshrl.u32 %v3499, 7
        %v3501 = vsub.s32 4, %v3500
        %v3502 = vrot.slane %v3475, %v3501
        %v3503 = vlaneseq
        %v3504 = vshrl.u32 %v3503, 7
        %v3505 = vsub.s32 5, %v3504
        %v3506 = vrot.slane %v3475, %v3505
        %v3507 = vlaneseq
        %v3508 = vshrl.u32 %v3507, 7
        %v3509 = vsub.s32 6, %v3508
        %v3510 = vrot.slane %v3475, %v3509
        %v3511 = vlaneseq
        %v3512 = vshrl.u32 %v3511, 7
        %v3513 = vsub.s32 7, %v3512
        %v3514 = vrot.slane %v3475, %v3513
        %v3515 = vlaneseq
        %v3516 = vshrl.u32 %v3515, 7
        %v3517 = vsub.s32 0, %v3516
        %v3518 = vrot.slane %v3476, %v3517
        %v3519 = vlaneseq
        %v3520 = vshrl.u32 %v3519, 7
        %v3521 = vsub.s32 1, %v3520
        %v3522 = vrot.slane %v3476, %v3521
        %v3523 = vlaneseq
        %v3524 = vshrl.u32 %v3523, 7
        %v3525 = vsub.s32 2, %v3524
        %v3526 = vrot.slane %v3476, %v3525
        %v3527 = vlaneseq
        %v3528 = vshrl.u32 %v3527, 7
        %v3529 = vsub.s32 3, %v3528
        %v3530 = vrot.slane %v3476, %v3529
        %v3531 = vlaneseq
        %v3532 = vshrl.u32 %v3531, 7
        %v3533 = vsub.s32 4, %v3532
        %v3534 = vrot.slane %v3476, %v3533
        %v3535 = vlaneseq
        %v3536 = vshrl.u32 %v3535, 7
        %v3537 = vsub.s32 5, %v3536
        %v3538 = vrot.slane %v3476, %v3537
        %v3539 = vlaneseq
        %v3540 = vshrl.u32 %v3539, 7
        %v3541 = vsub.s32 6, %v3540
        %v3542 = vrot.slane %v3476, %v3541
        %v3543 = vlaneseq
        %v3544 = vshrl.u32 %v3543, 7
        %v3545 = vsub.s32 7, %v3544
        %v3546 = vrot.slane %v3476, %v3545
        %v3547 = vlaneseq
        %v3548 = vshrl.u32 %v3547, 7
        %v3549 = vsub.s32 0, %v3548
        %v3550 = vrot.slane %v3477, %v3549
        %v3551 = vlaneseq
        %v3552 = vshrl.u32 %v3551, 7
        %v3553 = vsub.s32 1, %v3552
        %v3554 = vrot.slane %v3477, %v3553
        %v3555 = vlaneseq
        %v3556 = vshrl.u32 %v3555, 7
        %v3557 = vsub.s32 2, %v3556
        %v3558 = vrot.slane %v3477, %v3557
        %v3559 = vlaneseq
        %v3560 = vshrl.u32 %v3559, 7
        %v3561 = vsub.s32 3, %v3560
        %v3562 = vrot.slane %v3477, %v3561
        %v3563 = vlaneseq
        %v3564 = vshrl.u32 %v3563, 7
        %v3565 = vsub.s32 4, %v3564
        %v3566 = vrot.slane %v3477, %v3565
        %v3567 = vlaneseq
        %v3568 = vshrl.u32 %v3567, 7
        %v3569 = vsub.s32 5, %v3568
        %v3570 = vrot.slane %v3477, %v3569
        %v3571 = vlaneseq
        %v3572 = vshrl.u32 %v3571, 7
        %v3573 = vsub.s32 6, %v3572
        %v3574 = vrot.slane %v3477, %v3573
        %v3575 = vlaneseq
        %v3576 = vshrl.u32 %v3575, 7
        %v3577 = vsub.s32 7, %v3576
        %v3578 = vrot.slane %v3477, %v3577
        %v3579 = vlaneseq
        %v3580 = vshrl.u32 %v3579, 7
        %v3581 = vsub.s32 0, %v3580
        %v3582 = vrot.slane %v3478, %v3581
        %v3583 = vlaneseq
        %v3584 = vshrl.u32 %v3583, 7
        %v3585 = vsub.s32 1, %v3584
        %v3586 = vrot.slane %v3478, %v3585
        %v3587 = vlaneseq
        %v3588 = vshrl.u32 %v3587, 7
        %v3589 = vsub.s32 2, %v3588
        %v3590 = vrot.slane %v3478, %v3589
        %v3591 = vlaneseq
        %v3592 = vshrl.u32 %v3591, 7
        %v3593 = vsub.s32 3, %v3592
        %v3594 = vrot.slane %v3478, %v3593
        %v3595 = vlaneseq
        %v3596 = vshrl.u32 %v3595, 7
        %v3597 = vsub.s32 4, %v3596
        %v3598 = vrot.slane %v3478, %v3597
        %v3599 = vlaneseq
        %v3600 = vshrl.u32 %v3599, 7
        %v3601 = vsub.s32 5, %v3600
        %v3602 = vrot.slane %v3478, %v3601
        %v3603 = vlaneseq
        %v3604 = vshrl.u32 %v3603, 7
        %v3605 = vsub.s32 6, %v3604
        %v3606 = vrot.slane %v3478, %v3605
        %v3607 = vlaneseq
        %v3608 = vshrl.u32 %v3607, 7
        %v3609 = vsub.s32 7, %v3608
        %v3610 = vrot.slane %v3478, %v3609
        %v3643 = vadd.f32 %v3411, %v3486
        %v3644 = vadd.f32 %v3412, %v3490
        %v3645 = vadd.f32 %v3413, %v3494
        %v3646 = vadd.f32 %v3414, %v3498
        %v3647 = vadd.f32 %v3415, %v3502
        %v3648 = vadd.f32 %v3416, %v3506
        %v3649 = vadd.f32 %v3417, %v3510
        %v3650 = vadd.f32 %v3418, %v3514
        %v3651 = vadd.f32 %v3419, %v3518
        %v3652 = vadd.f32 %v3420, %v3522
        %v3653 = vadd.f32 %v3421, %v3526
        %v3654 = vadd.f32 %v3422, %v3530
        %v3655 = vadd.f32 %v3423, %v3534
        %v3656 = vadd.f32 %v3424, %v3538
        %v3657 = vadd.f32 %v3425, %v3542
        %v3658 = vadd.f32 %v3426, %v3546
        %v3659 = vadd.f32 %v3427, %v3550
        %v3660 = vadd.f32 %v3428, %v3554
        %v3661 = vadd.f32 %v3429, %v3558
        %v3662 = vadd.f32 %v3430, %v3562
        %v3663 = vadd.f32 %v3431, %v3566
        %v3664 = vadd.f32 %v3432, %v3570
        %v3665 = vadd.f32 %v3433, %v3574
        %v3666 = vadd.f32 %v3434, %v3578
        %v3667 = vadd.f32 %v3435, %v3582
        %v3668 = vadd.f32 %v3436, %v3586
        %v3669 = vadd.f32 %v3437, %v3590
        %v3670 = vadd.f32 %v3438, %v3594
        %v3671 = vadd.f32 %v3439, %v3598
        %v3672 = vadd.f32 %v3440, %v3602
        %v3673 = vadd.f32 %v3441, %v3606
        %v3674 = vadd.f32 %v3442, %v3610
        %v3675 = vadd.f32 %v3443, %v3486
        %v3676 = vadd.f32 %v3444, %v3490
        %v3677 = vadd.f32 %v3445, %v3494
        %v3678 = vadd.f32 %v3446, %v3498
        %v3679 = vadd.f32 %v3447, %v3502
        %v3680 = vadd.f32 %v3448, %v3506
        %v3681 = vadd.f32 %v3449, %v3510
        %v3682 = vadd.f32 %v3450, %v3514
        %v3683 = vadd.f32 %v3451, %v3518
        %v3684 = vadd.f32 %v3452, %v3522
        %v3685 = vadd.f32 %v3453, %v3526
        %v3686 = vadd.f32 %v3454, %v3530
        %v3687 = vadd.f32 %v3455, %v3534
        %v3688 = vadd.f32 %v3456, %v3538
        %v3689 = vadd.f32 %v3457, %v3542
        %v3690 = vadd.f32 %v3458, %v3546
        %v3691 = vadd.f32 %v3459, %v3550
        %v3692 = vadd.f32 %v3460, %v3554
        %v3693 = vadd.f32 %v3461, %v3558
        %v3694 = vadd.f32 %v3462, %v3562
        %v3695 = vadd.f32 %v3463, %v3566
        %v3696 = vadd.f32 %v3464, %v3570
        %v3697 = vadd.f32 %v3465, %v3574
        %v3698 = vadd.f32 %v3466, %v3578
        %v3699 = vadd.f32 %v3467, %v3582
        %v3700 = vadd.f32 %v3468, %v3586
        %v3701 = vadd.f32 %v3469, %v3590
        %v3702 = vadd.f32 %v3470, %v3594
        %v3703 = vadd.f32 %v3471, %v3598
        %v3704 = vadd.f32 %v3472, %v3602
        %v3705 = vadd.f32 %v3473, %v3606
        %v3706 = vadd.f32 %v3474, %v3610
        %v3707 = vmax.f32 %v3643, 0.0
        %v3708 = vmax.f32 %v3644, 0.0
        %v3709 = vmax.f32 %v3645, 0.0
        %v3710 = vmax.f32 %v3646, 0.0
        %v3711 = vmax.f32 %v3647, 0.0
        %v3712 = vmax.f32 %v3648, 0.0
        %v3713 = vmax.f32 %v3649, 0.0
        %v3714 = vmax.f32 %v3650, 0.0
        %v3715 = vmax.f32 %v3651, 0.0
        %v3716 = vmax.f32 %v3652, 0.0
        %v3717 = vmax.f32 %v3653, 0.0
        %v3718 = vmax.f32 %v3654, 0.0
        %v3719 = vmax.f32 %v3655, 0.0
        %v3720 = vmax.f32 %v3656, 0.0
        %v3721 = vmax.f32 %v3657, 0.0
        %v3722 = vmax.f32 %v3658, 0.0
        %v3723 = vmax.f32 %v3659, 0.0
        %v3724 = vmax.f32 %v3660, 0.0
        %v3725 = vmax.f32 %v3661, 0.0
        %v3726 = vmax.f32 %v3662, 0.0
        %v3727 = vmax.f32 %v3663, 0.0
        %v3728 = vmax.f32 %v3664, 0.0
        %v3729 = vmax.f32 %v3665, 0.0
        %v3730 = vmax.f32 %v3666, 0.0
        %v3731 = vmax.f32 %v3667, 0.0
        %v3732 = vmax.f32 %v3668, 0.0
        %v3733 = vmax.f32 %v3669, 0.0
        %v3734 = vmax.f32 %v3670, 0.0
        %v3735 = vmax.f32 %v3671, 0.0
        %v3736 = vmax.f32 %v3672, 0.0
        %v3737 = vmax.f32 %v3673, 0.0
        %v3738 = vmax.f32 %v3674, 0.0
        %v3739 = vmax.f32 %v3675, 0.0
        %v3740 = vmax.f32 %v3676, 0.0
        %v3741 = vmax.f32 %v3677, 0.0
        %v3742 = vmax.f32 %v3678, 0.0
        %v3743 = vmax.f32 %v3679, 0.0
        %v3744 = vmax.f32 %v3680, 0.0
        %v3745 = vmax.f32 %v3681, 0.0
        %v3746 = vmax.f32 %v3682, 0.0
        %v3747 = vmax.f32 %v3683, 0.0
        %v3748 = vmax.f32 %v3684, 0.0
        %v3749 = vmax.f32 %v3685, 0.0
        %v3750 = vmax.f32 %v3686, 0.0
        %v3751 = vmax.f32 %v3687, 0.0
        %v3752 = vmax.f32 %v3688, 0.0
        %v3753 = vmax.f32 %v3689, 0.0
        %v3754 = vmax.f32 %v3690, 0.0
        %v3755 = vmax.f32 %v3691, 0.0
        %v3756 = vmax.f32 %v3692, 0.0
        %v3757 = vmax.f32 %v3693, 0.0
        %v3758 = vmax.f32 %v3694, 0.0
        %v3759 = vmax.f32 %v3695, 0.0
        %v3760 = vmax.f32 %v3696, 0.0
        %v3761 = vmax.f32 %v3697, 0.0
        %v3762 = vmax.f32 %v3698, 0.0
        %v3763 = vmax.f32 %v3699, 0.0
        %v3764 = vmax.f32 %v3700, 0.0
        %v3765 = vmax.f32 %v3701, 0.0
        %v3766 = vmax.f32 %v3702, 0.0
        %v3767 = vmax.f32 %v3703, 0.0
        %v3768 = vmax.f32 %v3704, 0.0
        %v3769 = vmax.f32 %v3705, 0.0
        %v3770 = vmax.f32 %v3706, 0.0
        %v3771 = vpack.c.bf16 %v3739, %v3707
        %v3772 = vpack.c.bf16 %v3740, %v3708
        %v3773 = vpack.c.bf16 %v3741, %v3709
        %v3774 = vpack.c.bf16 %v3742, %v3710
        %v3775 = vpack.c.bf16 %v3743, %v3711
        %v3776 = vpack.c.bf16 %v3744, %v3712
        %v3777 = vpack.c.bf16 %v3745, %v3713
        %v3778 = vpack.c.bf16 %v3746, %v3714
        %v3779 = vpack.c.bf16 %v3747, %v3715
        %v3780 = vpack.c.bf16 %v3748, %v3716
        %v3781 = vpack.c.bf16 %v3749, %v3717
        %v3782 = vpack.c.bf16 %v3750, %v3718
        %v3783 = vpack.c.bf16 %v3751, %v3719
        %v3784 = vpack.c.bf16 %v3752, %v3720
        %v3785 = vpack.c.bf16 %v3753, %v3721
        %v3786 = vpack.c.bf16 %v3754, %v3722
        %v3787 = vpack.c.bf16 %v3755, %v3723
        %v3788 = vpack.c.bf16 %v3756, %v3724
        %v3789 = vpack.c.bf16 %v3757, %v3725
        %v3790 = vpack.c.bf16 %v3758, %v3726
        %v3791 = vpack.c.bf16 %v3759, %v3727
        %v3792 = vpack.c.bf16 %v3760, %v3728
        %v3793 = vpack.c.bf16 %v3761, %v3729
        %v3794 = vpack.c.bf16 %v3762, %v3730
        %v3795 = vpack.c.bf16 %v3763, %v3731
        %v3796 = vpack.c.bf16 %v3764, %v3732
        %v3797 = vpack.c.bf16 %v3765, %v3733
        %v3798 = vpack.c.bf16 %v3766, %v3734
        %v3799 = vpack.c.bf16 %v3767, %v3735
        %v3800 = vpack.c.bf16 %v3768, %v3736
        %v3801 = vpack.c.bf16 %v3769, %v3737
        %v3802 = vpack.c.bf16 %v3770, %v3738
        %v3835 = vunpack.c.l.b16 %v3771
        %v3836 = vunpack.c.l.b16 %v3772
        %v3837 = vunpack.c.l.b16 %v3773
        %v3838 = vunpack.c.l.b16 %v3774
        %v3839 = vunpack.c.l.b16 %v3775
        %v3840 = vunpack.c.l.b16 %v3776
        %v3841 = vunpack.c.l.b16 %v3777
        %v3842 = vunpack.c.l.b16 %v3778
        %v3843 = vunpack.c.l.b16 %v3779
        %v3844 = vunpack.c.l.b16 %v3780
        %v3845 = vunpack.c.l.b16 %v3781
        %v3846 = vunpack.c.l.b16 %v3782
        %v3847 = vunpack.c.l.b16 %v3783
        %v3848 = vunpack.c.l.b16 %v3784
        %v3849 = vunpack.c.l.b16 %v3785
        %v3850 = vunpack.c.l.b16 %v3786
        %v3851 = vunpack.c.l.b16 %v3787
        %v3852 = vunpack.c.l.b16 %v3788
        %v3853 = vunpack.c.l.b16 %v3789
        %v3854 = vunpack.c.l.b16 %v3790
        %v3855 = vunpack.c.l.b16 %v3791
        %v3856 = vunpack.c.l.b16 %v3792
        %v3857 = vunpack.c.l.b16 %v3793
        %v3858 = vunpack.c.l.b16 %v3794
        %v3859 = vunpack.c.l.b16 %v3795
        %v3860 = vunpack.c.l.b16 %v3796
        %v3861 = vunpack.c.l.b16 %v3797
        %v3862 = vunpack.c.l.b16 %v3798
        %v3863 = vunpack.c.l.b16 %v3799
        %v3864 = vunpack.c.l.b16 %v3800
        %v3865 = vunpack.c.l.b16 %v3801
        %v3866 = vunpack.c.l.b16 %v3802
        %v3867 = vunpack.c.h.b16 %v3771
        %v3868 = vunpack.c.h.b16 %v3772
        %v3869 = vunpack.c.h.b16 %v3773
        %v3870 = vunpack.c.h.b16 %v3774
        %v3871 = vunpack.c.h.b16 %v3775
        %v3872 = vunpack.c.h.b16 %v3776
        %v3873 = vunpack.c.h.b16 %v3777
        %v3874 = vunpack.c.h.b16 %v3778
        %v3875 = vunpack.c.h.b16 %v3779
        %v3876 = vunpack.c.h.b16 %v3780
        %v3877 = vunpack.c.h.b16 %v3781
        %v3878 = vunpack.c.h.b16 %v3782
        %v3879 = vunpack.c.h.b16 %v3783
        %v3880 = vunpack.c.h.b16 %v3784
        %v3881 = vunpack.c.h.b16 %v3785
        %v3882 = vunpack.c.h.b16 %v3786
        %v3883 = vunpack.c.h.b16 %v3787
        %v3884 = vunpack.c.h.b16 %v3788
        %v3885 = vunpack.c.h.b16 %v3789
        %v3886 = vunpack.c.h.b16 %v3790
        %v3887 = vunpack.c.h.b16 %v3791
        %v3888 = vunpack.c.h.b16 %v3792
        %v3889 = vunpack.c.h.b16 %v3793
        %v3890 = vunpack.c.h.b16 %v3794
        %v3891 = vunpack.c.h.b16 %v3795
        %v3892 = vunpack.c.h.b16 %v3796
        %v3893 = vunpack.c.h.b16 %v3797
        %v3894 = vunpack.c.h.b16 %v3798
        %v3895 = vunpack.c.h.b16 %v3799
        %v3896 = vunpack.c.h.b16 %v3800
        %v3897 = vunpack.c.h.b16 %v3801
        %v3898 = vunpack.c.h.b16 %v3802
        %v3899 = vpack.c.b16 %v3836, %v3835
        %v3900 = vpack.c.b16 %v3838, %v3837
        %v3901 = vpack.c.b16 %v3840, %v3839
        %v3902 = vpack.c.b16 %v3842, %v3841
        %v3903 = vpack.c.b16 %v3844, %v3843
        %v3904 = vpack.c.b16 %v3846, %v3845
        %v3905 = vpack.c.b16 %v3848, %v3847
        %v3906 = vpack.c.b16 %v3850, %v3849
        %v3907 = vpack.c.b16 %v3852, %v3851
        %v3908 = vpack.c.b16 %v3854, %v3853
        %v3909 = vpack.c.b16 %v3856, %v3855
        %v3910 = vpack.c.b16 %v3858, %v3857
        %v3911 = vpack.c.b16 %v3860, %v3859
        %v3912 = vpack.c.b16 %v3862, %v3861
        %v3913 = vpack.c.b16 %v3864, %v3863
        %v3914 = vpack.c.b16 %v3866, %v3865
        %v3915 = vpack.c.b16 %v3868, %v3867
        %v3916 = vpack.c.b16 %v3870, %v3869
        %v3917 = vpack.c.b16 %v3872, %v3871
        %v3918 = vpack.c.b16 %v3874, %v3873
        %v3919 = vpack.c.b16 %v3876, %v3875
        %v3920 = vpack.c.b16 %v3878, %v3877
        %v3921 = vpack.c.b16 %v3880, %v3879
        %v3922 = vpack.c.b16 %v3882, %v3881
        %v3923 = vpack.c.b16 %v3884, %v3883
        %v3924 = vpack.c.b16 %v3886, %v3885
        %v3925 = vpack.c.b16 %v3888, %v3887
        %v3926 = vpack.c.b16 %v3890, %v3889
        %v3927 = vpack.c.b16 %v3892, %v3891
        %v3928 = vpack.c.b16 %v3894, %v3893
        %v3929 = vpack.c.b16 %v3896, %v3895
        %v3930 = vpack.c.b16 %v3898, %v3897
        %3963 = vst [vmem:[%s303] sm:$0xff] %v3899
        %3964 = vst [vmem:[%s303 + $0x8] sm:$0xff] %v3900
        %3965 = vst [vmem:[%s303 + $0x10] sm:$0xff] %v3901
        %3966 = vst [vmem:[%s303 + $0x18] sm:$0xff] %v3902
        %3967 = vst [vmem:[%s303 + $0x20] sm:$0xff] %v3903
        %3968 = vst [vmem:[%s303 + $0x28] sm:$0xff] %v3904
        %3969 = vst [vmem:[%s303 + $0x30] sm:$0xff] %v3905
        %3970 = vst [vmem:[%s303 + $0x38] sm:$0xff] %v3906
        %3971 = vst [vmem:[%s303 + $0x40] sm:$0xff] %v3907
        %3972 = vst [vmem:[%s303 + $0x48] sm:$0xff] %v3908
        %3973 = vst [vmem:[%s303 + $0x50] sm:$0xff] %v3909
        %3974 = vst [vmem:[%s303 + $0x58] sm:$0xff] %v3910
        %3975 = vst [vmem:[%s303 + $0x60] sm:$0xff] %v3911
        %3976 = vst [vmem:[%s303 + $0x68] sm:$0xff] %v3912
        %3977 = vst [vmem:[%s303 + $0x70] sm:$0xff] %v3913
        %3978 = vst [vmem:[%s303 + $0x78] sm:$0xff] %v3914
        %3979 = vst [vmem:[%s303 + $0x80] sm:$0xff] %v3915
        %3980 = vst [vmem:[%s303 + $0x88] sm:$0xff] %v3916
        %3981 = vst [vmem:[%s303 + $0x90] sm:$0xff] %v3917
        %3982 = vst [vmem:[%s303 + $0x98] sm:$0xff] %v3918
        %3983 = vst [vmem:[%s303 + $0xa0] sm:$0xff] %v3919
        %3984 = vst [vmem:[%s303 + $0xa8] sm:$0xff] %v3920
        %3985 = vst [vmem:[%s303 + $0xb0] sm:$0xff] %v3921
        %3986 = vst [vmem:[%s303 + $0xb8] sm:$0xff] %v3922
        %3987 = vst [vmem:[%s303 + $0xc0] sm:$0xff] %v3923
        %3988 = vst [vmem:[%s303 + $0xc8] sm:$0xff] %v3924
        %3989 = vst [vmem:[%s303 + $0xd0] sm:$0xff] %v3925
        %3990 = vst [vmem:[%s303 + $0xd8] sm:$0xff] %v3926
        %3991 = vst [vmem:[%s303 + $0xe0] sm:$0xff] %v3927
        %3992 = vst [vmem:[%s303 + $0xe8] sm:$0xff] %v3928
        %3993 = vst [vmem:[%s303 + $0xf0] sm:$0xff] %v3929
        %3994 = vst [vmem:[%s303 + $0xf8] sm:$0xff] %v3930
        %s3995 = sand.u32 %s132, 1
        %s3996 = scalar_lea.sflag [#allocation4], %s3995
        %s3997 = sand.u32 %s132, 1
        %s3998 = smul.addr %s3997, 256
        %s3999 = scalar_lea.vmem [#allocation10], %s3998
        // Predicated region
        $region53: #{tpu_custom_call.1} parent=35 // pred_check
          %p4000 = pneg %p142
        $region54: #{tpu_custom_call.1} parent=35 // pred_check_branch
          %4002 = sbr.rel (%p4000) target = $region56
        $region55: #{tpu_custom_call.1} parent=35 // pred_region
          %s4003 = smul.u32 32, %s25
          %s4005 = ssub.s32 4096, 4096
          %4006 = vsyncadd %s3996, %s4005
          %s4007 = smul.addr %s4003, 64
          %s4008 = scalar_lea.hbm %s4, %s4007
          %s4009 = sshll.u32 %s3999, 4
          %s4010 = int_to_ptr.vmem [resolvable:$true] %s4009
          %4015 = dma.vmem_to_hbm [thread:$0]  %s4010, 4096, %s4008, %s3996, 2048, 4096, 128
        $region56: #{tpu_custom_call.1} parent=35 // pred_fallthru
          _
      $region36: #{tpu_custom_call.1} parent=5 // pred_fallthru
        _
      %p4016 = scmp.le.s32.totalorder 2, %s20
      // Predicated region
      $region57: #{tpu_custom_call.1} parent=5 // pred_check
        %p4017 = pneg %p4016
      $region58: #{tpu_custom_call.1} parent=5 // pred_check_branch
        %4019 = sbr.rel (%p4017) target = $region60
      $region59: #{tpu_custom_call.1} parent=5 // pred_region
        %s4020 = ssub.s32 %s20, 2
        // Predicated region
        $region61: #{tpu_custom_call.1} parent=59 // pred_check
          %p4021 = pneg %p148
        $region62: #{tpu_custom_call.1} parent=59 // pred_check_branch
          %4023 = sbr.rel (%p4021) target = $region64
        $region63: #{tpu_custom_call.1} parent=59 // pred_region
          %s4024 = sand.u32 %s133, 1
          %s4025 = scalar_lea.sflag [#allocation4], %s4024
          %s4026 = sand.u32 %s133, 1
          %s4027 = smul.addr %s4026, 256
          %s4028 = scalar_lea.vmem [#allocation10], %s4027
          %4029 = dma.done %s4025, 4096
        $region64: #{tpu_custom_call.1} parent=59 // pred_fallthru
          _
      $region60: #{tpu_custom_call.1} parent=5 // pred_fallthru
        _
    $region6: #{tpu_custom_call.1} parent=1 // loop_footer
      %s24 = sadd.s32 1, %s20
    $region7: #{tpu_custom_call.1} parent=1 // loop_footer_branch
      %19 = sbr.rel target = $region3
    $region8: #{tpu_custom_call.1} parent=1 // loop_exit
      _
    %4030 = vsyncpa [#allocation3], 1
    %s4031 = scalar_lea.sflag [#allocation3], 1
    %4032 = vsyncpa %s4031, 1
    %4033 = vsyncpa [#allocation6], 1
    %s4034 = scalar_lea.sflag [#allocation6], 1
    %4035 = vsyncpa %s4034, 1
    %4036 = vsyncpa [#allocation9], 1
    %s4037 = scalar_lea.sflag [#allocation9], 1
    %4038 = vsyncpa %s4037, 1
    %4039 = vsyncpa [#allocation4], 1
    %s4040 = scalar_lea.sflag [#allocation4], 1
    %4041 = vsyncpa %s4040, 1

</llo_original>
